<compile_context>
chip_gen: v5e
topology: v5e:2x2
jax: 0.10.0
libtpu: 0.0.40
codegen_flags: <defaults>
</compile_context>

<pallas_src>
import jax
import jax.numpy as jnp
import numpy as np
from jax import lax
from jax.experimental import pallas as pl
from jax.experimental.pallas import tpu as pltpu


# ------------- fused (input-projection + bidirectional recurrence) ------------
def _make_bilstm_kernel(n_chunks, TB, B, H):
    G = 4 * H

    def kernel(*refs):
        idx = 0
        lens_ref = refs[idx]; idx += 1
        xf_refs = refs[idx:idx + n_chunks]; idx += n_chunks      # fwd-indexed blocks
        xb_refs = refs[idx:idx + n_chunks]; idx += n_chunks      # bwd-indexed blocks
        wf_refs = refs[idx:idx + n_chunks]; idx += n_chunks
        wb_refs = refs[idx:idx + n_chunks]; idx += n_chunks
        bf_ref, bb_ref, whf_ref, whb_ref = refs[idx:idx + 4]; idx += 4
        hsf_ref, hsb_ref, hff_ref, hfb_ref = refs[idx:idx + 4]; idx += 4
        gf_sc, gb_sc, hf_sc, cf_sc, hb_sc, cb_sc = refs[idx:idx + 6]

        i = pl.program_id(0)
        nb = pl.num_programs(0)

        @pl.when(i == 0)
        def _init():
            hf_sc[...] = jnp.zeros_like(hf_sc)
            cf_sc[...] = jnp.zeros_like(cf_sc)
            hb_sc[...] = jnp.zeros_like(hb_sc)
            cb_sc[...] = jnp.zeros_like(cb_sc)

        lens = lens_ref[...]            # (B, 1) int32
        whf = whf_ref[...]              # (H, 4H)
        whb = whb_ref[...]              # (H, 4H)

        # ---- block input projection: one GEMM per chunk per direction -------
        gf = bf_ref[...]
        gb = bb_ref[...]
        for xfr, xbr, wfr, wbr in zip(xf_refs, xb_refs, wf_refs, wb_refs):
            gf = gf + jnp.dot(xfr[...], wfr[...], preferred_element_type=jnp.float32)
            gb = gb + jnp.dot(xbr[...], wbr[...], preferred_element_type=jnp.float32)
        gf_sc[...] = gf                 # (TB*B, 4H) gates for this fwd block
        gb_sc[...] = gb                 # (TB*B, 4H) gates for this bwd block

        def cell(g, h, c, t):
            # PyTorch gate order i, f, g, o.  Elementwise math in f32.
            if H < 128:
                # Full-width EUP passes; slice gates from the results.
                sg = jax.nn.sigmoid(g)
                tg = jnp.tanh(g)
                i_g = sg[:, 0 * H:1 * H]
                f_g = sg[:, 1 * H:2 * H]
                o_g = sg[:, 3 * H:4 * H]
                g_g = tg[:, 2 * H:3 * H]
            else:
                i_g = jax.nn.sigmoid(g[:, 0 * H:1 * H])
                f_g = jax.nn.sigmoid(g[:, 1 * H:2 * H])
                g_g = jnp.tanh(g[:, 2 * H:3 * H])
                o_g = jax.nn.sigmoid(g[:, 3 * H:4 * H])
            c_new = f_g * c + i_g * g_g
            h_new = o_g * jnp.tanh(c_new)
            # pack_padded_sequence semantics: state only updates while t < length.
            m = t < lens                                  # (B, 1) bool
            return jnp.where(m, h_new, h), jnp.where(m, c_new, c)

        tf0 = i * TB                    # first time index of the fwd block
        tb0 = (nb - 1 - i) * TB         # first time index of the bwd block

        def body(j, carry):
            hf, cf, hb, cb = carry
            jb = TB - 1 - j
            rf = pl.multiple_of(j * B, 8)
            rb = pl.multiple_of(jb * B, 8)
            # Two independent recurrences per iteration -> 2x ILP.
            gfj = gf_sc[pl.ds(rf, B), :] + jnp.dot(
                hf, whf, preferred_element_type=jnp.float32)
            gbj = gb_sc[pl.ds(rb, B), :] + jnp.dot(
                hb, whb, preferred_element_type=jnp.float32)
            hf, cf = cell(gfj, hf, cf, tf0 + j)
            hb, cb = cell(gbj, hb, cb, tb0 + jb)
            hsf_ref[pl.ds(rf, B), :] = hf
            hsb_ref[pl.ds(rb, B), :] = hb
            return hf, cf, hb, cb

        carry0 = (hf_sc[...], cf_sc[...], hb_sc[...], cb_sc[...])
        hf, cf, hb, cb = lax.fori_loop(0, TB, body, carry0, unroll=True)
        hf_sc[...] = hf
        cf_sc[...] = cf
        hb_sc[...] = hb
        cb_sc[...] = cb

        @pl.when(i == nb - 1)
        def _finalize():
            hff_ref[...] = hf
            hfb_ref[...] = hb

    return kernel


def bilstm_layer(chunks, wf_chunks, wb_chunks, bf, bb, whf, whb, lens_b1,
                 Tp, Bp, H, TB):
    """One bidirectional LSTM layer.

    `chunks` are flat time-major inputs of shape (Tp*Bp, D_c); for layers > 0
    they are the two direction hseq halves (so the concat never materializes).
    Returns (hseq_f, hseq_b, hfin_f, hfin_b) with hseq flat (Tp*Bp, H).
    """
    nb = Tp // TB
    n = len(chunks)
    G = 4 * H
    d_total = sum(int(c.shape[1]) for c in chunks)
    kernel = _make_bilstm_kernel(n, TB, Bp, H)

    in_specs = [pl.BlockSpec((Bp, 1), lambda i: (0, 0))]                 # lengths
    for c in chunks:                                                     # fwd blocks
        in_specs.append(pl.BlockSpec((TB * Bp, int(c.shape[1])), lambda i: (i, 0)))
    for c in chunks:                                                     # bwd blocks
        in_specs.append(pl.BlockSpec((TB * Bp, int(c.shape[1])),
                                     lambda i: (nb - 1 - i, 0)))
    for w in list(wf_chunks) + list(wb_chunks):                          # resident W_ih
        in_specs.append(pl.BlockSpec(w.shape, lambda i: (0, 0)))
    in_specs += [pl.BlockSpec((1, G), lambda i: (0, 0)),                 # b_f
                 pl.BlockSpec((1, G), lambda i: (0, 0)),                 # b_b
                 pl.BlockSpec((H, G), lambda i: (0, 0)),                 # W_hh fwd
                 pl.BlockSpec((H, G), lambda i: (0, 0))]                 # W_hh bwd

    out_specs = (pl.BlockSpec((TB * Bp, H), lambda i: (i, 0)),           # hseq fwd
                 pl.BlockSpec((TB * Bp, H), lambda i: (nb - 1 - i, 0)),  # hseq bwd
                 pl.BlockSpec((Bp, H), lambda i: (0, 0)),                # final h fwd
                 pl.BlockSpec((Bp, H), lambda i: (0, 0)))                # final h bwd

    out_shape = (jax.ShapeDtypeStruct((Tp * Bp, H), jnp.float32),
                 jax.ShapeDtypeStruct((Tp * Bp, H), jnp.float32),
                 jax.ShapeDtypeStruct((Bp, H), jnp.float32),
                 jax.ShapeDtypeStruct((Bp, H), jnp.float32))

    scratch_shapes = [pltpu.VMEM((TB * Bp, G), jnp.float32),   # fwd gate block
                      pltpu.VMEM((TB * Bp, G), jnp.float32),   # bwd gate block
                      pltpu.VMEM((Bp, H), jnp.float32),        # h fwd
                      pltpu.VMEM((Bp, H), jnp.float32),        # c fwd
                      pltpu.VMEM((Bp, H), jnp.float32),        # h bwd
                      pltpu.VMEM((Bp, H), jnp.float32)]        # c bwd

    # Advisory cost so XLA schedules the gather/reshape glue around this call.
    flops = 2 * (2 * Tp * Bp * d_total * G + 2 * Tp * Bp * H * G)
    transcendentals = 2 * Tp * Bp * 5 * H
    bytes_accessed = 4 * (2 * Tp * Bp * d_total + 2 * Tp * Bp * H
                          + 2 * (d_total * G + H * G + G) + 2 * Bp * H)

    args = ([lens_b1] + list(chunks) + list(chunks)
            + list(wf_chunks) + list(wb_chunks) + [bf, bb, whf, whb])

    return pl.pallas_call(
        kernel,
        out_shape=out_shape,
        grid=(nb,),
        in_specs=in_specs,
        out_specs=out_specs,
        scratch_shapes=scratch_shapes,
        compiler_params=pltpu.CompilerParams(
            dimension_semantics=("arbitrary",),     # time blocks are a carried chain
            vmem_limit_bytes=64 * 1024 * 1024),     # raise scoped limit for big TB
        cost_estimate=pl.CostEstimate(flops=flops,
                                      transcendentals=transcendentals,
                                      bytes_accessed=bytes_accessed),
    )(*args)


# --------------------------------- FC kernel ----------------------------------
def _fc_kernel(hb_ref, hf_ref, wb_ref, wf_ref, b_ref, o_ref):
    # logits = [h_backward, h_forward] @ W + b, without materializing the concat.
    o_ref[...] = (jnp.dot(hb_ref[...], wb_ref[...], preferred_element_type=jnp.float32)
                  + jnp.dot(hf_ref[...], wf_ref[...], preferred_element_type=jnp.float32)
                  + b_ref[...])


def fc(hb, hf, wb, wf, b):
    B, H = hb.shape
    O = wb.shape[1]
    return pl.pallas_call(
        _fc_kernel,
        out_shape=jax.ShapeDtypeStruct((B, O), jnp.float32),
        grid=(1,),
        in_specs=[pl.BlockSpec((B, H), lambda i: (0, 0)),
                  pl.BlockSpec((B, H), lambda i: (0, 0)),
                  pl.BlockSpec((H, O), lambda i: (0, 0)),
                  pl.BlockSpec((H, O), lambda i: (0, 0)),
                  pl.BlockSpec((1, O), lambda i: (0, 0))],
        out_specs=pl.BlockSpec((B, O), lambda i: (0, 0)),
    )(hb, hf, wb, wf, b)


# ------------------------------- model forward --------------------------------
def model_forward(params, tokens, lengths, time_block=16):
    H = params['hid_dim']
    pad_ix = params['pad_ix']
    B0, T0 = tokens.shape

    # Pad batch to a multiple of 8 (sublane tile) and T to a multiple of the
    # time block. Padded rows get length 0 -> their state never updates.
    Bp = -(-B0 // 8) * 8
    Tp = -(-T0 // time_block) * time_block
    tokens_p = jnp.full((Bp, Tp), pad_ix, dtype=jnp.int32)
    tokens_p = tokens_p.at[:B0, :T0].set(tokens.astype(jnp.int32))
    lens_p = jnp.zeros((Bp,), jnp.int32).at[:B0].set(lengths.astype(jnp.int32))
    lens_b1 = lens_p.reshape(Bp, 1)

    # Embedding lookup (gather) kept as plain-JAX glue; padding_idx row is zero.
    emb = params['embedding'][tokens_p]                        # (Bp, Tp, E)
    x = jnp.transpose(emb, (1, 0, 2)).astype(jnp.float32)      # (Tp, Bp, E)
    chunks = [x.reshape(Tp * Bp, -1)]                          # flat time-major

    hfin_f = hfin_b = None
    for li, p in enumerate(params['lstm']):
        if li == 0:
            wf_chunks = [p['wih_f']]
            wb_chunks = [p['wih_b']]
        else:
            # Row-split W_ih so the concat of (hseq_f, hseq_b) is never materialized.
            wf_chunks = [p['wih_f'][:H], p['wih_f'][H:]]
            wb_chunks = [p['wih_b'][:H], p['wih_b'][H:]]
        hseq_f, hseq_b, hfin_f, hfin_b = bilstm_layer(
            chunks, wf_chunks, wb_chunks, p['b_f'], p['b_b'],
            p['whh_f'], p['whh_b'], lens_b1, Tp, Bp, H, time_block)
        chunks = [hseq_f, hseq_b]
        # TODO(synk): inter-layer dropout skipped (eval-mode forward semantics).

    # torch.cat((h[-1], h[-2]), dim=1) == [backward_final, forward_final] of last layer
    logits = fc(hfin_b, hfin_f, params['fc_w'][:H], params['fc_w'][H:], params['fc_b'])
    return logits[:B0]


# ----------------------------- deterministic init -----------------------------
def init_params(key, vocab, emb_dim, hid_dim, out_dim, num_layers, pad_ix):
    keys = jax.random.split(key, 3 + num_layers)
    emb = 0.1 * jax.random.normal(keys[0], (vocab, emb_dim), jnp.float32)
    emb = emb.at[pad_ix].set(0.0)

    def w(kk, shape):
        return 0.1 * jax.random.normal(kk, shape, jnp.float32)

    layers = []
    for l in range(num_layers):
        d_in = emb_dim if l == 0 else 2 * hid_dim
        k = jax.random.split(keys[3 + l], 6)
        layers.append(dict(
            wih_f=w(k[0], (d_in, 4 * hid_dim)),
            whh_f=w(k[1], (hid_dim, 4 * hid_dim)),
            b_f=w(k[2], (1, 4 * hid_dim)),
            wih_b=w(k[3], (d_in, 4 * hid_dim)),
            whh_b=w(k[4], (hid_dim, 4 * hid_dim)),
            b_b=w(k[5], (1, 4 * hid_dim)),
        ))
    fc_w = 0.1 * jax.random.normal(keys[1], (2 * hid_dim, out_dim), jnp.float32)
    fc_b = jnp.zeros((1, out_dim), jnp.float32)
    return dict(embedding=emb, lstm=layers, fc_w=fc_w, fc_b=fc_b,
                hid_dim=hid_dim, pad_ix=pad_ix)


# ------------------------------ numpy reference --------------------------------
def reference_forward(params, tokens, lengths):
    emb = np.asarray(params['embedding'])[np.asarray(tokens)]  # (B, T, E)
    B, T, _ = emb.shape
    H = params['hid_dim']
    lens = np.asarray(lengths)
    x = emb.astype(np.float32)

    def sigmoid(z):
        return 1.0 / (1.0 + np.exp(-z))

    outs = {}
    for p in params['lstm']:
        outs = {}
        for name, rev in (('f', False), ('b', True)):
            wih = np.asarray(p['wih_' + name]); whh = np.asarray(p['whh_' + name])
            bias = np.asarray(p['b_' + name])[0]
            h = np.zeros((B, H), np.float32); c = np.zeros((B, H), np.float32)
            seq = np.zeros((B, T, H), np.float32)
            order = range(T - 1, -1, -1) if rev else range(T)
            for t in order:
                g = x[:, t, :] @ wih + h @ whh + bias
                i = sigmoid(g[:, :H]); f = sigmoid(g[:, H:2 * H])
                gg = np.tanh(g[:, 2 * H:3 * H]); o = sigmoid(g[:, 3 * H:])
                cn = f * c + i * gg
                hn = o * np.tanh(cn)
                m = (t < lens)[:, None]
                h = np.where(m, hn, h); c = np.where(m, cn, c)
                seq[:, t, :] = h
            outs[name] = (seq, h)
        x = np.concatenate([outs['f'][0], outs['b'][0]], axis=-1)
    last = np.concatenate([outs['b'][1], outs['f'][1]], axis=1)
    return last @ np.asarray(params['fc_w']) + np.asarray(params['fc_b'])[0]


if __name__ == "__main__":
    key = jax.random.PRNGKey(0)
    vocab, emb_dim, hid_dim, out_dim = 50, 16, 32, 2
    num_layers, pad_ix = 2, 0
    B, T = 2, 32

    pkey, tkey = jax.random.split(key)
    params = init_params(pkey, vocab, emb_dim, hid_dim, out_dim, num_layers, pad_ix)

    lengths = jnp.array([32, 20], dtype=jnp.int32)               # per-example lengths
    tokens = jax.random.randint(tkey, (B, T), 1, vocab, dtype=jnp.int32)
    pos = jnp.arange(T)[None, :]
    tokens = jnp.where(pos < lengths[:, None], tokens, pad_ix)   # pad tail with pad_ix

    out = model_forward(params, tokens, lengths, time_block=16)  # 2 time blocks
    out = jax.block_until_ready(out)

    ref = reference_forward(params, tokens, lengths)
    assert out.shape == (B, out_dim)
    if not np.allclose(np.asarray(out), ref, atol=2e-3, rtol=2e-3):
        raise AssertionError("Pallas output mismatch vs reference")
    print("KERNEL_OK")
</pallas_src>

<mosaic_0001>
module attributes {stable_mosaic.version = 11 : i64} {
  func.func @kernel(%arg0: i32, %arg1: memref<8x1xi32, #tpu.memory_space<vmem>>, %arg2: memref<128x16xf32, #tpu.memory_space<vmem>>, %arg3: memref<128x16xf32, #tpu.memory_space<vmem>>, %arg4: memref<16x128xf32, #tpu.memory_space<vmem>>, %arg5: memref<16x128xf32, #tpu.memory_space<vmem>>, %arg6: memref<1x128xf32, #tpu.memory_space<vmem>>, %arg7: memref<1x128xf32, #tpu.memory_space<vmem>>, %arg8: memref<32x128xf32, #tpu.memory_space<vmem>>, %arg9: memref<32x128xf32, #tpu.memory_space<vmem>>, %arg10: memref<128x32xf32, #tpu.memory_space<vmem>>, %arg11: memref<128x32xf32, #tpu.memory_space<vmem>>, %arg12: memref<8x32xf32, #tpu.memory_space<vmem>>, %arg13: memref<8x32xf32, #tpu.memory_space<vmem>>, %arg14: memref<128x128xf32, #tpu.memory_space<vmem>>, %arg15: memref<128x128xf32, #tpu.memory_space<vmem>>, %arg16: memref<8x32xf32, #tpu.memory_space<vmem>>, %arg17: memref<8x32xf32, #tpu.memory_space<vmem>>, %arg18: memref<8x32xf32, #tpu.memory_space<vmem>>, %arg19: memref<8x32xf32, #tpu.memory_space<vmem>>) attributes {dimension_semantics = [#tpu.dimension_semantics<arbitrary>], iteration_bounds = array<i64: 2>, scalar_prefetch = 0 : i64, scratch_operands = 6 : i64, tpu.core_type = #tpu.core_type<tc>, window_params = [{pipeline_mode = #tpu.pipeline_mode<synchronous>, transform_indices = @transform_0, window_bounds = array<i64: 8, 1>}, {transform_indices = @transform_1, window_bounds = array<i64: 128, 16>}, {transform_indices = @transform_2, window_bounds = array<i64: 128, 16>}, {pipeline_mode = #tpu.pipeline_mode<synchronous>, transform_indices = @transform_3, window_bounds = array<i64: 16, 128>}, {pipeline_mode = #tpu.pipeline_mode<synchronous>, transform_indices = @transform_4, window_bounds = array<i64: 16, 128>}, {pipeline_mode = #tpu.pipeline_mode<synchronous>, transform_indices = @transform_5, window_bounds = array<i64: 1, 128>}, {pipeline_mode = #tpu.pipeline_mode<synchronous>, transform_indices = @transform_6, window_bounds = array<i64: 1, 128>}, {pipeline_mode = #tpu.pipeline_mode<synchronous>, transform_indices = @transform_7, window_bounds = array<i64: 32, 128>}, {pipeline_mode = #tpu.pipeline_mode<synchronous>, transform_indices = @transform_8, window_bounds = array<i64: 32, 128>}, {transform_indices = @transform_9, window_bounds = array<i64: 128, 32>}, {transform_indices = @transform_10, window_bounds = array<i64: 128, 32>}, {pipeline_mode = #tpu.pipeline_mode<synchronous>, transform_indices = @transform_11, window_bounds = array<i64: 8, 32>}, {pipeline_mode = #tpu.pipeline_mode<synchronous>, transform_indices = @transform_12, window_bounds = array<i64: 8, 32>}]} {
    %c0_i32 = arith.constant 0 : i32
    %0 = arith.cmpi eq, %arg0, %c0_i32 : i32
    %1 = arith.extui %0 : i1 to i32
    %c0_i32_0 = arith.constant 0 : i32
    %2 = arith.cmpi ne, %1, %c0_i32_0 : i32
    scf.if %2 {
      %cst_221 = arith.constant 0.000000e+00 : f32
      %1074 = vector.broadcast %cst_221 : f32 to vector<8x32xf32>
      %c0_222 = arith.constant 0 : index
      %c0_223 = arith.constant 0 : index
      %1075 = vector.load %arg16[%c0_222, %c0_223] : memref<8x32xf32, #tpu.memory_space<vmem>>, vector<8x32xf32>
      tpu.vector_store %arg16[%c0_222, %c0_223], %1074 {strides = array<i32>} : memref<8x32xf32, #tpu.memory_space<vmem>>, vector<8x32xf32>,
      %cst_224 = arith.constant 0.000000e+00 : f32
      %1076 = vector.broadcast %cst_224 : f32 to vector<8x32xf32>
      %c0_225 = arith.constant 0 : index
      %c0_226 = arith.constant 0 : index
      %1077 = vector.load %arg17[%c0_225, %c0_226] : memref<8x32xf32, #tpu.memory_space<vmem>>, vector<8x32xf32>
      tpu.vector_store %arg17[%c0_225, %c0_226], %1076 {strides = array<i32>} : memref<8x32xf32, #tpu.memory_space<vmem>>, vector<8x32xf32>,
      %cst_227 = arith.constant 0.000000e+00 : f32
      %1078 = vector.broadcast %cst_227 : f32 to vector<8x32xf32>
      %c0_228 = arith.constant 0 : index
      %c0_229 = arith.constant 0 : index
      %1079 = vector.load %arg18[%c0_228, %c0_229] : memref<8x32xf32, #tpu.memory_space<vmem>>, vector<8x32xf32>
      tpu.vector_store %arg18[%c0_228, %c0_229], %1078 {strides = array<i32>} : memref<8x32xf32, #tpu.memory_space<vmem>>, vector<8x32xf32>,
      %cst_230 = arith.constant 0.000000e+00 : f32
      %1080 = vector.broadcast %cst_230 : f32 to vector<8x32xf32>
      %c0_231 = arith.constant 0 : index
      %c0_232 = arith.constant 0 : index
      %1081 = vector.load %arg19[%c0_231, %c0_232] : memref<8x32xf32, #tpu.memory_space<vmem>>, vector<8x32xf32>
      tpu.vector_store %arg19[%c0_231, %c0_232], %1080 {strides = array<i32>} : memref<8x32xf32, #tpu.memory_space<vmem>>, vector<8x32xf32>,
    } else {
    }
    %c0 = arith.constant 0 : index
    %c0_1 = arith.constant 0 : index
    %3 = vector.load %arg1[%c0, %c0_1] : memref<8x1xi32, #tpu.memory_space<vmem>>, vector<8x1xi32>
    %c0_2 = arith.constant 0 : index
    %c0_3 = arith.constant 0 : index
    %4 = vector.load %arg8[%c0_2, %c0_3] : memref<32x128xf32, #tpu.memory_space<vmem>>, vector<32x128xf32>
    %c0_4 = arith.constant 0 : index
    %c0_5 = arith.constant 0 : index
    %5 = vector.load %arg9[%c0_4, %c0_5] : memref<32x128xf32, #tpu.memory_space<vmem>>, vector<32x128xf32>
    %c0_6 = arith.constant 0 : index
    %c0_7 = arith.constant 0 : index
    %6 = vector.load %arg6[%c0_6, %c0_7] : memref<1x128xf32, #tpu.memory_space<vmem>>, vector<1x128xf32>
    %c0_8 = arith.constant 0 : index
    %c0_9 = arith.constant 0 : index
    %7 = vector.load %arg7[%c0_8, %c0_9] : memref<1x128xf32, #tpu.memory_space<vmem>>, vector<1x128xf32>
    %c0_10 = arith.constant 0 : index
    %c0_11 = arith.constant 0 : index
    %8 = vector.load %arg2[%c0_10, %c0_11] : memref<128x16xf32, #tpu.memory_space<vmem>>, vector<128x16xf32>
    %c0_12 = arith.constant 0 : index
    %c0_13 = arith.constant 0 : index
    %9 = vector.load %arg4[%c0_12, %c0_13] : memref<16x128xf32, #tpu.memory_space<vmem>>, vector<16x128xf32>
    %cst = arith.constant dense<0.000000e+00> : vector<128x128xf32>
    %10 = tpu.matmul %8, %9, %cst {dimension_numbers = #tpu.dot_dimension_numbers<[1], [0], [0], [1], [0, 0, 1, 1], [], []>} : vector<128x16xf32>, vector<16x128xf32>, vector<128x128xf32> -> vector<128x128xf32>
    %11 = vector.broadcast %6 : vector<1x128xf32> to vector<128x128xf32>
    %12 = arith.addf %11, %10 : vector<128x128xf32>
    %c0_14 = arith.constant 0 : index
    %c0_15 = arith.constant 0 : index
    %13 = vector.load %arg3[%c0_14, %c0_15] : memref<128x16xf32, #tpu.memory_space<vmem>>, vector<128x16xf32>
    %c0_16 = arith.constant 0 : index
    %c0_17 = arith.constant 0 : index
    %14 = vector.load %arg5[%c0_16, %c0_17] : memref<16x128xf32, #tpu.memory_space<vmem>>, vector<16x128xf32>
    %cst_18 = arith.constant dense<0.000000e+00> : vector<128x128xf32>
    %15 = tpu.matmul %13, %14, %cst_18 {dimension_numbers = #tpu.dot_dimension_numbers<[1], [0], [0], [1], [0, 0, 1, 1], [], []>} : vector<128x16xf32>, vector<16x128xf32>, vector<128x128xf32> -> vector<128x128xf32>
    %16 = vector.broadcast %7 : vector<1x128xf32> to vector<128x128xf32>
    %17 = arith.addf %16, %15 : vector<128x128xf32>
    %c0_19 = arith.constant 0 : index
    %c0_20 = arith.constant 0 : index
    %18 = vector.load %arg14[%c0_19, %c0_20] : memref<128x128xf32, #tpu.memory_space<vmem>>, vector<128x128xf32>
    tpu.vector_store %arg14[%c0_19, %c0_20], %12 {strides = array<i32>} : memref<128x128xf32, #tpu.memory_space<vmem>>, vector<128x128xf32>,
    %c0_21 = arith.constant 0 : index
    %c0_22 = arith.constant 0 : index
    %19 = vector.load %arg15[%c0_21, %c0_22] : memref<128x128xf32, #tpu.memory_space<vmem>>, vector<128x128xf32>
    tpu.vector_store %arg15[%c0_21, %c0_22], %17 {strides = array<i32>} : memref<128x128xf32, #tpu.memory_space<vmem>>, vector<128x128xf32>,
    %c16_i32 = arith.constant 16 : i32
    %20 = arith.muli %arg0, %c16_i32 : i32
    %c1_i32 = arith.constant 1 : i32
    %21 = arith.subi %c1_i32, %arg0 : i32
    %c16_i32_23 = arith.constant 16 : i32
    %22 = arith.muli %21, %c16_i32_23 : i32
    %c0_24 = arith.constant 0 : index
    %c0_25 = arith.constant 0 : index
    %23 = vector.load %arg16[%c0_24, %c0_25] : memref<8x32xf32, #tpu.memory_space<vmem>>, vector<8x32xf32>
    %c0_26 = arith.constant 0 : index
    %c0_27 = arith.constant 0 : index
    %24 = vector.load %arg17[%c0_26, %c0_27] : memref<8x32xf32, #tpu.memory_space<vmem>>, vector<8x32xf32>
    %c0_28 = arith.constant 0 : index
    %c0_29 = arith.constant 0 : index
    %25 = vector.load %arg18[%c0_28, %c0_29] : memref<8x32xf32, #tpu.memory_space<vmem>>, vector<8x32xf32>
    %c0_30 = arith.constant 0 : index
    %c0_31 = arith.constant 0 : index
    %26 = vector.load %arg19[%c0_30, %c0_31] : memref<8x32xf32, #tpu.memory_space<vmem>>, vector<8x32xf32>
    %c0_i32_32 = arith.constant 0 : i32
    %c15_i32 = arith.constant 15 : i32
    %27 = arith.subi %c15_i32, %c0_i32_32 : i32
    %c8_i32 = arith.constant 8 : i32
    %28 = arith.muli %c0_i32_32, %c8_i32 : i32
    %29 = tpu.assume_multiple %28, 8 : i32
    %c8_i32_33 = arith.constant 8 : i32
    %30 = arith.muli %27, %c8_i32_33 : i32
    %31 = tpu.assume_multiple %30, 8 : i32
    %32 = arith.index_cast %29 : i32 to index
    %c0_34 = arith.constant 0 : index
    %33 = vector.load %arg14[%32, %c0_34] : memref<128x128xf32, #tpu.memory_space<vmem>>, vector<8x128xf32>
    %cst_35 = arith.constant dense<0.000000e+00> : vector<8x128xf32>
    %34 = tpu.matmul %23, %4, %cst_35 {dimension_numbers = #tpu.dot_dimension_numbers<[1], [0], [0], [1], [0, 0, 1, 1], [], []>} : vector<8x32xf32>, vector<32x128xf32>, vector<8x128xf32> -> vector<8x128xf32>
    %35 = arith.addf %33, %34 : vector<8x128xf32>
    %36 = arith.index_cast %31 : i32 to index
    %c0_36 = arith.constant 0 : index
    %37 = vector.load %arg15[%36, %c0_36] : memref<128x128xf32, #tpu.memory_space<vmem>>, vector<8x128xf32>
    %cst_37 = arith.constant dense<0.000000e+00> : vector<8x128xf32>
    %38 = tpu.matmul %25, %5, %cst_37 {dimension_numbers = #tpu.dot_dimension_numbers<[1], [0], [0], [1], [0, 0, 1, 1], [], []>} : vector<8x32xf32>, vector<32x128xf32>, vector<8x128xf32> -> vector<8x128xf32>
    %39 = arith.addf %37, %38 : vector<8x128xf32>
    %40 = arith.addi %20, %c0_i32_32 : i32
    %41 = arith.negf %35 : vector<8x128xf32>
    %42 = math.exp %41 : vector<8x128xf32>
    %cst_38 = arith.constant 1.000000e+00 : f32
    %43 = vector.broadcast %cst_38 : f32 to vector<8x128xf32>
    %44 = arith.addf %43, %42 : vector<8x128xf32>
    %45 = arith.divf %43, %44 : vector<8x128xf32>
    %46 = math.tanh %35 : vector<8x128xf32>
    %47 = vector.extract_strided_slice %45 {offsets = [0, 0], sizes = [8, 32], strides = [1, 1]} : vector<8x128xf32> to vector<8x32xf32>
    %48 = vector.extract_strided_slice %45 {offsets = [0, 32], sizes = [8, 32], strides = [1, 1]} : vector<8x128xf32> to vector<8x32xf32>
    %49 = vector.extract_strided_slice %45 {offsets = [0, 96], sizes = [8, 32], strides = [1, 1]} : vector<8x128xf32> to vector<8x32xf32>
    %50 = vector.extract_strided_slice %46 {offsets = [0, 64], sizes = [8, 32], strides = [1, 1]} : vector<8x128xf32> to vector<8x32xf32>
    %51 = arith.mulf %48, %24 : vector<8x32xf32>
    %52 = arith.mulf %47, %50 : vector<8x32xf32>
    %53 = arith.addf %51, %52 : vector<8x32xf32>
    %54 = math.tanh %53 : vector<8x32xf32>
    %55 = arith.mulf %49, %54 : vector<8x32xf32>
    %56 = vector.broadcast %40 : i32 to vector<8x1xi32>
    %57 = arith.cmpi slt, %56, %3 : vector<8x1xi32>
    %58 = vector.shape_cast %57 : vector<8x1xi1> to vector<8x1xi1>
    %59 = vector.broadcast %58 : vector<8x1xi1> to vector<8x32xi1>
    %60 = arith.select %59, %55, %23 : vector<8x32xi1>, vector<8x32xf32>
    %61 = vector.shape_cast %57 : vector<8x1xi1> to vector<8x1xi1>
    %62 = vector.broadcast %61 : vector<8x1xi1> to vector<8x32xi1>
    %63 = arith.select %62, %53, %24 : vector<8x32xi1>, vector<8x32xf32>
    %64 = arith.addi %22, %27 : i32
    %65 = arith.negf %39 : vector<8x128xf32>
    %66 = math.exp %65 : vector<8x128xf32>
    %cst_39 = arith.constant 1.000000e+00 : f32
    %67 = vector.broadcast %cst_39 : f32 to vector<8x128xf32>
    %68 = arith.addf %67, %66 : vector<8x128xf32>
    %69 = arith.divf %67, %68 : vector<8x128xf32>
    %70 = math.tanh %39 : vector<8x128xf32>
    %71 = vector.extract_strided_slice %69 {offsets = [0, 0], sizes = [8, 32], strides = [1, 1]} : vector<8x128xf32> to vector<8x32xf32>
    %72 = vector.extract_strided_slice %69 {offsets = [0, 32], sizes = [8, 32], strides = [1, 1]} : vector<8x128xf32> to vector<8x32xf32>
    %73 = vector.extract_strided_slice %69 {offsets = [0, 96], sizes = [8, 32], strides = [1, 1]} : vector<8x128xf32> to vector<8x32xf32>
    %74 = vector.extract_strided_slice %70 {offsets = [0, 64], sizes = [8, 32], strides = [1, 1]} : vector<8x128xf32> to vector<8x32xf32>
    %75 = arith.mulf %72, %26 : vector<8x32xf32>
    %76 = arith.mulf %71, %74 : vector<8x32xf32>
    %77 = arith.addf %75, %76 : vector<8x32xf32>
    %78 = math.tanh %77 : vector<8x32xf32>
    %79 = arith.mulf %73, %78 : vector<8x32xf32>
    %80 = vector.broadcast %64 : i32 to vector<8x1xi32>
    %81 = arith.cmpi slt, %80, %3 : vector<8x1xi32>
    %82 = vector.shape_cast %81 : vector<8x1xi1> to vector<8x1xi1>
    %83 = vector.broadcast %82 : vector<8x1xi1> to vector<8x32xi1>
    %84 = arith.select %83, %79, %25 : vector<8x32xi1>, vector<8x32xf32>
    %85 = vector.shape_cast %81 : vector<8x1xi1> to vector<8x1xi1>
    %86 = vector.broadcast %85 : vector<8x1xi1> to vector<8x32xi1>
    %87 = arith.select %86, %77, %26 : vector<8x32xi1>, vector<8x32xf32>
    %88 = arith.index_cast %29 : i32 to index
    %c0_40 = arith.constant 0 : index
    %89 = vector.load %arg10[%88, %c0_40] : memref<128x32xf32, #tpu.memory_space<vmem>>, vector<8x32xf32>
    tpu.vector_store %arg10[%88, %c0_40], %60 {strides = array<i32>} : memref<128x32xf32, #tpu.memory_space<vmem>>, vector<8x32xf32>,
    %90 = arith.index_cast %31 : i32 to index
    %c0_41 = arith.constant 0 : index
    %91 = vector.load %arg11[%90, %c0_41] : memref<128x32xf32, #tpu.memory_space<vmem>>, vector<8x32xf32>
    tpu.vector_store %arg11[%90, %c0_41], %84 {strides = array<i32>} : memref<128x32xf32, #tpu.memory_space<vmem>>, vector<8x32xf32>,
    %c1_i32_42 = arith.constant 1 : i32
    %c15_i32_43 = arith.constant 15 : i32
    %92 = arith.subi %c15_i32_43, %c1_i32_42 : i32
    %c8_i32_44 = arith.constant 8 : i32
    %93 = arith.muli %c1_i32_42, %c8_i32_44 : i32
    %94 = tpu.assume_multiple %93, 8 : i32
    %c8_i32_45 = arith.constant 8 : i32
    %95 = arith.muli %92, %c8_i32_45 : i32
    %96 = tpu.assume_multiple %95, 8 : i32
    %97 = arith.index_cast %94 : i32 to index
    %c0_46 = arith.constant 0 : index
    %98 = vector.load %arg14[%97, %c0_46] : memref<128x128xf32, #tpu.memory_space<vmem>>, vector<8x128xf32>
    %cst_47 = arith.constant dense<0.000000e+00> : vector<8x128xf32>
    %99 = tpu.matmul %60, %4, %cst_47 {dimension_numbers = #tpu.dot_dimension_numbers<[1], [0], [0], [1], [0, 0, 1, 1], [], []>} : vector<8x32xf32>, vector<32x128xf32>, vector<8x128xf32> -> vector<8x128xf32>
    %100 = arith.addf %98, %99 : vector<8x128xf32>
    %101 = arith.index_cast %96 : i32 to index
    %c0_48 = arith.constant 0 : index
    %102 = vector.load %arg15[%101, %c0_48] : memref<128x128xf32, #tpu.memory_space<vmem>>, vector<8x128xf32>
    %cst_49 = arith.constant dense<0.000000e+00> : vector<8x128xf32>
    %103 = tpu.matmul %84, %5, %cst_49 {dimension_numbers = #tpu.dot_dimension_numbers<[1], [0], [0], [1], [0, 0, 1, 1], [], []>} : vector<8x32xf32>, vector<32x128xf32>, vector<8x128xf32> -> vector<8x128xf32>
    %104 = arith.addf %102, %103 : vector<8x128xf32>
    %105 = arith.addi %20, %c1_i32_42 : i32
    %106 = arith.negf %100 : vector<8x128xf32>
    %107 = math.exp %106 : vector<8x128xf32>
    %cst_50 = arith.constant 1.000000e+00 : f32
    %108 = vector.broadcast %cst_50 : f32 to vector<8x128xf32>
    %109 = arith.addf %108, %107 : vector<8x128xf32>
    %110 = arith.divf %108, %109 : vector<8x128xf32>
    %111 = math.tanh %100 : vector<8x128xf32>
    %112 = vector.extract_strided_slice %110 {offsets = [0, 0], sizes = [8, 32], strides = [1, 1]} : vector<8x128xf32> to vector<8x32xf32>
    %113 = vector.extract_strided_slice %110 {offsets = [0, 32], sizes = [8, 32], strides = [1, 1]} : vector<8x128xf32> to vector<8x32xf32>
    %114 = vector.extract_strided_slice %110 {offsets = [0, 96], sizes = [8, 32], strides = [1, 1]} : vector<8x128xf32> to vector<8x32xf32>
    %115 = vector.extract_strided_slice %111 {offsets = [0, 64], sizes = [8, 32], strides = [1, 1]} : vector<8x128xf32> to vector<8x32xf32>
    %116 = arith.mulf %113, %63 : vector<8x32xf32>
    %117 = arith.mulf %112, %115 : vector<8x32xf32>
    %118 = arith.addf %116, %117 : vector<8x32xf32>
    %119 = math.tanh %118 : vector<8x32xf32>
    %120 = arith.mulf %114, %119 : vector<8x32xf32>
    %121 = vector.broadcast %105 : i32 to vector<8x1xi32>
    %122 = arith.cmpi slt, %121, %3 : vector<8x1xi32>
    %123 = vector.shape_cast %122 : vector<8x1xi1> to vector<8x1xi1>
    %124 = vector.broadcast %123 : vector<8x1xi1> to vector<8x32xi1>
    %125 = arith.select %124, %120, %60 : vector<8x32xi1>, vector<8x32xf32>
    %126 = vector.shape_cast %122 : vector<8x1xi1> to vector<8x1xi1>
    %127 = vector.broadcast %126 : vector<8x1xi1> to vector<8x32xi1>
    %128 = arith.select %127, %118, %63 : vector<8x32xi1>, vector<8x32xf32>
    %129 = arith.addi %22, %92 : i32
    %130 = arith.negf %104 : vector<8x128xf32>
    %131 = math.exp %130 : vector<8x128xf32>
    %cst_51 = arith.constant 1.000000e+00 : f32
    %132 = vector.broadcast %cst_51 : f32 to vector<8x128xf32>
    %133 = arith.addf %132, %131 : vector<8x128xf32>
    %134 = arith.divf %132, %133 : vector<8x128xf32>
    %135 = math.tanh %104 : vector<8x128xf32>
    %136 = vector.extract_strided_slice %134 {offsets = [0, 0], sizes = [8, 32], strides = [1, 1]} : vector<8x128xf32> to vector<8x32xf32>
    %137 = vector.extract_strided_slice %134 {offsets = [0, 32], sizes = [8, 32], strides = [1, 1]} : vector<8x128xf32> to vector<8x32xf32>
    %138 = vector.extract_strided_slice %134 {offsets = [0, 96], sizes = [8, 32], strides = [1, 1]} : vector<8x128xf32> to vector<8x32xf32>
    %139 = vector.extract_strided_slice %135 {offsets = [0, 64], sizes = [8, 32], strides = [1, 1]} : vector<8x128xf32> to vector<8x32xf32>
    %140 = arith.mulf %137, %87 : vector<8x32xf32>
    %141 = arith.mulf %136, %139 : vector<8x32xf32>
    %142 = arith.addf %140, %141 : vector<8x32xf32>
    %143 = math.tanh %142 : vector<8x32xf32>
    %144 = arith.mulf %138, %143 : vector<8x32xf32>
    %145 = vector.broadcast %129 : i32 to vector<8x1xi32>
    %146 = arith.cmpi slt, %145, %3 : vector<8x1xi32>
    %147 = vector.shape_cast %146 : vector<8x1xi1> to vector<8x1xi1>
    %148 = vector.broadcast %147 : vector<8x1xi1> to vector<8x32xi1>
    %149 = arith.select %148, %144, %84 : vector<8x32xi1>, vector<8x32xf32>
    %150 = vector.shape_cast %146 : vector<8x1xi1> to vector<8x1xi1>
    %151 = vector.broadcast %150 : vector<8x1xi1> to vector<8x32xi1>
    %152 = arith.select %151, %142, %87 : vector<8x32xi1>, vector<8x32xf32>
    %153 = arith.index_cast %94 : i32 to index
    %c0_52 = arith.constant 0 : index
    %154 = vector.load %arg10[%153, %c0_52] : memref<128x32xf32, #tpu.memory_space<vmem>>, vector<8x32xf32>
    tpu.vector_store %arg10[%153, %c0_52], %125 {strides = array<i32>} : memref<128x32xf32, #tpu.memory_space<vmem>>, vector<8x32xf32>,
    %155 = arith.index_cast %96 : i32 to index
    %c0_53 = arith.constant 0 : index
    %156 = vector.load %arg11[%155, %c0_53] : memref<128x32xf32, #tpu.memory_space<vmem>>, vector<8x32xf32>
    tpu.vector_store %arg11[%155, %c0_53], %149 {strides = array<i32>} : memref<128x32xf32, #tpu.memory_space<vmem>>, vector<8x32xf32>,
    %c2_i32 = arith.constant 2 : i32
    %c15_i32_54 = arith.constant 15 : i32
    %157 = arith.subi %c15_i32_54, %c2_i32 : i32
    %c8_i32_55 = arith.constant 8 : i32
    %158 = arith.muli %c2_i32, %c8_i32_55 : i32
    %159 = tpu.assume_multiple %158, 8 : i32
    %c8_i32_56 = arith.constant 8 : i32
    %160 = arith.muli %157, %c8_i32_56 : i32
    %161 = tpu.assume_multiple %160, 8 : i32
    %162 = arith.index_cast %159 : i32 to index
    %c0_57 = arith.constant 0 : index
    %163 = vector.load %arg14[%162, %c0_57] : memref<128x128xf32, #tpu.memory_space<vmem>>, vector<8x128xf32>
    %cst_58 = arith.constant dense<0.000000e+00> : vector<8x128xf32>
    %164 = tpu.matmul %125, %4, %cst_58 {dimension_numbers = #tpu.dot_dimension_numbers<[1], [0], [0], [1], [0, 0, 1, 1], [], []>} : vector<8x32xf32>, vector<32x128xf32>, vector<8x128xf32> -> vector<8x128xf32>
    %165 = arith.addf %163, %164 : vector<8x128xf32>
    %166 = arith.index_cast %161 : i32 to index
    %c0_59 = arith.constant 0 : index
    %167 = vector.load %arg15[%166, %c0_59] : memref<128x128xf32, #tpu.memory_space<vmem>>, vector<8x128xf32>
    %cst_60 = arith.constant dense<0.000000e+00> : vector<8x128xf32>
    %168 = tpu.matmul %149, %5, %cst_60 {dimension_numbers = #tpu.dot_dimension_numbers<[1], [0], [0], [1], [0, 0, 1, 1], [], []>} : vector<8x32xf32>, vector<32x128xf32>, vector<8x128xf32> -> vector<8x128xf32>
    %169 = arith.addf %167, %168 : vector<8x128xf32>
    %170 = arith.addi %20, %c2_i32 : i32
    %171 = arith.negf %165 : vector<8x128xf32>
    %172 = math.exp %171 : vector<8x128xf32>
    %cst_61 = arith.constant 1.000000e+00 : f32
    %173 = vector.broadcast %cst_61 : f32 to vector<8x128xf32>
    %174 = arith.addf %173, %172 : vector<8x128xf32>
    %175 = arith.divf %173, %174 : vector<8x128xf32>
    %176 = math.tanh %165 : vector<8x128xf32>
    %177 = vector.extract_strided_slice %175 {offsets = [0, 0], sizes = [8, 32], strides = [1, 1]} : vector<8x128xf32> to vector<8x32xf32>
    %178 = vector.extract_strided_slice %175 {offsets = [0, 32], sizes = [8, 32], strides = [1, 1]} : vector<8x128xf32> to vector<8x32xf32>
    %179 = vector.extract_strided_slice %175 {offsets = [0, 96], sizes = [8, 32], strides = [1, 1]} : vector<8x128xf32> to vector<8x32xf32>
    %180 = vector.extract_strided_slice %176 {offsets = [0, 64], sizes = [8, 32], strides = [1, 1]} : vector<8x128xf32> to vector<8x32xf32>
    %181 = arith.mulf %178, %128 : vector<8x32xf32>
    %182 = arith.mulf %177, %180 : vector<8x32xf32>
    %183 = arith.addf %181, %182 : vector<8x32xf32>
    %184 = math.tanh %183 : vector<8x32xf32>
    %185 = arith.mulf %179, %184 : vector<8x32xf32>
    %186 = vector.broadcast %170 : i32 to vector<8x1xi32>
    %187 = arith.cmpi slt, %186, %3 : vector<8x1xi32>
    %188 = vector.shape_cast %187 : vector<8x1xi1> to vector<8x1xi1>
    %189 = vector.broadcast %188 : vector<8x1xi1> to vector<8x32xi1>
    %190 = arith.select %189, %185, %125 : vector<8x32xi1>, vector<8x32xf32>
    %191 = vector.shape_cast %187 : vector<8x1xi1> to vector<8x1xi1>
    %192 = vector.broadcast %191 : vector<8x1xi1> to vector<8x32xi1>
    %193 = arith.select %192, %183, %128 : vector<8x32xi1>, vector<8x32xf32>
    %194 = arith.addi %22, %157 : i32
    %195 = arith.negf %169 : vector<8x128xf32>
    %196 = math.exp %195 : vector<8x128xf32>
    %cst_62 = arith.constant 1.000000e+00 : f32
    %197 = vector.broadcast %cst_62 : f32 to vector<8x128xf32>
    %198 = arith.addf %197, %196 : vector<8x128xf32>
    %199 = arith.divf %197, %198 : vector<8x128xf32>
    %200 = math.tanh %169 : vector<8x128xf32>
    %201 = vector.extract_strided_slice %199 {offsets = [0, 0], sizes = [8, 32], strides = [1, 1]} : vector<8x128xf32> to vector<8x32xf32>
    %202 = vector.extract_strided_slice %199 {offsets = [0, 32], sizes = [8, 32], strides = [1, 1]} : vector<8x128xf32> to vector<8x32xf32>
    %203 = vector.extract_strided_slice %199 {offsets = [0, 96], sizes = [8, 32], strides = [1, 1]} : vector<8x128xf32> to vector<8x32xf32>
    %204 = vector.extract_strided_slice %200 {offsets = [0, 64], sizes = [8, 32], strides = [1, 1]} : vector<8x128xf32> to vector<8x32xf32>
    %205 = arith.mulf %202, %152 : vector<8x32xf32>
    %206 = arith.mulf %201, %204 : vector<8x32xf32>
    %207 = arith.addf %205, %206 : vector<8x32xf32>
    %208 = math.tanh %207 : vector<8x32xf32>
    %209 = arith.mulf %203, %208 : vector<8x32xf32>
    %210 = vector.broadcast %194 : i32 to vector<8x1xi32>
    %211 = arith.cmpi slt, %210, %3 : vector<8x1xi32>
    %212 = vector.shape_cast %211 : vector<8x1xi1> to vector<8x1xi1>
    %213 = vector.broadcast %212 : vector<8x1xi1> to vector<8x32xi1>
    %214 = arith.select %213, %209, %149 : vector<8x32xi1>, vector<8x32xf32>
    %215 = vector.shape_cast %211 : vector<8x1xi1> to vector<8x1xi1>
    %216 = vector.broadcast %215 : vector<8x1xi1> to vector<8x32xi1>
    %217 = arith.select %216, %207, %152 : vector<8x32xi1>, vector<8x32xf32>
    %218 = arith.index_cast %159 : i32 to index
    %c0_63 = arith.constant 0 : index
    %219 = vector.load %arg10[%218, %c0_63] : memref<128x32xf32, #tpu.memory_space<vmem>>, vector<8x32xf32>
    tpu.vector_store %arg10[%218, %c0_63], %190 {strides = array<i32>} : memref<128x32xf32, #tpu.memory_space<vmem>>, vector<8x32xf32>,
    %220 = arith.index_cast %161 : i32 to index
    %c0_64 = arith.constant 0 : index
    %221 = vector.load %arg11[%220, %c0_64] : memref<128x32xf32, #tpu.memory_space<vmem>>, vector<8x32xf32>
    tpu.vector_store %arg11[%220, %c0_64], %214 {strides = array<i32>} : memref<128x32xf32, #tpu.memory_space<vmem>>, vector<8x32xf32>,
    %c3_i32 = arith.constant 3 : i32
    %c15_i32_65 = arith.constant 15 : i32
    %222 = arith.subi %c15_i32_65, %c3_i32 : i32
    %c8_i32_66 = arith.constant 8 : i32
    %223 = arith.muli %c3_i32, %c8_i32_66 : i32
    %224 = tpu.assume_multiple %223, 8 : i32
    %c8_i32_67 = arith.constant 8 : i32
    %225 = arith.muli %222, %c8_i32_67 : i32
    %226 = tpu.assume_multiple %225, 8 : i32
    %227 = arith.index_cast %224 : i32 to index
    %c0_68 = arith.constant 0 : index
    %228 = vector.load %arg14[%227, %c0_68] : memref<128x128xf32, #tpu.memory_space<vmem>>, vector<8x128xf32>
    %cst_69 = arith.constant dense<0.000000e+00> : vector<8x128xf32>
    %229 = tpu.matmul %190, %4, %cst_69 {dimension_numbers = #tpu.dot_dimension_numbers<[1], [0], [0], [1], [0, 0, 1, 1], [], []>} : vector<8x32xf32>, vector<32x128xf32>, vector<8x128xf32> -> vector<8x128xf32>
    %230 = arith.addf %228, %229 : vector<8x128xf32>
    %231 = arith.index_cast %226 : i32 to index
    %c0_70 = arith.constant 0 : index
    %232 = vector.load %arg15[%231, %c0_70] : memref<128x128xf32, #tpu.memory_space<vmem>>, vector<8x128xf32>
    %cst_71 = arith.constant dense<0.000000e+00> : vector<8x128xf32>
    %233 = tpu.matmul %214, %5, %cst_71 {dimension_numbers = #tpu.dot_dimension_numbers<[1], [0], [0], [1], [0, 0, 1, 1], [], []>} : vector<8x32xf32>, vector<32x128xf32>, vector<8x128xf32> -> vector<8x128xf32>
    %234 = arith.addf %232, %233 : vector<8x128xf32>
    %235 = arith.addi %20, %c3_i32 : i32
    %236 = arith.negf %230 : vector<8x128xf32>
    %237 = math.exp %236 : vector<8x128xf32>
    %cst_72 = arith.constant 1.000000e+00 : f32
    %238 = vector.broadcast %cst_72 : f32 to vector<8x128xf32>
    %239 = arith.addf %238, %237 : vector<8x128xf32>
    %240 = arith.divf %238, %239 : vector<8x128xf32>
    %241 = math.tanh %230 : vector<8x128xf32>
    %242 = vector.extract_strided_slice %240 {offsets = [0, 0], sizes = [8, 32], strides = [1, 1]} : vector<8x128xf32> to vector<8x32xf32>
    %243 = vector.extract_strided_slice %240 {offsets = [0, 32], sizes = [8, 32], strides = [1, 1]} : vector<8x128xf32> to vector<8x32xf32>
    %244 = vector.extract_strided_slice %240 {offsets = [0, 96], sizes = [8, 32], strides = [1, 1]} : vector<8x128xf32> to vector<8x32xf32>
    %245 = vector.extract_strided_slice %241 {offsets = [0, 64], sizes = [8, 32], strides = [1, 1]} : vector<8x128xf32> to vector<8x32xf32>
    %246 = arith.mulf %243, %193 : vector<8x32xf32>
    %247 = arith.mulf %242, %245 : vector<8x32xf32>
    %248 = arith.addf %246, %247 : vector<8x32xf32>
    %249 = math.tanh %248 : vector<8x32xf32>
    %250 = arith.mulf %244, %249 : vector<8x32xf32>
    %251 = vector.broadcast %235 : i32 to vector<8x1xi32>
    %252 = arith.cmpi slt, %251, %3 : vector<8x1xi32>
    %253 = vector.shape_cast %252 : vector<8x1xi1> to vector<8x1xi1>
    %254 = vector.broadcast %253 : vector<8x1xi1> to vector<8x32xi1>
    %255 = arith.select %254, %250, %190 : vector<8x32xi1>, vector<8x32xf32>
    %256 = vector.shape_cast %252 : vector<8x1xi1> to vector<8x1xi1>
    %257 = vector.broadcast %256 : vector<8x1xi1> to vector<8x32xi1>
    %258 = arith.select %257, %248, %193 : vector<8x32xi1>, vector<8x32xf32>
    %259 = arith.addi %22, %222 : i32
    %260 = arith.negf %234 : vector<8x128xf32>
    %261 = math.exp %260 : vector<8x128xf32>
    %cst_73 = arith.constant 1.000000e+00 : f32
    %262 = vector.broadcast %cst_73 : f32 to vector<8x128xf32>
    %263 = arith.addf %262, %261 : vector<8x128xf32>
    %264 = arith.divf %262, %263 : vector<8x128xf32>
    %265 = math.tanh %234 : vector<8x128xf32>
    %266 = vector.extract_strided_slice %264 {offsets = [0, 0], sizes = [8, 32], strides = [1, 1]} : vector<8x128xf32> to vector<8x32xf32>
    %267 = vector.extract_strided_slice %264 {offsets = [0, 32], sizes = [8, 32], strides = [1, 1]} : vector<8x128xf32> to vector<8x32xf32>
    %268 = vector.extract_strided_slice %264 {offsets = [0, 96], sizes = [8, 32], strides = [1, 1]} : vector<8x128xf32> to vector<8x32xf32>
    %269 = vector.extract_strided_slice %265 {offsets = [0, 64], sizes = [8, 32], strides = [1, 1]} : vector<8x128xf32> to vector<8x32xf32>
    %270 = arith.mulf %267, %217 : vector<8x32xf32>
    %271 = arith.mulf %266, %269 : vector<8x32xf32>
    %272 = arith.addf %270, %271 : vector<8x32xf32>
    %273 = math.tanh %272 : vector<8x32xf32>
    %274 = arith.mulf %268, %273 : vector<8x32xf32>
    %275 = vector.broadcast %259 : i32 to vector<8x1xi32>
    %276 = arith.cmpi slt, %275, %3 : vector<8x1xi32>
    %277 = vector.shape_cast %276 : vector<8x1xi1> to vector<8x1xi1>
    %278 = vector.broadcast %277 : vector<8x1xi1> to vector<8x32xi1>
    %279 = arith.select %278, %274, %214 : vector<8x32xi1>, vector<8x32xf32>
    %280 = vector.shape_cast %276 : vector<8x1xi1> to vector<8x1xi1>
    %281 = vector.broadcast %280 : vector<8x1xi1> to vector<8x32xi1>
    %282 = arith.select %281, %272, %217 : vector<8x32xi1>, vector<8x32xf32>
    %283 = arith.index_cast %224 : i32 to index
    %c0_74 = arith.constant 0 : index
    %284 = vector.load %arg10[%283, %c0_74] : memref<128x32xf32, #tpu.memory_space<vmem>>, vector<8x32xf32>
    tpu.vector_store %arg10[%283, %c0_74], %255 {strides = array<i32>} : memref<128x32xf32, #tpu.memory_space<vmem>>, vector<8x32xf32>,
    %285 = arith.index_cast %226 : i32 to index
    %c0_75 = arith.constant 0 : index
    %286 = vector.load %arg11[%285, %c0_75] : memref<128x32xf32, #tpu.memory_space<vmem>>, vector<8x32xf32>
    tpu.vector_store %arg11[%285, %c0_75], %279 {strides = array<i32>} : memref<128x32xf32, #tpu.memory_space<vmem>>, vector<8x32xf32>,
    %c4_i32 = arith.constant 4 : i32
    %c15_i32_76 = arith.constant 15 : i32
    %287 = arith.subi %c15_i32_76, %c4_i32 : i32
    %c8_i32_77 = arith.constant 8 : i32
    %288 = arith.muli %c4_i32, %c8_i32_77 : i32
    %289 = tpu.assume_multiple %288, 8 : i32
    %c8_i32_78 = arith.constant 8 : i32
    %290 = arith.muli %287, %c8_i32_78 : i32
    %291 = tpu.assume_multiple %290, 8 : i32
    %292 = arith.index_cast %289 : i32 to index
    %c0_79 = arith.constant 0 : index
    %293 = vector.load %arg14[%292, %c0_79] : memref<128x128xf32, #tpu.memory_space<vmem>>, vector<8x128xf32>
    %cst_80 = arith.constant dense<0.000000e+00> : vector<8x128xf32>
    %294 = tpu.matmul %255, %4, %cst_80 {dimension_numbers = #tpu.dot_dimension_numbers<[1], [0], [0], [1], [0, 0, 1, 1], [], []>} : vector<8x32xf32>, vector<32x128xf32>, vector<8x128xf32> -> vector<8x128xf32>
    %295 = arith.addf %293, %294 : vector<8x128xf32>
    %296 = arith.index_cast %291 : i32 to index
    %c0_81 = arith.constant 0 : index
    %297 = vector.load %arg15[%296, %c0_81] : memref<128x128xf32, #tpu.memory_space<vmem>>, vector<8x128xf32>
    %cst_82 = arith.constant dense<0.000000e+00> : vector<8x128xf32>
    %298 = tpu.matmul %279, %5, %cst_82 {dimension_numbers = #tpu.dot_dimension_numbers<[1], [0], [0], [1], [0, 0, 1, 1], [], []>} : vector<8x32xf32>, vector<32x128xf32>, vector<8x128xf32> -> vector<8x128xf32>
    %299 = arith.addf %297, %298 : vector<8x128xf32>
    %300 = arith.addi %20, %c4_i32 : i32
    %301 = arith.negf %295 : vector<8x128xf32>
    %302 = math.exp %301 : vector<8x128xf32>
    %cst_83 = arith.constant 1.000000e+00 : f32
    %303 = vector.broadcast %cst_83 : f32 to vector<8x128xf32>
    %304 = arith.addf %303, %302 : vector<8x128xf32>
    %305 = arith.divf %303, %304 : vector<8x128xf32>
    %306 = math.tanh %295 : vector<8x128xf32>
    %307 = vector.extract_strided_slice %305 {offsets = [0, 0], sizes = [8, 32], strides = [1, 1]} : vector<8x128xf32> to vector<8x32xf32>
    %308 = vector.extract_strided_slice %305 {offsets = [0, 32], sizes = [8, 32], strides = [1, 1]} : vector<8x128xf32> to vector<8x32xf32>
    %309 = vector.extract_strided_slice %305 {offsets = [0, 96], sizes = [8, 32], strides = [1, 1]} : vector<8x128xf32> to vector<8x32xf32>
    %310 = vector.extract_strided_slice %306 {offsets = [0, 64], sizes = [8, 32], strides = [1, 1]} : vector<8x128xf32> to vector<8x32xf32>
    %311 = arith.mulf %308, %258 : vector<8x32xf32>
    %312 = arith.mulf %307, %310 : vector<8x32xf32>
    %313 = arith.addf %311, %312 : vector<8x32xf32>
    %314 = math.tanh %313 : vector<8x32xf32>
    %315 = arith.mulf %309, %314 : vector<8x32xf32>
    %316 = vector.broadcast %300 : i32 to vector<8x1xi32>
    %317 = arith.cmpi slt, %316, %3 : vector<8x1xi32>
    %318 = vector.shape_cast %317 : vector<8x1xi1> to vector<8x1xi1>
    %319 = vector.broadcast %318 : vector<8x1xi1> to vector<8x32xi1>
    %320 = arith.select %319, %315, %255 : vector<8x32xi1>, vector<8x32xf32>
    %321 = vector.shape_cast %317 : vector<8x1xi1> to vector<8x1xi1>
    %322 = vector.broadcast %321 : vector<8x1xi1> to vector<8x32xi1>
    %323 = arith.select %322, %313, %258 : vector<8x32xi1>, vector<8x32xf32>
    %324 = arith.addi %22, %287 : i32
    %325 = arith.negf %299 : vector<8x128xf32>
    %326 = math.exp %325 : vector<8x128xf32>
    %cst_84 = arith.constant 1.000000e+00 : f32
    %327 = vector.broadcast %cst_84 : f32 to vector<8x128xf32>
    %328 = arith.addf %327, %326 : vector<8x128xf32>
    %329 = arith.divf %327, %328 : vector<8x128xf32>
    %330 = math.tanh %299 : vector<8x128xf32>
    %331 = vector.extract_strided_slice %329 {offsets = [0, 0], sizes = [8, 32], strides = [1, 1]} : vector<8x128xf32> to vector<8x32xf32>
    %332 = vector.extract_strided_slice %329 {offsets = [0, 32], sizes = [8, 32], strides = [1, 1]} : vector<8x128xf32> to vector<8x32xf32>
    %333 = vector.extract_strided_slice %329 {offsets = [0, 96], sizes = [8, 32], strides = [1, 1]} : vector<8x128xf32> to vector<8x32xf32>
    %334 = vector.extract_strided_slice %330 {offsets = [0, 64], sizes = [8, 32], strides = [1, 1]} : vector<8x128xf32> to vector<8x32xf32>
    %335 = arith.mulf %332, %282 : vector<8x32xf32>
    %336 = arith.mulf %331, %334 : vector<8x32xf32>
    %337 = arith.addf %335, %336 : vector<8x32xf32>
    %338 = math.tanh %337 : vector<8x32xf32>
    %339 = arith.mulf %333, %338 : vector<8x32xf32>
    %340 = vector.broadcast %324 : i32 to vector<8x1xi32>
    %341 = arith.cmpi slt, %340, %3 : vector<8x1xi32>
    %342 = vector.shape_cast %341 : vector<8x1xi1> to vector<8x1xi1>
    %343 = vector.broadcast %342 : vector<8x1xi1> to vector<8x32xi1>
    %344 = arith.select %343, %339, %279 : vector<8x32xi1>, vector<8x32xf32>
    %345 = vector.shape_cast %341 : vector<8x1xi1> to vector<8x1xi1>
    %346 = vector.broadcast %345 : vector<8x1xi1> to vector<8x32xi1>
    %347 = arith.select %346, %337, %282 : vector<8x32xi1>, vector<8x32xf32>
    %348 = arith.index_cast %289 : i32 to index
    %c0_85 = arith.constant 0 : index
    %349 = vector.load %arg10[%348, %c0_85] : memref<128x32xf32, #tpu.memory_space<vmem>>, vector<8x32xf32>
    tpu.vector_store %arg10[%348, %c0_85], %320 {strides = array<i32>} : memref<128x32xf32, #tpu.memory_space<vmem>>, vector<8x32xf32>,
    %350 = arith.index_cast %291 : i32 to index
    %c0_86 = arith.constant 0 : index
    %351 = vector.load %arg11[%350, %c0_86] : memref<128x32xf32, #tpu.memory_space<vmem>>, vector<8x32xf32>
    tpu.vector_store %arg11[%350, %c0_86], %344 {strides = array<i32>} : memref<128x32xf32, #tpu.memory_space<vmem>>, vector<8x32xf32>,
    %c5_i32 = arith.constant 5 : i32
    %c15_i32_87 = arith.constant 15 : i32
    %352 = arith.subi %c15_i32_87, %c5_i32 : i32
    %c8_i32_88 = arith.constant 8 : i32
    %353 = arith.muli %c5_i32, %c8_i32_88 : i32
    %354 = tpu.assume_multiple %353, 8 : i32
    %c8_i32_89 = arith.constant 8 : i32
    %355 = arith.muli %352, %c8_i32_89 : i32
    %356 = tpu.assume_multiple %355, 8 : i32
    %357 = arith.index_cast %354 : i32 to index
    %c0_90 = arith.constant 0 : index
    %358 = vector.load %arg14[%357, %c0_90] : memref<128x128xf32, #tpu.memory_space<vmem>>, vector<8x128xf32>
    %cst_91 = arith.constant dense<0.000000e+00> : vector<8x128xf32>
    %359 = tpu.matmul %320, %4, %cst_91 {dimension_numbers = #tpu.dot_dimension_numbers<[1], [0], [0], [1], [0, 0, 1, 1], [], []>} : vector<8x32xf32>, vector<32x128xf32>, vector<8x128xf32> -> vector<8x128xf32>
    %360 = arith.addf %358, %359 : vector<8x128xf32>
    %361 = arith.index_cast %356 : i32 to index
    %c0_92 = arith.constant 0 : index
    %362 = vector.load %arg15[%361, %c0_92] : memref<128x128xf32, #tpu.memory_space<vmem>>, vector<8x128xf32>
    %cst_93 = arith.constant dense<0.000000e+00> : vector<8x128xf32>
    %363 = tpu.matmul %344, %5, %cst_93 {dimension_numbers = #tpu.dot_dimension_numbers<[1], [0], [0], [1], [0, 0, 1, 1], [], []>} : vector<8x32xf32>, vector<32x128xf32>, vector<8x128xf32> -> vector<8x128xf32>
    %364 = arith.addf %362, %363 : vector<8x128xf32>
    %365 = arith.addi %20, %c5_i32 : i32
    %366 = arith.negf %360 : vector<8x128xf32>
    %367 = math.exp %366 : vector<8x128xf32>
    %cst_94 = arith.constant 1.000000e+00 : f32
    %368 = vector.broadcast %cst_94 : f32 to vector<8x128xf32>
    %369 = arith.addf %368, %367 : vector<8x128xf32>
    %370 = arith.divf %368, %369 : vector<8x128xf32>
    %371 = math.tanh %360 : vector<8x128xf32>
    %372 = vector.extract_strided_slice %370 {offsets = [0, 0], sizes = [8, 32], strides = [1, 1]} : vector<8x128xf32> to vector<8x32xf32>
    %373 = vector.extract_strided_slice %370 {offsets = [0, 32], sizes = [8, 32], strides = [1, 1]} : vector<8x128xf32> to vector<8x32xf32>
    %374 = vector.extract_strided_slice %370 {offsets = [0, 96], sizes = [8, 32], strides = [1, 1]} : vector<8x128xf32> to vector<8x32xf32>
    %375 = vector.extract_strided_slice %371 {offsets = [0, 64], sizes = [8, 32], strides = [1, 1]} : vector<8x128xf32> to vector<8x32xf32>
    %376 = arith.mulf %373, %323 : vector<8x32xf32>
    %377 = arith.mulf %372, %375 : vector<8x32xf32>
    %378 = arith.addf %376, %377 : vector<8x32xf32>
    %379 = math.tanh %378 : vector<8x32xf32>
    %380 = arith.mulf %374, %379 : vector<8x32xf32>
    %381 = vector.broadcast %365 : i32 to vector<8x1xi32>
    %382 = arith.cmpi slt, %381, %3 : vector<8x1xi32>
    %383 = vector.shape_cast %382 : vector<8x1xi1> to vector<8x1xi1>
    %384 = vector.broadcast %383 : vector<8x1xi1> to vector<8x32xi1>
    %385 = arith.select %384, %380, %320 : vector<8x32xi1>, vector<8x32xf32>
    %386 = vector.shape_cast %382 : vector<8x1xi1> to vector<8x1xi1>
    %387 = vector.broadcast %386 : vector<8x1xi1> to vector<8x32xi1>
    %388 = arith.select %387, %378, %323 : vector<8x32xi1>, vector<8x32xf32>
    %389 = arith.addi %22, %352 : i32
    %390 = arith.negf %364 : vector<8x128xf32>
    %391 = math.exp %390 : vector<8x128xf32>
    %cst_95 = arith.constant 1.000000e+00 : f32
    %392 = vector.broadcast %cst_95 : f32 to vector<8x128xf32>
    %393 = arith.addf %392, %391 : vector<8x128xf32>
    %394 = arith.divf %392, %393 : vector<8x128xf32>
    %395 = math.tanh %364 : vector<8x128xf32>
    %396 = vector.extract_strided_slice %394 {offsets = [0, 0], sizes = [8, 32], strides = [1, 1]} : vector<8x128xf32> to vector<8x32xf32>
    %397 = vector.extract_strided_slice %394 {offsets = [0, 32], sizes = [8, 32], strides = [1, 1]} : vector<8x128xf32> to vector<8x32xf32>
    %398 = vector.extract_strided_slice %394 {offsets = [0, 96], sizes = [8, 32], strides = [1, 1]} : vector<8x128xf32> to vector<8x32xf32>
    %399 = vector.extract_strided_slice %395 {offsets = [0, 64], sizes = [8, 32], strides = [1, 1]} : vector<8x128xf32> to vector<8x32xf32>
    %400 = arith.mulf %397, %347 : vector<8x32xf32>
    %401 = arith.mulf %396, %399 : vector<8x32xf32>
    %402 = arith.addf %400, %401 : vector<8x32xf32>
    %403 = math.tanh %402 : vector<8x32xf32>
    %404 = arith.mulf %398, %403 : vector<8x32xf32>
    %405 = vector.broadcast %389 : i32 to vector<8x1xi32>
    %406 = arith.cmpi slt, %405, %3 : vector<8x1xi32>
    %407 = vector.shape_cast %406 : vector<8x1xi1> to vector<8x1xi1>
    %408 = vector.broadcast %407 : vector<8x1xi1> to vector<8x32xi1>
    %409 = arith.select %408, %404, %344 : vector<8x32xi1>, vector<8x32xf32>
    %410 = vector.shape_cast %406 : vector<8x1xi1> to vector<8x1xi1>
    %411 = vector.broadcast %410 : vector<8x1xi1> to vector<8x32xi1>
    %412 = arith.select %411, %402, %347 : vector<8x32xi1>, vector<8x32xf32>
    %413 = arith.index_cast %354 : i32 to index
    %c0_96 = arith.constant 0 : index
    %414 = vector.load %arg10[%413, %c0_96] : memref<128x32xf32, #tpu.memory_space<vmem>>, vector<8x32xf32>
    tpu.vector_store %arg10[%413, %c0_96], %385 {strides = array<i32>} : memref<128x32xf32, #tpu.memory_space<vmem>>, vector<8x32xf32>,
    %415 = arith.index_cast %356 : i32 to index
    %c0_97 = arith.constant 0 : index
    %416 = vector.load %arg11[%415, %c0_97] : memref<128x32xf32, #tpu.memory_space<vmem>>, vector<8x32xf32>
    tpu.vector_store %arg11[%415, %c0_97], %409 {strides = array<i32>} : memref<128x32xf32, #tpu.memory_space<vmem>>, vector<8x32xf32>,
    %c6_i32 = arith.constant 6 : i32
    %c15_i32_98 = arith.constant 15 : i32
    %417 = arith.subi %c15_i32_98, %c6_i32 : i32
    %c8_i32_99 = arith.constant 8 : i32
    %418 = arith.muli %c6_i32, %c8_i32_99 : i32
    %419 = tpu.assume_multiple %418, 8 : i32
    %c8_i32_100 = arith.constant 8 : i32
    %420 = arith.muli %417, %c8_i32_100 : i32
    %421 = tpu.assume_multiple %420, 8 : i32
    %422 = arith.index_cast %419 : i32 to index
    %c0_101 = arith.constant 0 : index
    %423 = vector.load %arg14[%422, %c0_101] : memref<128x128xf32, #tpu.memory_space<vmem>>, vector<8x128xf32>
    %cst_102 = arith.constant dense<0.000000e+00> : vector<8x128xf32>
    %424 = tpu.matmul %385, %4, %cst_102 {dimension_numbers = #tpu.dot_dimension_numbers<[1], [0], [0], [1], [0, 0, 1, 1], [], []>} : vector<8x32xf32>, vector<32x128xf32>, vector<8x128xf32> -> vector<8x128xf32>
    %425 = arith.addf %423, %424 : vector<8x128xf32>
    %426 = arith.index_cast %421 : i32 to index
    %c0_103 = arith.constant 0 : index
    %427 = vector.load %arg15[%426, %c0_103] : memref<128x128xf32, #tpu.memory_space<vmem>>, vector<8x128xf32>
    %cst_104 = arith.constant dense<0.000000e+00> : vector<8x128xf32>
    %428 = tpu.matmul %409, %5, %cst_104 {dimension_numbers = #tpu.dot_dimension_numbers<[1], [0], [0], [1], [0, 0, 1, 1], [], []>} : vector<8x32xf32>, vector<32x128xf32>, vector<8x128xf32> -> vector<8x128xf32>
    %429 = arith.addf %427, %428 : vector<8x128xf32>
    %430 = arith.addi %20, %c6_i32 : i32
    %431 = arith.negf %425 : vector<8x128xf32>
    %432 = math.exp %431 : vector<8x128xf32>
    %cst_105 = arith.constant 1.000000e+00 : f32
    %433 = vector.broadcast %cst_105 : f32 to vector<8x128xf32>
    %434 = arith.addf %433, %432 : vector<8x128xf32>
    %435 = arith.divf %433, %434 : vector<8x128xf32>
    %436 = math.tanh %425 : vector<8x128xf32>
    %437 = vector.extract_strided_slice %435 {offsets = [0, 0], sizes = [8, 32], strides = [1, 1]} : vector<8x128xf32> to vector<8x32xf32>
    %438 = vector.extract_strided_slice %435 {offsets = [0, 32], sizes = [8, 32], strides = [1, 1]} : vector<8x128xf32> to vector<8x32xf32>
    %439 = vector.extract_strided_slice %435 {offsets = [0, 96], sizes = [8, 32], strides = [1, 1]} : vector<8x128xf32> to vector<8x32xf32>
    %440 = vector.extract_strided_slice %436 {offsets = [0, 64], sizes = [8, 32], strides = [1, 1]} : vector<8x128xf32> to vector<8x32xf32>
    %441 = arith.mulf %438, %388 : vector<8x32xf32>
    %442 = arith.mulf %437, %440 : vector<8x32xf32>
    %443 = arith.addf %441, %442 : vector<8x32xf32>
    %444 = math.tanh %443 : vector<8x32xf32>
    %445 = arith.mulf %439, %444 : vector<8x32xf32>
    %446 = vector.broadcast %430 : i32 to vector<8x1xi32>
    %447 = arith.cmpi slt, %446, %3 : vector<8x1xi32>
    %448 = vector.shape_cast %447 : vector<8x1xi1> to vector<8x1xi1>
    %449 = vector.broadcast %448 : vector<8x1xi1> to vector<8x32xi1>
    %450 = arith.select %449, %445, %385 : vector<8x32xi1>, vector<8x32xf32>
    %451 = vector.shape_cast %447 : vector<8x1xi1> to vector<8x1xi1>
    %452 = vector.broadcast %451 : vector<8x1xi1> to vector<8x32xi1>
    %453 = arith.select %452, %443, %388 : vector<8x32xi1>, vector<8x32xf32>
    %454 = arith.addi %22, %417 : i32
    %455 = arith.negf %429 : vector<8x128xf32>
    %456 = math.exp %455 : vector<8x128xf32>
    %cst_106 = arith.constant 1.000000e+00 : f32
    %457 = vector.broadcast %cst_106 : f32 to vector<8x128xf32>
    %458 = arith.addf %457, %456 : vector<8x128xf32>
    %459 = arith.divf %457, %458 : vector<8x128xf32>
    %460 = math.tanh %429 : vector<8x128xf32>
    %461 = vector.extract_strided_slice %459 {offsets = [0, 0], sizes = [8, 32], strides = [1, 1]} : vector<8x128xf32> to vector<8x32xf32>
    %462 = vector.extract_strided_slice %459 {offsets = [0, 32], sizes = [8, 32], strides = [1, 1]} : vector<8x128xf32> to vector<8x32xf32>
    %463 = vector.extract_strided_slice %459 {offsets = [0, 96], sizes = [8, 32], strides = [1, 1]} : vector<8x128xf32> to vector<8x32xf32>
    %464 = vector.extract_strided_slice %460 {offsets = [0, 64], sizes = [8, 32], strides = [1, 1]} : vector<8x128xf32> to vector<8x32xf32>
    %465 = arith.mulf %462, %412 : vector<8x32xf32>
    %466 = arith.mulf %461, %464 : vector<8x32xf32>
    %467 = arith.addf %465, %466 : vector<8x32xf32>
    %468 = math.tanh %467 : vector<8x32xf32>
    %469 = arith.mulf %463, %468 : vector<8x32xf32>
    %470 = vector.broadcast %454 : i32 to vector<8x1xi32>
    %471 = arith.cmpi slt, %470, %3 : vector<8x1xi32>
    %472 = vector.shape_cast %471 : vector<8x1xi1> to vector<8x1xi1>
    %473 = vector.broadcast %472 : vector<8x1xi1> to vector<8x32xi1>
    %474 = arith.select %473, %469, %409 : vector<8x32xi1>, vector<8x32xf32>
    %475 = vector.shape_cast %471 : vector<8x1xi1> to vector<8x1xi1>
    %476 = vector.broadcast %475 : vector<8x1xi1> to vector<8x32xi1>
    %477 = arith.select %476, %467, %412 : vector<8x32xi1>, vector<8x32xf32>
    %478 = arith.index_cast %419 : i32 to index
    %c0_107 = arith.constant 0 : index
    %479 = vector.load %arg10[%478, %c0_107] : memref<128x32xf32, #tpu.memory_space<vmem>>, vector<8x32xf32>
    tpu.vector_store %arg10[%478, %c0_107], %450 {strides = array<i32>} : memref<128x32xf32, #tpu.memory_space<vmem>>, vector<8x32xf32>,
    %480 = arith.index_cast %421 : i32 to index
    %c0_108 = arith.constant 0 : index
    %481 = vector.load %arg11[%480, %c0_108] : memref<128x32xf32, #tpu.memory_space<vmem>>, vector<8x32xf32>
    tpu.vector_store %arg11[%480, %c0_108], %474 {strides = array<i32>} : memref<128x32xf32, #tpu.memory_space<vmem>>, vector<8x32xf32>,
    %c7_i32 = arith.constant 7 : i32
    %c15_i32_109 = arith.constant 15 : i32
    %482 = arith.subi %c15_i32_109, %c7_i32 : i32
    %c8_i32_110 = arith.constant 8 : i32
    %483 = arith.muli %c7_i32, %c8_i32_110 : i32
    %484 = tpu.assume_multiple %483, 8 : i32
    %c8_i32_111 = arith.constant 8 : i32
    %485 = arith.muli %482, %c8_i32_111 : i32
    %486 = tpu.assume_multiple %485, 8 : i32
    %487 = arith.index_cast %484 : i32 to index
    %c0_112 = arith.constant 0 : index
    %488 = vector.load %arg14[%487, %c0_112] : memref<128x128xf32, #tpu.memory_space<vmem>>, vector<8x128xf32>
    %cst_113 = arith.constant dense<0.000000e+00> : vector<8x128xf32>
    %489 = tpu.matmul %450, %4, %cst_113 {dimension_numbers = #tpu.dot_dimension_numbers<[1], [0], [0], [1], [0, 0, 1, 1], [], []>} : vector<8x32xf32>, vector<32x128xf32>, vector<8x128xf32> -> vector<8x128xf32>
    %490 = arith.addf %488, %489 : vector<8x128xf32>
    %491 = arith.index_cast %486 : i32 to index
    %c0_114 = arith.constant 0 : index
    %492 = vector.load %arg15[%491, %c0_114] : memref<128x128xf32, #tpu.memory_space<vmem>>, vector<8x128xf32>
    %cst_115 = arith.constant dense<0.000000e+00> : vector<8x128xf32>
    %493 = tpu.matmul %474, %5, %cst_115 {dimension_numbers = #tpu.dot_dimension_numbers<[1], [0], [0], [1], [0, 0, 1, 1], [], []>} : vector<8x32xf32>, vector<32x128xf32>, vector<8x128xf32> -> vector<8x128xf32>
    %494 = arith.addf %492, %493 : vector<8x128xf32>
    %495 = arith.addi %20, %c7_i32 : i32
    %496 = arith.negf %490 : vector<8x128xf32>
    %497 = math.exp %496 : vector<8x128xf32>
    %cst_116 = arith.constant 1.000000e+00 : f32
    %498 = vector.broadcast %cst_116 : f32 to vector<8x128xf32>
    %499 = arith.addf %498, %497 : vector<8x128xf32>
    %500 = arith.divf %498, %499 : vector<8x128xf32>
    %501 = math.tanh %490 : vector<8x128xf32>
    %502 = vector.extract_strided_slice %500 {offsets = [0, 0], sizes = [8, 32], strides = [1, 1]} : vector<8x128xf32> to vector<8x32xf32>
    %503 = vector.extract_strided_slice %500 {offsets = [0, 32], sizes = [8, 32], strides = [1, 1]} : vector<8x128xf32> to vector<8x32xf32>
    %504 = vector.extract_strided_slice %500 {offsets = [0, 96], sizes = [8, 32], strides = [1, 1]} : vector<8x128xf32> to vector<8x32xf32>
    %505 = vector.extract_strided_slice %501 {offsets = [0, 64], sizes = [8, 32], strides = [1, 1]} : vector<8x128xf32> to vector<8x32xf32>
    %506 = arith.mulf %503, %453 : vector<8x32xf32>
    %507 = arith.mulf %502, %505 : vector<8x32xf32>
    %508 = arith.addf %506, %507 : vector<8x32xf32>
    %509 = math.tanh %508 : vector<8x32xf32>
    %510 = arith.mulf %504, %509 : vector<8x32xf32>
    %511 = vector.broadcast %495 : i32 to vector<8x1xi32>
    %512 = arith.cmpi slt, %511, %3 : vector<8x1xi32>
    %513 = vector.shape_cast %512 : vector<8x1xi1> to vector<8x1xi1>
    %514 = vector.broadcast %513 : vector<8x1xi1> to vector<8x32xi1>
    %515 = arith.select %514, %510, %450 : vector<8x32xi1>, vector<8x32xf32>
    %516 = vector.shape_cast %512 : vector<8x1xi1> to vector<8x1xi1>
    %517 = vector.broadcast %516 : vector<8x1xi1> to vector<8x32xi1>
    %518 = arith.select %517, %508, %453 : vector<8x32xi1>, vector<8x32xf32>
    %519 = arith.addi %22, %482 : i32
    %520 = arith.negf %494 : vector<8x128xf32>
    %521 = math.exp %520 : vector<8x128xf32>
    %cst_117 = arith.constant 1.000000e+00 : f32
    %522 = vector.broadcast %cst_117 : f32 to vector<8x128xf32>
    %523 = arith.addf %522, %521 : vector<8x128xf32>
    %524 = arith.divf %522, %523 : vector<8x128xf32>
    %525 = math.tanh %494 : vector<8x128xf32>
    %526 = vector.extract_strided_slice %524 {offsets = [0, 0], sizes = [8, 32], strides = [1, 1]} : vector<8x128xf32> to vector<8x32xf32>
    %527 = vector.extract_strided_slice %524 {offsets = [0, 32], sizes = [8, 32], strides = [1, 1]} : vector<8x128xf32> to vector<8x32xf32>
    %528 = vector.extract_strided_slice %524 {offsets = [0, 96], sizes = [8, 32], strides = [1, 1]} : vector<8x128xf32> to vector<8x32xf32>
    %529 = vector.extract_strided_slice %525 {offsets = [0, 64], sizes = [8, 32], strides = [1, 1]} : vector<8x128xf32> to vector<8x32xf32>
    %530 = arith.mulf %527, %477 : vector<8x32xf32>
    %531 = arith.mulf %526, %529 : vector<8x32xf32>
    %532 = arith.addf %530, %531 : vector<8x32xf32>
    %533 = math.tanh %532 : vector<8x32xf32>
    %534 = arith.mulf %528, %533 : vector<8x32xf32>
    %535 = vector.broadcast %519 : i32 to vector<8x1xi32>
    %536 = arith.cmpi slt, %535, %3 : vector<8x1xi32>
    %537 = vector.shape_cast %536 : vector<8x1xi1> to vector<8x1xi1>
    %538 = vector.broadcast %537 : vector<8x1xi1> to vector<8x32xi1>
    %539 = arith.select %538, %534, %474 : vector<8x32xi1>, vector<8x32xf32>
    %540 = vector.shape_cast %536 : vector<8x1xi1> to vector<8x1xi1>
    %541 = vector.broadcast %540 : vector<8x1xi1> to vector<8x32xi1>
    %542 = arith.select %541, %532, %477 : vector<8x32xi1>, vector<8x32xf32>
    %543 = arith.index_cast %484 : i32 to index
    %c0_118 = arith.constant 0 : index
    %544 = vector.load %arg10[%543, %c0_118] : memref<128x32xf32, #tpu.memory_space<vmem>>, vector<8x32xf32>
    tpu.vector_store %arg10[%543, %c0_118], %515 {strides = array<i32>} : memref<128x32xf32, #tpu.memory_space<vmem>>, vector<8x32xf32>,
    %545 = arith.index_cast %486 : i32 to index
    %c0_119 = arith.constant 0 : index
    %546 = vector.load %arg11[%545, %c0_119] : memref<128x32xf32, #tpu.memory_space<vmem>>, vector<8x32xf32>
    tpu.vector_store %arg11[%545, %c0_119], %539 {strides = array<i32>} : memref<128x32xf32, #tpu.memory_space<vmem>>, vector<8x32xf32>,
    %c8_i32_120 = arith.constant 8 : i32
    %c15_i32_121 = arith.constant 15 : i32
    %547 = arith.subi %c15_i32_121, %c8_i32_120 : i32
    %c8_i32_122 = arith.constant 8 : i32
    %548 = arith.muli %c8_i32_120, %c8_i32_122 : i32
    %549 = tpu.assume_multiple %548, 8 : i32
    %c8_i32_123 = arith.constant 8 : i32
    %550 = arith.muli %547, %c8_i32_123 : i32
    %551 = tpu.assume_multiple %550, 8 : i32
    %552 = arith.index_cast %549 : i32 to index
    %c0_124 = arith.constant 0 : index
    %553 = vector.load %arg14[%552, %c0_124] : memref<128x128xf32, #tpu.memory_space<vmem>>, vector<8x128xf32>
    %cst_125 = arith.constant dense<0.000000e+00> : vector<8x128xf32>
    %554 = tpu.matmul %515, %4, %cst_125 {dimension_numbers = #tpu.dot_dimension_numbers<[1], [0], [0], [1], [0, 0, 1, 1], [], []>} : vector<8x32xf32>, vector<32x128xf32>, vector<8x128xf32> -> vector<8x128xf32>
    %555 = arith.addf %553, %554 : vector<8x128xf32>
    %556 = arith.index_cast %551 : i32 to index
    %c0_126 = arith.constant 0 : index
    %557 = vector.load %arg15[%556, %c0_126] : memref<128x128xf32, #tpu.memory_space<vmem>>, vector<8x128xf32>
    %cst_127 = arith.constant dense<0.000000e+00> : vector<8x128xf32>
    %558 = tpu.matmul %539, %5, %cst_127 {dimension_numbers = #tpu.dot_dimension_numbers<[1], [0], [0], [1], [0, 0, 1, 1], [], []>} : vector<8x32xf32>, vector<32x128xf32>, vector<8x128xf32> -> vector<8x128xf32>
    %559 = arith.addf %557, %558 : vector<8x128xf32>
    %560 = arith.addi %20, %c8_i32_120 : i32
    %561 = arith.negf %555 : vector<8x128xf32>
    %562 = math.exp %561 : vector<8x128xf32>
    %cst_128 = arith.constant 1.000000e+00 : f32
    %563 = vector.broadcast %cst_128 : f32 to vector<8x128xf32>
    %564 = arith.addf %563, %562 : vector<8x128xf32>
    %565 = arith.divf %563, %564 : vector<8x128xf32>
    %566 = math.tanh %555 : vector<8x128xf32>
    %567 = vector.extract_strided_slice %565 {offsets = [0, 0], sizes = [8, 32], strides = [1, 1]} : vector<8x128xf32> to vector<8x32xf32>
    %568 = vector.extract_strided_slice %565 {offsets = [0, 32], sizes = [8, 32], strides = [1, 1]} : vector<8x128xf32> to vector<8x32xf32>
    %569 = vector.extract_strided_slice %565 {offsets = [0, 96], sizes = [8, 32], strides = [1, 1]} : vector<8x128xf32> to vector<8x32xf32>
    %570 = vector.extract_strided_slice %566 {offsets = [0, 64], sizes = [8, 32], strides = [1, 1]} : vector<8x128xf32> to vector<8x32xf32>
    %571 = arith.mulf %568, %518 : vector<8x32xf32>
    %572 = arith.mulf %567, %570 : vector<8x32xf32>
    %573 = arith.addf %571, %572 : vector<8x32xf32>
    %574 = math.tanh %573 : vector<8x32xf32>
    %575 = arith.mulf %569, %574 : vector<8x32xf32>
    %576 = vector.broadcast %560 : i32 to vector<8x1xi32>
    %577 = arith.cmpi slt, %576, %3 : vector<8x1xi32>
    %578 = vector.shape_cast %577 : vector<8x1xi1> to vector<8x1xi1>
    %579 = vector.broadcast %578 : vector<8x1xi1> to vector<8x32xi1>
    %580 = arith.select %579, %575, %515 : vector<8x32xi1>, vector<8x32xf32>
    %581 = vector.shape_cast %577 : vector<8x1xi1> to vector<8x1xi1>
    %582 = vector.broadcast %581 : vector<8x1xi1> to vector<8x32xi1>
    %583 = arith.select %582, %573, %518 : vector<8x32xi1>, vector<8x32xf32>
    %584 = arith.addi %22, %547 : i32
    %585 = arith.negf %559 : vector<8x128xf32>
    %586 = math.exp %585 : vector<8x128xf32>
    %cst_129 = arith.constant 1.000000e+00 : f32
    %587 = vector.broadcast %cst_129 : f32 to vector<8x128xf32>
    %588 = arith.addf %587, %586 : vector<8x128xf32>
    %589 = arith.divf %587, %588 : vector<8x128xf32>
    %590 = math.tanh %559 : vector<8x128xf32>
    %591 = vector.extract_strided_slice %589 {offsets = [0, 0], sizes = [8, 32], strides = [1, 1]} : vector<8x128xf32> to vector<8x32xf32>
    %592 = vector.extract_strided_slice %589 {offsets = [0, 32], sizes = [8, 32], strides = [1, 1]} : vector<8x128xf32> to vector<8x32xf32>
    %593 = vector.extract_strided_slice %589 {offsets = [0, 96], sizes = [8, 32], strides = [1, 1]} : vector<8x128xf32> to vector<8x32xf32>
    %594 = vector.extract_strided_slice %590 {offsets = [0, 64], sizes = [8, 32], strides = [1, 1]} : vector<8x128xf32> to vector<8x32xf32>
    %595 = arith.mulf %592, %542 : vector<8x32xf32>
    %596 = arith.mulf %591, %594 : vector<8x32xf32>
    %597 = arith.addf %595, %596 : vector<8x32xf32>
    %598 = math.tanh %597 : vector<8x32xf32>
    %599 = arith.mulf %593, %598 : vector<8x32xf32>
    %600 = vector.broadcast %584 : i32 to vector<8x1xi32>
    %601 = arith.cmpi slt, %600, %3 : vector<8x1xi32>
    %602 = vector.shape_cast %601 : vector<8x1xi1> to vector<8x1xi1>
    %603 = vector.broadcast %602 : vector<8x1xi1> to vector<8x32xi1>
    %604 = arith.select %603, %599, %539 : vector<8x32xi1>, vector<8x32xf32>
    %605 = vector.shape_cast %601 : vector<8x1xi1> to vector<8x1xi1>
    %606 = vector.broadcast %605 : vector<8x1xi1> to vector<8x32xi1>
    %607 = arith.select %606, %597, %542 : vector<8x32xi1>, vector<8x32xf32>
    %608 = arith.index_cast %549 : i32 to index
    %c0_130 = arith.constant 0 : index
    %609 = vector.load %arg10[%608, %c0_130] : memref<128x32xf32, #tpu.memory_space<vmem>>, vector<8x32xf32>
    tpu.vector_store %arg10[%608, %c0_130], %580 {strides = array<i32>} : memref<128x32xf32, #tpu.memory_space<vmem>>, vector<8x32xf32>,
    %610 = arith.index_cast %551 : i32 to index
    %c0_131 = arith.constant 0 : index
    %611 = vector.load %arg11[%610, %c0_131] : memref<128x32xf32, #tpu.memory_space<vmem>>, vector<8x32xf32>
    tpu.vector_store %arg11[%610, %c0_131], %604 {strides = array<i32>} : memref<128x32xf32, #tpu.memory_space<vmem>>, vector<8x32xf32>,
    %c9_i32 = arith.constant 9 : i32
    %c15_i32_132 = arith.constant 15 : i32
    %612 = arith.subi %c15_i32_132, %c9_i32 : i32
    %c8_i32_133 = arith.constant 8 : i32
    %613 = arith.muli %c9_i32, %c8_i32_133 : i32
    %614 = tpu.assume_multiple %613, 8 : i32
    %c8_i32_134 = arith.constant 8 : i32
    %615 = arith.muli %612, %c8_i32_134 : i32
    %616 = tpu.assume_multiple %615, 8 : i32
    %617 = arith.index_cast %614 : i32 to index
    %c0_135 = arith.constant 0 : index
    %618 = vector.load %arg14[%617, %c0_135] : memref<128x128xf32, #tpu.memory_space<vmem>>, vector<8x128xf32>
    %cst_136 = arith.constant dense<0.000000e+00> : vector<8x128xf32>
    %619 = tpu.matmul %580, %4, %cst_136 {dimension_numbers = #tpu.dot_dimension_numbers<[1], [0], [0], [1], [0, 0, 1, 1], [], []>} : vector<8x32xf32>, vector<32x128xf32>, vector<8x128xf32> -> vector<8x128xf32>
    %620 = arith.addf %618, %619 : vector<8x128xf32>
    %621 = arith.index_cast %616 : i32 to index
    %c0_137 = arith.constant 0 : index
    %622 = vector.load %arg15[%621, %c0_137] : memref<128x128xf32, #tpu.memory_space<vmem>>, vector<8x128xf32>
    %cst_138 = arith.constant dense<0.000000e+00> : vector<8x128xf32>
    %623 = tpu.matmul %604, %5, %cst_138 {dimension_numbers = #tpu.dot_dimension_numbers<[1], [0], [0], [1], [0, 0, 1, 1], [], []>} : vector<8x32xf32>, vector<32x128xf32>, vector<8x128xf32> -> vector<8x128xf32>
    %624 = arith.addf %622, %623 : vector<8x128xf32>
    %625 = arith.addi %20, %c9_i32 : i32
    %626 = arith.negf %620 : vector<8x128xf32>
    %627 = math.exp %626 : vector<8x128xf32>
    %cst_139 = arith.constant 1.000000e+00 : f32
    %628 = vector.broadcast %cst_139 : f32 to vector<8x128xf32>
    %629 = arith.addf %628, %627 : vector<8x128xf32>
    %630 = arith.divf %628, %629 : vector<8x128xf32>
    %631 = math.tanh %620 : vector<8x128xf32>
    %632 = vector.extract_strided_slice %630 {offsets = [0, 0], sizes = [8, 32], strides = [1, 1]} : vector<8x128xf32> to vector<8x32xf32>
    %633 = vector.extract_strided_slice %630 {offsets = [0, 32], sizes = [8, 32], strides = [1, 1]} : vector<8x128xf32> to vector<8x32xf32>
    %634 = vector.extract_strided_slice %630 {offsets = [0, 96], sizes = [8, 32], strides = [1, 1]} : vector<8x128xf32> to vector<8x32xf32>
    %635 = vector.extract_strided_slice %631 {offsets = [0, 64], sizes = [8, 32], strides = [1, 1]} : vector<8x128xf32> to vector<8x32xf32>
    %636 = arith.mulf %633, %583 : vector<8x32xf32>
    %637 = arith.mulf %632, %635 : vector<8x32xf32>
    %638 = arith.addf %636, %637 : vector<8x32xf32>
    %639 = math.tanh %638 : vector<8x32xf32>
    %640 = arith.mulf %634, %639 : vector<8x32xf32>
    %641 = vector.broadcast %625 : i32 to vector<8x1xi32>
    %642 = arith.cmpi slt, %641, %3 : vector<8x1xi32>
    %643 = vector.shape_cast %642 : vector<8x1xi1> to vector<8x1xi1>
    %644 = vector.broadcast %643 : vector<8x1xi1> to vector<8x32xi1>
    %645 = arith.select %644, %640, %580 : vector<8x32xi1>, vector<8x32xf32>
    %646 = vector.shape_cast %642 : vector<8x1xi1> to vector<8x1xi1>
    %647 = vector.broadcast %646 : vector<8x1xi1> to vector<8x32xi1>
    %648 = arith.select %647, %638, %583 : vector<8x32xi1>, vector<8x32xf32>
    %649 = arith.addi %22, %612 : i32
    %650 = arith.negf %624 : vector<8x128xf32>
    %651 = math.exp %650 : vector<8x128xf32>
    %cst_140 = arith.constant 1.000000e+00 : f32
    %652 = vector.broadcast %cst_140 : f32 to vector<8x128xf32>
    %653 = arith.addf %652, %651 : vector<8x128xf32>
    %654 = arith.divf %652, %653 : vector<8x128xf32>
    %655 = math.tanh %624 : vector<8x128xf32>
    %656 = vector.extract_strided_slice %654 {offsets = [0, 0], sizes = [8, 32], strides = [1, 1]} : vector<8x128xf32> to vector<8x32xf32>
    %657 = vector.extract_strided_slice %654 {offsets = [0, 32], sizes = [8, 32], strides = [1, 1]} : vector<8x128xf32> to vector<8x32xf32>
    %658 = vector.extract_strided_slice %654 {offsets = [0, 96], sizes = [8, 32], strides = [1, 1]} : vector<8x128xf32> to vector<8x32xf32>
    %659 = vector.extract_strided_slice %655 {offsets = [0, 64], sizes = [8, 32], strides = [1, 1]} : vector<8x128xf32> to vector<8x32xf32>
    %660 = arith.mulf %657, %607 : vector<8x32xf32>
    %661 = arith.mulf %656, %659 : vector<8x32xf32>
    %662 = arith.addf %660, %661 : vector<8x32xf32>
    %663 = math.tanh %662 : vector<8x32xf32>
    %664 = arith.mulf %658, %663 : vector<8x32xf32>
    %665 = vector.broadcast %649 : i32 to vector<8x1xi32>
    %666 = arith.cmpi slt, %665, %3 : vector<8x1xi32>
    %667 = vector.shape_cast %666 : vector<8x1xi1> to vector<8x1xi1>
    %668 = vector.broadcast %667 : vector<8x1xi1> to vector<8x32xi1>
    %669 = arith.select %668, %664, %604 : vector<8x32xi1>, vector<8x32xf32>
    %670 = vector.shape_cast %666 : vector<8x1xi1> to vector<8x1xi1>
    %671 = vector.broadcast %670 : vector<8x1xi1> to vector<8x32xi1>
    %672 = arith.select %671, %662, %607 : vector<8x32xi1>, vector<8x32xf32>
    %673 = arith.index_cast %614 : i32 to index
    %c0_141 = arith.constant 0 : index
    %674 = vector.load %arg10[%673, %c0_141] : memref<128x32xf32, #tpu.memory_space<vmem>>, vector<8x32xf32>
    tpu.vector_store %arg10[%673, %c0_141], %645 {strides = array<i32>} : memref<128x32xf32, #tpu.memory_space<vmem>>, vector<8x32xf32>,
    %675 = arith.index_cast %616 : i32 to index
    %c0_142 = arith.constant 0 : index
    %676 = vector.load %arg11[%675, %c0_142] : memref<128x32xf32, #tpu.memory_space<vmem>>, vector<8x32xf32>
    tpu.vector_store %arg11[%675, %c0_142], %669 {strides = array<i32>} : memref<128x32xf32, #tpu.memory_space<vmem>>, vector<8x32xf32>,
    %c10_i32 = arith.constant 10 : i32
    %c15_i32_143 = arith.constant 15 : i32
    %677 = arith.subi %c15_i32_143, %c10_i32 : i32
    %c8_i32_144 = arith.constant 8 : i32
    %678 = arith.muli %c10_i32, %c8_i32_144 : i32
    %679 = tpu.assume_multiple %678, 8 : i32
    %c8_i32_145 = arith.constant 8 : i32
    %680 = arith.muli %677, %c8_i32_145 : i32
    %681 = tpu.assume_multiple %680, 8 : i32
    %682 = arith.index_cast %679 : i32 to index
    %c0_146 = arith.constant 0 : index
    %683 = vector.load %arg14[%682, %c0_146] : memref<128x128xf32, #tpu.memory_space<vmem>>, vector<8x128xf32>
    %cst_147 = arith.constant dense<0.000000e+00> : vector<8x128xf32>
    %684 = tpu.matmul %645, %4, %cst_147 {dimension_numbers = #tpu.dot_dimension_numbers<[1], [0], [0], [1], [0, 0, 1, 1], [], []>} : vector<8x32xf32>, vector<32x128xf32>, vector<8x128xf32> -> vector<8x128xf32>
    %685 = arith.addf %683, %684 : vector<8x128xf32>
    %686 = arith.index_cast %681 : i32 to index
    %c0_148 = arith.constant 0 : index
    %687 = vector.load %arg15[%686, %c0_148] : memref<128x128xf32, #tpu.memory_space<vmem>>, vector<8x128xf32>
    %cst_149 = arith.constant dense<0.000000e+00> : vector<8x128xf32>
    %688 = tpu.matmul %669, %5, %cst_149 {dimension_numbers = #tpu.dot_dimension_numbers<[1], [0], [0], [1], [0, 0, 1, 1], [], []>} : vector<8x32xf32>, vector<32x128xf32>, vector<8x128xf32> -> vector<8x128xf32>
    %689 = arith.addf %687, %688 : vector<8x128xf32>
    %690 = arith.addi %20, %c10_i32 : i32
    %691 = arith.negf %685 : vector<8x128xf32>
    %692 = math.exp %691 : vector<8x128xf32>
    %cst_150 = arith.constant 1.000000e+00 : f32
    %693 = vector.broadcast %cst_150 : f32 to vector<8x128xf32>
    %694 = arith.addf %693, %692 : vector<8x128xf32>
    %695 = arith.divf %693, %694 : vector<8x128xf32>
    %696 = math.tanh %685 : vector<8x128xf32>
    %697 = vector.extract_strided_slice %695 {offsets = [0, 0], sizes = [8, 32], strides = [1, 1]} : vector<8x128xf32> to vector<8x32xf32>
    %698 = vector.extract_strided_slice %695 {offsets = [0, 32], sizes = [8, 32], strides = [1, 1]} : vector<8x128xf32> to vector<8x32xf32>
    %699 = vector.extract_strided_slice %695 {offsets = [0, 96], sizes = [8, 32], strides = [1, 1]} : vector<8x128xf32> to vector<8x32xf32>
    %700 = vector.extract_strided_slice %696 {offsets = [0, 64], sizes = [8, 32], strides = [1, 1]} : vector<8x128xf32> to vector<8x32xf32>
    %701 = arith.mulf %698, %648 : vector<8x32xf32>
    %702 = arith.mulf %697, %700 : vector<8x32xf32>
    %703 = arith.addf %701, %702 : vector<8x32xf32>
    %704 = math.tanh %703 : vector<8x32xf32>
    %705 = arith.mulf %699, %704 : vector<8x32xf32>
    %706 = vector.broadcast %690 : i32 to vector<8x1xi32>
    %707 = arith.cmpi slt, %706, %3 : vector<8x1xi32>
    %708 = vector.shape_cast %707 : vector<8x1xi1> to vector<8x1xi1>
    %709 = vector.broadcast %708 : vector<8x1xi1> to vector<8x32xi1>
    %710 = arith.select %709, %705, %645 : vector<8x32xi1>, vector<8x32xf32>
    %711 = vector.shape_cast %707 : vector<8x1xi1> to vector<8x1xi1>
    %712 = vector.broadcast %711 : vector<8x1xi1> to vector<8x32xi1>
    %713 = arith.select %712, %703, %648 : vector<8x32xi1>, vector<8x32xf32>
    %714 = arith.addi %22, %677 : i32
    %715 = arith.negf %689 : vector<8x128xf32>
    %716 = math.exp %715 : vector<8x128xf32>
    %cst_151 = arith.constant 1.000000e+00 : f32
    %717 = vector.broadcast %cst_151 : f32 to vector<8x128xf32>
    %718 = arith.addf %717, %716 : vector<8x128xf32>
    %719 = arith.divf %717, %718 : vector<8x128xf32>
    %720 = math.tanh %689 : vector<8x128xf32>
    %721 = vector.extract_strided_slice %719 {offsets = [0, 0], sizes = [8, 32], strides = [1, 1]} : vector<8x128xf32> to vector<8x32xf32>
    %722 = vector.extract_strided_slice %719 {offsets = [0, 32], sizes = [8, 32], strides = [1, 1]} : vector<8x128xf32> to vector<8x32xf32>
    %723 = vector.extract_strided_slice %719 {offsets = [0, 96], sizes = [8, 32], strides = [1, 1]} : vector<8x128xf32> to vector<8x32xf32>
    %724 = vector.extract_strided_slice %720 {offsets = [0, 64], sizes = [8, 32], strides = [1, 1]} : vector<8x128xf32> to vector<8x32xf32>
    %725 = arith.mulf %722, %672 : vector<8x32xf32>
    %726 = arith.mulf %721, %724 : vector<8x32xf32>
    %727 = arith.addf %725, %726 : vector<8x32xf32>
    %728 = math.tanh %727 : vector<8x32xf32>
    %729 = arith.mulf %723, %728 : vector<8x32xf32>
    %730 = vector.broadcast %714 : i32 to vector<8x1xi32>
    %731 = arith.cmpi slt, %730, %3 : vector<8x1xi32>
    %732 = vector.shape_cast %731 : vector<8x1xi1> to vector<8x1xi1>
    %733 = vector.broadcast %732 : vector<8x1xi1> to vector<8x32xi1>
    %734 = arith.select %733, %729, %669 : vector<8x32xi1>, vector<8x32xf32>
    %735 = vector.shape_cast %731 : vector<8x1xi1> to vector<8x1xi1>
    %736 = vector.broadcast %735 : vector<8x1xi1> to vector<8x32xi1>
    %737 = arith.select %736, %727, %672 : vector<8x32xi1>, vector<8x32xf32>
    %738 = arith.index_cast %679 : i32 to index
    %c0_152 = arith.constant 0 : index
    %739 = vector.load %arg10[%738, %c0_152] : memref<128x32xf32, #tpu.memory_space<vmem>>, vector<8x32xf32>
    tpu.vector_store %arg10[%738, %c0_152], %710 {strides = array<i32>} : memref<128x32xf32, #tpu.memory_space<vmem>>, vector<8x32xf32>,
    %740 = arith.index_cast %681 : i32 to index
    %c0_153 = arith.constant 0 : index
    %741 = vector.load %arg11[%740, %c0_153] : memref<128x32xf32, #tpu.memory_space<vmem>>, vector<8x32xf32>
    tpu.vector_store %arg11[%740, %c0_153], %734 {strides = array<i32>} : memref<128x32xf32, #tpu.memory_space<vmem>>, vector<8x32xf32>,
    %c11_i32 = arith.constant 11 : i32
    %c15_i32_154 = arith.constant 15 : i32
    %742 = arith.subi %c15_i32_154, %c11_i32 : i32
    %c8_i32_155 = arith.constant 8 : i32
    %743 = arith.muli %c11_i32, %c8_i32_155 : i32
    %744 = tpu.assume_multiple %743, 8 : i32
    %c8_i32_156 = arith.constant 8 : i32
    %745 = arith.muli %742, %c8_i32_156 : i32
    %746 = tpu.assume_multiple %745, 8 : i32
    %747 = arith.index_cast %744 : i32 to index
    %c0_157 = arith.constant 0 : index
    %748 = vector.load %arg14[%747, %c0_157] : memref<128x128xf32, #tpu.memory_space<vmem>>, vector<8x128xf32>
    %cst_158 = arith.constant dense<0.000000e+00> : vector<8x128xf32>
    %749 = tpu.matmul %710, %4, %cst_158 {dimension_numbers = #tpu.dot_dimension_numbers<[1], [0], [0], [1], [0, 0, 1, 1], [], []>} : vector<8x32xf32>, vector<32x128xf32>, vector<8x128xf32> -> vector<8x128xf32>
    %750 = arith.addf %748, %749 : vector<8x128xf32>
    %751 = arith.index_cast %746 : i32 to index
    %c0_159 = arith.constant 0 : index
    %752 = vector.load %arg15[%751, %c0_159] : memref<128x128xf32, #tpu.memory_space<vmem>>, vector<8x128xf32>
    %cst_160 = arith.constant dense<0.000000e+00> : vector<8x128xf32>
    %753 = tpu.matmul %734, %5, %cst_160 {dimension_numbers = #tpu.dot_dimension_numbers<[1], [0], [0], [1], [0, 0, 1, 1], [], []>} : vector<8x32xf32>, vector<32x128xf32>, vector<8x128xf32> -> vector<8x128xf32>
    %754 = arith.addf %752, %753 : vector<8x128xf32>
    %755 = arith.addi %20, %c11_i32 : i32
    %756 = arith.negf %750 : vector<8x128xf32>
    %757 = math.exp %756 : vector<8x128xf32>
    %cst_161 = arith.constant 1.000000e+00 : f32
    %758 = vector.broadcast %cst_161 : f32 to vector<8x128xf32>
    %759 = arith.addf %758, %757 : vector<8x128xf32>
    %760 = arith.divf %758, %759 : vector<8x128xf32>
    %761 = math.tanh %750 : vector<8x128xf32>
    %762 = vector.extract_strided_slice %760 {offsets = [0, 0], sizes = [8, 32], strides = [1, 1]} : vector<8x128xf32> to vector<8x32xf32>
    %763 = vector.extract_strided_slice %760 {offsets = [0, 32], sizes = [8, 32], strides = [1, 1]} : vector<8x128xf32> to vector<8x32xf32>
    %764 = vector.extract_strided_slice %760 {offsets = [0, 96], sizes = [8, 32], strides = [1, 1]} : vector<8x128xf32> to vector<8x32xf32>
    %765 = vector.extract_strided_slice %761 {offsets = [0, 64], sizes = [8, 32], strides = [1, 1]} : vector<8x128xf32> to vector<8x32xf32>
    %766 = arith.mulf %763, %713 : vector<8x32xf32>
    %767 = arith.mulf %762, %765 : vector<8x32xf32>
    %768 = arith.addf %766, %767 : vector<8x32xf32>
    %769 = math.tanh %768 : vector<8x32xf32>
    %770 = arith.mulf %764, %769 : vector<8x32xf32>
    %771 = vector.broadcast %755 : i32 to vector<8x1xi32>
    %772 = arith.cmpi slt, %771, %3 : vector<8x1xi32>
    %773 = vector.shape_cast %772 : vector<8x1xi1> to vector<8x1xi1>
    %774 = vector.broadcast %773 : vector<8x1xi1> to vector<8x32xi1>
    %775 = arith.select %774, %770, %710 : vector<8x32xi1>, vector<8x32xf32>
    %776 = vector.shape_cast %772 : vector<8x1xi1> to vector<8x1xi1>
    %777 = vector.broadcast %776 : vector<8x1xi1> to vector<8x32xi1>
    %778 = arith.select %777, %768, %713 : vector<8x32xi1>, vector<8x32xf32>
    %779 = arith.addi %22, %742 : i32
    %780 = arith.negf %754 : vector<8x128xf32>
    %781 = math.exp %780 : vector<8x128xf32>
    %cst_162 = arith.constant 1.000000e+00 : f32
    %782 = vector.broadcast %cst_162 : f32 to vector<8x128xf32>
    %783 = arith.addf %782, %781 : vector<8x128xf32>
    %784 = arith.divf %782, %783 : vector<8x128xf32>
    %785 = math.tanh %754 : vector<8x128xf32>
    %786 = vector.extract_strided_slice %784 {offsets = [0, 0], sizes = [8, 32], strides = [1, 1]} : vector<8x128xf32> to vector<8x32xf32>
    %787 = vector.extract_strided_slice %784 {offsets = [0, 32], sizes = [8, 32], strides = [1, 1]} : vector<8x128xf32> to vector<8x32xf32>
    %788 = vector.extract_strided_slice %784 {offsets = [0, 96], sizes = [8, 32], strides = [1, 1]} : vector<8x128xf32> to vector<8x32xf32>
    %789 = vector.extract_strided_slice %785 {offsets = [0, 64], sizes = [8, 32], strides = [1, 1]} : vector<8x128xf32> to vector<8x32xf32>
    %790 = arith.mulf %787, %737 : vector<8x32xf32>
    %791 = arith.mulf %786, %789 : vector<8x32xf32>
    %792 = arith.addf %790, %791 : vector<8x32xf32>
    %793 = math.tanh %792 : vector<8x32xf32>
    %794 = arith.mulf %788, %793 : vector<8x32xf32>
    %795 = vector.broadcast %779 : i32 to vector<8x1xi32>
    %796 = arith.cmpi slt, %795, %3 : vector<8x1xi32>
    %797 = vector.shape_cast %796 : vector<8x1xi1> to vector<8x1xi1>
    %798 = vector.broadcast %797 : vector<8x1xi1> to vector<8x32xi1>
    %799 = arith.select %798, %794, %734 : vector<8x32xi1>, vector<8x32xf32>
    %800 = vector.shape_cast %796 : vector<8x1xi1> to vector<8x1xi1>
    %801 = vector.broadcast %800 : vector<8x1xi1> to vector<8x32xi1>
    %802 = arith.select %801, %792, %737 : vector<8x32xi1>, vector<8x32xf32>
    %803 = arith.index_cast %744 : i32 to index
    %c0_163 = arith.constant 0 : index
    %804 = vector.load %arg10[%803, %c0_163] : memref<128x32xf32, #tpu.memory_space<vmem>>, vector<8x32xf32>
    tpu.vector_store %arg10[%803, %c0_163], %775 {strides = array<i32>} : memref<128x32xf32, #tpu.memory_space<vmem>>, vector<8x32xf32>,
    %805 = arith.index_cast %746 : i32 to index
    %c0_164 = arith.constant 0 : index
    %806 = vector.load %arg11[%805, %c0_164] : memref<128x32xf32, #tpu.memory_space<vmem>>, vector<8x32xf32>
    tpu.vector_store %arg11[%805, %c0_164], %799 {strides = array<i32>} : memref<128x32xf32, #tpu.memory_space<vmem>>, vector<8x32xf32>,
    %c12_i32 = arith.constant 12 : i32
    %c15_i32_165 = arith.constant 15 : i32
    %807 = arith.subi %c15_i32_165, %c12_i32 : i32
    %c8_i32_166 = arith.constant 8 : i32
    %808 = arith.muli %c12_i32, %c8_i32_166 : i32
    %809 = tpu.assume_multiple %808, 8 : i32
    %c8_i32_167 = arith.constant 8 : i32
    %810 = arith.muli %807, %c8_i32_167 : i32
    %811 = tpu.assume_multiple %810, 8 : i32
    %812 = arith.index_cast %809 : i32 to index
    %c0_168 = arith.constant 0 : index
    %813 = vector.load %arg14[%812, %c0_168] : memref<128x128xf32, #tpu.memory_space<vmem>>, vector<8x128xf32>
    %cst_169 = arith.constant dense<0.000000e+00> : vector<8x128xf32>
    %814 = tpu.matmul %775, %4, %cst_169 {dimension_numbers = #tpu.dot_dimension_numbers<[1], [0], [0], [1], [0, 0, 1, 1], [], []>} : vector<8x32xf32>, vector<32x128xf32>, vector<8x128xf32> -> vector<8x128xf32>
    %815 = arith.addf %813, %814 : vector<8x128xf32>
    %816 = arith.index_cast %811 : i32 to index
    %c0_170 = arith.constant 0 : index
    %817 = vector.load %arg15[%816, %c0_170] : memref<128x128xf32, #tpu.memory_space<vmem>>, vector<8x128xf32>
    %cst_171 = arith.constant dense<0.000000e+00> : vector<8x128xf32>
    %818 = tpu.matmul %799, %5, %cst_171 {dimension_numbers = #tpu.dot_dimension_numbers<[1], [0], [0], [1], [0, 0, 1, 1], [], []>} : vector<8x32xf32>, vector<32x128xf32>, vector<8x128xf32> -> vector<8x128xf32>
    %819 = arith.addf %817, %818 : vector<8x128xf32>
    %820 = arith.addi %20, %c12_i32 : i32
    %821 = arith.negf %815 : vector<8x128xf32>
    %822 = math.exp %821 : vector<8x128xf32>
    %cst_172 = arith.constant 1.000000e+00 : f32
    %823 = vector.broadcast %cst_172 : f32 to vector<8x128xf32>
    %824 = arith.addf %823, %822 : vector<8x128xf32>
    %825 = arith.divf %823, %824 : vector<8x128xf32>
    %826 = math.tanh %815 : vector<8x128xf32>
    %827 = vector.extract_strided_slice %825 {offsets = [0, 0], sizes = [8, 32], strides = [1, 1]} : vector<8x128xf32> to vector<8x32xf32>
    %828 = vector.extract_strided_slice %825 {offsets = [0, 32], sizes = [8, 32], strides = [1, 1]} : vector<8x128xf32> to vector<8x32xf32>
    %829 = vector.extract_strided_slice %825 {offsets = [0, 96], sizes = [8, 32], strides = [1, 1]} : vector<8x128xf32> to vector<8x32xf32>
    %830 = vector.extract_strided_slice %826 {offsets = [0, 64], sizes = [8, 32], strides = [1, 1]} : vector<8x128xf32> to vector<8x32xf32>
    %831 = arith.mulf %828, %778 : vector<8x32xf32>
    %832 = arith.mulf %827, %830 : vector<8x32xf32>
    %833 = arith.addf %831, %832 : vector<8x32xf32>
    %834 = math.tanh %833 : vector<8x32xf32>
    %835 = arith.mulf %829, %834 : vector<8x32xf32>
    %836 = vector.broadcast %820 : i32 to vector<8x1xi32>
    %837 = arith.cmpi slt, %836, %3 : vector<8x1xi32>
    %838 = vector.shape_cast %837 : vector<8x1xi1> to vector<8x1xi1>
    %839 = vector.broadcast %838 : vector<8x1xi1> to vector<8x32xi1>
    %840 = arith.select %839, %835, %775 : vector<8x32xi1>, vector<8x32xf32>
    %841 = vector.shape_cast %837 : vector<8x1xi1> to vector<8x1xi1>
    %842 = vector.broadcast %841 : vector<8x1xi1> to vector<8x32xi1>
    %843 = arith.select %842, %833, %778 : vector<8x32xi1>, vector<8x32xf32>
    %844 = arith.addi %22, %807 : i32
    %845 = arith.negf %819 : vector<8x128xf32>
    %846 = math.exp %845 : vector<8x128xf32>
    %cst_173 = arith.constant 1.000000e+00 : f32
    %847 = vector.broadcast %cst_173 : f32 to vector<8x128xf32>
    %848 = arith.addf %847, %846 : vector<8x128xf32>
    %849 = arith.divf %847, %848 : vector<8x128xf32>
    %850 = math.tanh %819 : vector<8x128xf32>
    %851 = vector.extract_strided_slice %849 {offsets = [0, 0], sizes = [8, 32], strides = [1, 1]} : vector<8x128xf32> to vector<8x32xf32>
    %852 = vector.extract_strided_slice %849 {offsets = [0, 32], sizes = [8, 32], strides = [1, 1]} : vector<8x128xf32> to vector<8x32xf32>
    %853 = vector.extract_strided_slice %849 {offsets = [0, 96], sizes = [8, 32], strides = [1, 1]} : vector<8x128xf32> to vector<8x32xf32>
    %854 = vector.extract_strided_slice %850 {offsets = [0, 64], sizes = [8, 32], strides = [1, 1]} : vector<8x128xf32> to vector<8x32xf32>
    %855 = arith.mulf %852, %802 : vector<8x32xf32>
    %856 = arith.mulf %851, %854 : vector<8x32xf32>
    %857 = arith.addf %855, %856 : vector<8x32xf32>
    %858 = math.tanh %857 : vector<8x32xf32>
    %859 = arith.mulf %853, %858 : vector<8x32xf32>
    %860 = vector.broadcast %844 : i32 to vector<8x1xi32>
    %861 = arith.cmpi slt, %860, %3 : vector<8x1xi32>
    %862 = vector.shape_cast %861 : vector<8x1xi1> to vector<8x1xi1>
    %863 = vector.broadcast %862 : vector<8x1xi1> to vector<8x32xi1>
    %864 = arith.select %863, %859, %799 : vector<8x32xi1>, vector<8x32xf32>
    %865 = vector.shape_cast %861 : vector<8x1xi1> to vector<8x1xi1>
    %866 = vector.broadcast %865 : vector<8x1xi1> to vector<8x32xi1>
    %867 = arith.select %866, %857, %802 : vector<8x32xi1>, vector<8x32xf32>
    %868 = arith.index_cast %809 : i32 to index
    %c0_174 = arith.constant 0 : index
    %869 = vector.load %arg10[%868, %c0_174] : memref<128x32xf32, #tpu.memory_space<vmem>>, vector<8x32xf32>
    tpu.vector_store %arg10[%868, %c0_174], %840 {strides = array<i32>} : memref<128x32xf32, #tpu.memory_space<vmem>>, vector<8x32xf32>,
    %870 = arith.index_cast %811 : i32 to index
    %c0_175 = arith.constant 0 : index
    %871 = vector.load %arg11[%870, %c0_175] : memref<128x32xf32, #tpu.memory_space<vmem>>, vector<8x32xf32>
    tpu.vector_store %arg11[%870, %c0_175], %864 {strides = array<i32>} : memref<128x32xf32, #tpu.memory_space<vmem>>, vector<8x32xf32>,
    %c13_i32 = arith.constant 13 : i32
    %c15_i32_176 = arith.constant 15 : i32
    %872 = arith.subi %c15_i32_176, %c13_i32 : i32
    %c8_i32_177 = arith.constant 8 : i32
    %873 = arith.muli %c13_i32, %c8_i32_177 : i32
    %874 = tpu.assume_multiple %873, 8 : i32
    %c8_i32_178 = arith.constant 8 : i32
    %875 = arith.muli %872, %c8_i32_178 : i32
    %876 = tpu.assume_multiple %875, 8 : i32
    %877 = arith.index_cast %874 : i32 to index
    %c0_179 = arith.constant 0 : index
    %878 = vector.load %arg14[%877, %c0_179] : memref<128x128xf32, #tpu.memory_space<vmem>>, vector<8x128xf32>
    %cst_180 = arith.constant dense<0.000000e+00> : vector<8x128xf32>
    %879 = tpu.matmul %840, %4, %cst_180 {dimension_numbers = #tpu.dot_dimension_numbers<[1], [0], [0], [1], [0, 0, 1, 1], [], []>} : vector<8x32xf32>, vector<32x128xf32>, vector<8x128xf32> -> vector<8x128xf32>
    %880 = arith.addf %878, %879 : vector<8x128xf32>
    %881 = arith.index_cast %876 : i32 to index
    %c0_181 = arith.constant 0 : index
    %882 = vector.load %arg15[%881, %c0_181] : memref<128x128xf32, #tpu.memory_space<vmem>>, vector<8x128xf32>
    %cst_182 = arith.constant dense<0.000000e+00> : vector<8x128xf32>
    %883 = tpu.matmul %864, %5, %cst_182 {dimension_numbers = #tpu.dot_dimension_numbers<[1], [0], [0], [1], [0, 0, 1, 1], [], []>} : vector<8x32xf32>, vector<32x128xf32>, vector<8x128xf32> -> vector<8x128xf32>
    %884 = arith.addf %882, %883 : vector<8x128xf32>
    %885 = arith.addi %20, %c13_i32 : i32
    %886 = arith.negf %880 : vector<8x128xf32>
    %887 = math.exp %886 : vector<8x128xf32>
    %cst_183 = arith.constant 1.000000e+00 : f32
    %888 = vector.broadcast %cst_183 : f32 to vector<8x128xf32>
    %889 = arith.addf %888, %887 : vector<8x128xf32>
    %890 = arith.divf %888, %889 : vector<8x128xf32>
    %891 = math.tanh %880 : vector<8x128xf32>
    %892 = vector.extract_strided_slice %890 {offsets = [0, 0], sizes = [8, 32], strides = [1, 1]} : vector<8x128xf32> to vector<8x32xf32>
    %893 = vector.extract_strided_slice %890 {offsets = [0, 32], sizes = [8, 32], strides = [1, 1]} : vector<8x128xf32> to vector<8x32xf32>
    %894 = vector.extract_strided_slice %890 {offsets = [0, 96], sizes = [8, 32], strides = [1, 1]} : vector<8x128xf32> to vector<8x32xf32>
    %895 = vector.extract_strided_slice %891 {offsets = [0, 64], sizes = [8, 32], strides = [1, 1]} : vector<8x128xf32> to vector<8x32xf32>
    %896 = arith.mulf %893, %843 : vector<8x32xf32>
    %897 = arith.mulf %892, %895 : vector<8x32xf32>
    %898 = arith.addf %896, %897 : vector<8x32xf32>
    %899 = math.tanh %898 : vector<8x32xf32>
    %900 = arith.mulf %894, %899 : vector<8x32xf32>
    %901 = vector.broadcast %885 : i32 to vector<8x1xi32>
    %902 = arith.cmpi slt, %901, %3 : vector<8x1xi32>
    %903 = vector.shape_cast %902 : vector<8x1xi1> to vector<8x1xi1>
    %904 = vector.broadcast %903 : vector<8x1xi1> to vector<8x32xi1>
    %905 = arith.select %904, %900, %840 : vector<8x32xi1>, vector<8x32xf32>
    %906 = vector.shape_cast %902 : vector<8x1xi1> to vector<8x1xi1>
    %907 = vector.broadcast %906 : vector<8x1xi1> to vector<8x32xi1>
    %908 = arith.select %907, %898, %843 : vector<8x32xi1>, vector<8x32xf32>
    %909 = arith.addi %22, %872 : i32
    %910 = arith.negf %884 : vector<8x128xf32>
    %911 = math.exp %910 : vector<8x128xf32>
    %cst_184 = arith.constant 1.000000e+00 : f32
    %912 = vector.broadcast %cst_184 : f32 to vector<8x128xf32>
    %913 = arith.addf %912, %911 : vector<8x128xf32>
    %914 = arith.divf %912, %913 : vector<8x128xf32>
    %915 = math.tanh %884 : vector<8x128xf32>
    %916 = vector.extract_strided_slice %914 {offsets = [0, 0], sizes = [8, 32], strides = [1, 1]} : vector<8x128xf32> to vector<8x32xf32>
    %917 = vector.extract_strided_slice %914 {offsets = [0, 32], sizes = [8, 32], strides = [1, 1]} : vector<8x128xf32> to vector<8x32xf32>
    %918 = vector.extract_strided_slice %914 {offsets = [0, 96], sizes = [8, 32], strides = [1, 1]} : vector<8x128xf32> to vector<8x32xf32>
    %919 = vector.extract_strided_slice %915 {offsets = [0, 64], sizes = [8, 32], strides = [1, 1]} : vector<8x128xf32> to vector<8x32xf32>
    %920 = arith.mulf %917, %867 : vector<8x32xf32>
    %921 = arith.mulf %916, %919 : vector<8x32xf32>
    %922 = arith.addf %920, %921 : vector<8x32xf32>
    %923 = math.tanh %922 : vector<8x32xf32>
    %924 = arith.mulf %918, %923 : vector<8x32xf32>
    %925 = vector.broadcast %909 : i32 to vector<8x1xi32>
    %926 = arith.cmpi slt, %925, %3 : vector<8x1xi32>
    %927 = vector.shape_cast %926 : vector<8x1xi1> to vector<8x1xi1>
    %928 = vector.broadcast %927 : vector<8x1xi1> to vector<8x32xi1>
    %929 = arith.select %928, %924, %864 : vector<8x32xi1>, vector<8x32xf32>
    %930 = vector.shape_cast %926 : vector<8x1xi1> to vector<8x1xi1>
    %931 = vector.broadcast %930 : vector<8x1xi1> to vector<8x32xi1>
    %932 = arith.select %931, %922, %867 : vector<8x32xi1>, vector<8x32xf32>
    %933 = arith.index_cast %874 : i32 to index
    %c0_185 = arith.constant 0 : index
    %934 = vector.load %arg10[%933, %c0_185] : memref<128x32xf32, #tpu.memory_space<vmem>>, vector<8x32xf32>
    tpu.vector_store %arg10[%933, %c0_185], %905 {strides = array<i32>} : memref<128x32xf32, #tpu.memory_space<vmem>>, vector<8x32xf32>,
    %935 = arith.index_cast %876 : i32 to index
    %c0_186 = arith.constant 0 : index
    %936 = vector.load %arg11[%935, %c0_186] : memref<128x32xf32, #tpu.memory_space<vmem>>, vector<8x32xf32>
    tpu.vector_store %arg11[%935, %c0_186], %929 {strides = array<i32>} : memref<128x32xf32, #tpu.memory_space<vmem>>, vector<8x32xf32>,
    %c14_i32 = arith.constant 14 : i32
    %c15_i32_187 = arith.constant 15 : i32
    %937 = arith.subi %c15_i32_187, %c14_i32 : i32
    %c8_i32_188 = arith.constant 8 : i32
    %938 = arith.muli %c14_i32, %c8_i32_188 : i32
    %939 = tpu.assume_multiple %938, 8 : i32
    %c8_i32_189 = arith.constant 8 : i32
    %940 = arith.muli %937, %c8_i32_189 : i32
    %941 = tpu.assume_multiple %940, 8 : i32
    %942 = arith.index_cast %939 : i32 to index
    %c0_190 = arith.constant 0 : index
    %943 = vector.load %arg14[%942, %c0_190] : memref<128x128xf32, #tpu.memory_space<vmem>>, vector<8x128xf32>
    %cst_191 = arith.constant dense<0.000000e+00> : vector<8x128xf32>
    %944 = tpu.matmul %905, %4, %cst_191 {dimension_numbers = #tpu.dot_dimension_numbers<[1], [0], [0], [1], [0, 0, 1, 1], [], []>} : vector<8x32xf32>, vector<32x128xf32>, vector<8x128xf32> -> vector<8x128xf32>
    %945 = arith.addf %943, %944 : vector<8x128xf32>
    %946 = arith.index_cast %941 : i32 to index
    %c0_192 = arith.constant 0 : index
    %947 = vector.load %arg15[%946, %c0_192] : memref<128x128xf32, #tpu.memory_space<vmem>>, vector<8x128xf32>
    %cst_193 = arith.constant dense<0.000000e+00> : vector<8x128xf32>
    %948 = tpu.matmul %929, %5, %cst_193 {dimension_numbers = #tpu.dot_dimension_numbers<[1], [0], [0], [1], [0, 0, 1, 1], [], []>} : vector<8x32xf32>, vector<32x128xf32>, vector<8x128xf32> -> vector<8x128xf32>
    %949 = arith.addf %947, %948 : vector<8x128xf32>
    %950 = arith.addi %20, %c14_i32 : i32
    %951 = arith.negf %945 : vector<8x128xf32>
    %952 = math.exp %951 : vector<8x128xf32>
    %cst_194 = arith.constant 1.000000e+00 : f32
    %953 = vector.broadcast %cst_194 : f32 to vector<8x128xf32>
    %954 = arith.addf %953, %952 : vector<8x128xf32>
    %955 = arith.divf %953, %954 : vector<8x128xf32>
    %956 = math.tanh %945 : vector<8x128xf32>
    %957 = vector.extract_strided_slice %955 {offsets = [0, 0], sizes = [8, 32], strides = [1, 1]} : vector<8x128xf32> to vector<8x32xf32>
    %958 = vector.extract_strided_slice %955 {offsets = [0, 32], sizes = [8, 32], strides = [1, 1]} : vector<8x128xf32> to vector<8x32xf32>
    %959 = vector.extract_strided_slice %955 {offsets = [0, 96], sizes = [8, 32], strides = [1, 1]} : vector<8x128xf32> to vector<8x32xf32>
    %960 = vector.extract_strided_slice %956 {offsets = [0, 64], sizes = [8, 32], strides = [1, 1]} : vector<8x128xf32> to vector<8x32xf32>
    %961 = arith.mulf %958, %908 : vector<8x32xf32>
    %962 = arith.mulf %957, %960 : vector<8x32xf32>
    %963 = arith.addf %961, %962 : vector<8x32xf32>
    %964 = math.tanh %963 : vector<8x32xf32>
    %965 = arith.mulf %959, %964 : vector<8x32xf32>
    %966 = vector.broadcast %950 : i32 to vector<8x1xi32>
    %967 = arith.cmpi slt, %966, %3 : vector<8x1xi32>
    %968 = vector.shape_cast %967 : vector<8x1xi1> to vector<8x1xi1>
    %969 = vector.broadcast %968 : vector<8x1xi1> to vector<8x32xi1>
    %970 = arith.select %969, %965, %905 : vector<8x32xi1>, vector<8x32xf32>
    %971 = vector.shape_cast %967 : vector<8x1xi1> to vector<8x1xi1>
    %972 = vector.broadcast %971 : vector<8x1xi1> to vector<8x32xi1>
    %973 = arith.select %972, %963, %908 : vector<8x32xi1>, vector<8x32xf32>
    %974 = arith.addi %22, %937 : i32
    %975 = arith.negf %949 : vector<8x128xf32>
    %976 = math.exp %975 : vector<8x128xf32>
    %cst_195 = arith.constant 1.000000e+00 : f32
    %977 = vector.broadcast %cst_195 : f32 to vector<8x128xf32>
    %978 = arith.addf %977, %976 : vector<8x128xf32>
    %979 = arith.divf %977, %978 : vector<8x128xf32>
    %980 = math.tanh %949 : vector<8x128xf32>
    %981 = vector.extract_strided_slice %979 {offsets = [0, 0], sizes = [8, 32], strides = [1, 1]} : vector<8x128xf32> to vector<8x32xf32>
    %982 = vector.extract_strided_slice %979 {offsets = [0, 32], sizes = [8, 32], strides = [1, 1]} : vector<8x128xf32> to vector<8x32xf32>
    %983 = vector.extract_strided_slice %979 {offsets = [0, 96], sizes = [8, 32], strides = [1, 1]} : vector<8x128xf32> to vector<8x32xf32>
    %984 = vector.extract_strided_slice %980 {offsets = [0, 64], sizes = [8, 32], strides = [1, 1]} : vector<8x128xf32> to vector<8x32xf32>
    %985 = arith.mulf %982, %932 : vector<8x32xf32>
    %986 = arith.mulf %981, %984 : vector<8x32xf32>
    %987 = arith.addf %985, %986 : vector<8x32xf32>
    %988 = math.tanh %987 : vector<8x32xf32>
    %989 = arith.mulf %983, %988 : vector<8x32xf32>
    %990 = vector.broadcast %974 : i32 to vector<8x1xi32>
    %991 = arith.cmpi slt, %990, %3 : vector<8x1xi32>
    %992 = vector.shape_cast %991 : vector<8x1xi1> to vector<8x1xi1>
    %993 = vector.broadcast %992 : vector<8x1xi1> to vector<8x32xi1>
    %994 = arith.select %993, %989, %929 : vector<8x32xi1>, vector<8x32xf32>
    %995 = vector.shape_cast %991 : vector<8x1xi1> to vector<8x1xi1>
    %996 = vector.broadcast %995 : vector<8x1xi1> to vector<8x32xi1>
    %997 = arith.select %996, %987, %932 : vector<8x32xi1>, vector<8x32xf32>
    %998 = arith.index_cast %939 : i32 to index
    %c0_196 = arith.constant 0 : index
    %999 = vector.load %arg10[%998, %c0_196] : memref<128x32xf32, #tpu.memory_space<vmem>>, vector<8x32xf32>
    tpu.vector_store %arg10[%998, %c0_196], %970 {strides = array<i32>} : memref<128x32xf32, #tpu.memory_space<vmem>>, vector<8x32xf32>,
    %1000 = arith.index_cast %941 : i32 to index
    %c0_197 = arith.constant 0 : index
    %1001 = vector.load %arg11[%1000, %c0_197] : memref<128x32xf32, #tpu.memory_space<vmem>>, vector<8x32xf32>
    tpu.vector_store %arg11[%1000, %c0_197], %994 {strides = array<i32>} : memref<128x32xf32, #tpu.memory_space<vmem>>, vector<8x32xf32>,
    %c15_i32_198 = arith.constant 15 : i32
    %c15_i32_199 = arith.constant 15 : i32
    %1002 = arith.subi %c15_i32_199, %c15_i32_198 : i32
    %c8_i32_200 = arith.constant 8 : i32
    %1003 = arith.muli %c15_i32_198, %c8_i32_200 : i32
    %1004 = tpu.assume_multiple %1003, 8 : i32
    %c8_i32_201 = arith.constant 8 : i32
    %1005 = arith.muli %1002, %c8_i32_201 : i32
    %1006 = tpu.assume_multiple %1005, 8 : i32
    %1007 = arith.index_cast %1004 : i32 to index
    %c0_202 = arith.constant 0 : index
    %1008 = vector.load %arg14[%1007, %c0_202] : memref<128x128xf32, #tpu.memory_space<vmem>>, vector<8x128xf32>
    %cst_203 = arith.constant dense<0.000000e+00> : vector<8x128xf32>
    %1009 = tpu.matmul %970, %4, %cst_203 {dimension_numbers = #tpu.dot_dimension_numbers<[1], [0], [0], [1], [0, 0, 1, 1], [], []>} : vector<8x32xf32>, vector<32x128xf32>, vector<8x128xf32> -> vector<8x128xf32>
    %1010 = arith.addf %1008, %1009 : vector<8x128xf32>
    %1011 = arith.index_cast %1006 : i32 to index
    %c0_204 = arith.constant 0 : index
    %1012 = vector.load %arg15[%1011, %c0_204] : memref<128x128xf32, #tpu.memory_space<vmem>>, vector<8x128xf32>
    %cst_205 = arith.constant dense<0.000000e+00> : vector<8x128xf32>
    %1013 = tpu.matmul %994, %5, %cst_205 {dimension_numbers = #tpu.dot_dimension_numbers<[1], [0], [0], [1], [0, 0, 1, 1], [], []>} : vector<8x32xf32>, vector<32x128xf32>, vector<8x128xf32> -> vector<8x128xf32>
    %1014 = arith.addf %1012, %1013 : vector<8x128xf32>
    %1015 = arith.addi %20, %c15_i32_198 : i32
    %1016 = arith.negf %1010 : vector<8x128xf32>
    %1017 = math.exp %1016 : vector<8x128xf32>
    %cst_206 = arith.constant 1.000000e+00 : f32
    %1018 = vector.broadcast %cst_206 : f32 to vector<8x128xf32>
    %1019 = arith.addf %1018, %1017 : vector<8x128xf32>
    %1020 = arith.divf %1018, %1019 : vector<8x128xf32>
    %1021 = math.tanh %1010 : vector<8x128xf32>
    %1022 = vector.extract_strided_slice %1020 {offsets = [0, 0], sizes = [8, 32], strides = [1, 1]} : vector<8x128xf32> to vector<8x32xf32>
    %1023 = vector.extract_strided_slice %1020 {offsets = [0, 32], sizes = [8, 32], strides = [1, 1]} : vector<8x128xf32> to vector<8x32xf32>
    %1024 = vector.extract_strided_slice %1020 {offsets = [0, 96], sizes = [8, 32], strides = [1, 1]} : vector<8x128xf32> to vector<8x32xf32>
    %1025 = vector.extract_strided_slice %1021 {offsets = [0, 64], sizes = [8, 32], strides = [1, 1]} : vector<8x128xf32> to vector<8x32xf32>
    %1026 = arith.mulf %1023, %973 : vector<8x32xf32>
    %1027 = arith.mulf %1022, %1025 : vector<8x32xf32>
    %1028 = arith.addf %1026, %1027 : vector<8x32xf32>
    %1029 = math.tanh %1028 : vector<8x32xf32>
    %1030 = arith.mulf %1024, %1029 : vector<8x32xf32>
    %1031 = vector.broadcast %1015 : i32 to vector<8x1xi32>
    %1032 = arith.cmpi slt, %1031, %3 : vector<8x1xi32>
    %1033 = vector.shape_cast %1032 : vector<8x1xi1> to vector<8x1xi1>
    %1034 = vector.broadcast %1033 : vector<8x1xi1> to vector<8x32xi1>
    %1035 = arith.select %1034, %1030, %970 : vector<8x32xi1>, vector<8x32xf32>
    %1036 = vector.shape_cast %1032 : vector<8x1xi1> to vector<8x1xi1>
    %1037 = vector.broadcast %1036 : vector<8x1xi1> to vector<8x32xi1>
    %1038 = arith.select %1037, %1028, %973 : vector<8x32xi1>, vector<8x32xf32>
    %1039 = arith.addi %22, %1002 : i32
    %1040 = arith.negf %1014 : vector<8x128xf32>
    %1041 = math.exp %1040 : vector<8x128xf32>
    %cst_207 = arith.constant 1.000000e+00 : f32
    %1042 = vector.broadcast %cst_207 : f32 to vector<8x128xf32>
    %1043 = arith.addf %1042, %1041 : vector<8x128xf32>
    %1044 = arith.divf %1042, %1043 : vector<8x128xf32>
    %1045 = math.tanh %1014 : vector<8x128xf32>
    %1046 = vector.extract_strided_slice %1044 {offsets = [0, 0], sizes = [8, 32], strides = [1, 1]} : vector<8x128xf32> to vector<8x32xf32>
    %1047 = vector.extract_strided_slice %1044 {offsets = [0, 32], sizes = [8, 32], strides = [1, 1]} : vector<8x128xf32> to vector<8x32xf32>
    %1048 = vector.extract_strided_slice %1044 {offsets = [0, 96], sizes = [8, 32], strides = [1, 1]} : vector<8x128xf32> to vector<8x32xf32>
    %1049 = vector.extract_strided_slice %1045 {offsets = [0, 64], sizes = [8, 32], strides = [1, 1]} : vector<8x128xf32> to vector<8x32xf32>
    %1050 = arith.mulf %1047, %997 : vector<8x32xf32>
    %1051 = arith.mulf %1046, %1049 : vector<8x32xf32>
    %1052 = arith.addf %1050, %1051 : vector<8x32xf32>
    %1053 = math.tanh %1052 : vector<8x32xf32>
    %1054 = arith.mulf %1048, %1053 : vector<8x32xf32>
    %1055 = vector.broadcast %1039 : i32 to vector<8x1xi32>
    %1056 = arith.cmpi slt, %1055, %3 : vector<8x1xi32>
    %1057 = vector.shape_cast %1056 : vector<8x1xi1> to vector<8x1xi1>
    %1058 = vector.broadcast %1057 : vector<8x1xi1> to vector<8x32xi1>
    %1059 = arith.select %1058, %1054, %994 : vector<8x32xi1>, vector<8x32xf32>
    %1060 = vector.shape_cast %1056 : vector<8x1xi1> to vector<8x1xi1>
    %1061 = vector.broadcast %1060 : vector<8x1xi1> to vector<8x32xi1>
    %1062 = arith.select %1061, %1052, %997 : vector<8x32xi1>, vector<8x32xf32>
    %1063 = arith.index_cast %1004 : i32 to index
    %c0_208 = arith.constant 0 : index
    %1064 = vector.load %arg10[%1063, %c0_208] : memref<128x32xf32, #tpu.memory_space<vmem>>, vector<8x32xf32>
    tpu.vector_store %arg10[%1063, %c0_208], %1035 {strides = array<i32>} : memref<128x32xf32, #tpu.memory_space<vmem>>, vector<8x32xf32>,
    %1065 = arith.index_cast %1006 : i32 to index
    %c0_209 = arith.constant 0 : index
    %1066 = vector.load %arg11[%1065, %c0_209] : memref<128x32xf32, #tpu.memory_space<vmem>>, vector<8x32xf32>
    tpu.vector_store %arg11[%1065, %c0_209], %1059 {strides = array<i32>} : memref<128x32xf32, #tpu.memory_space<vmem>>, vector<8x32xf32>,
    %c16_i32_210 = arith.constant 16 : i32
    %c0_211 = arith.constant 0 : index
    %c0_212 = arith.constant 0 : index
    %1067 = vector.load %arg16[%c0_211, %c0_212] : memref<8x32xf32, #tpu.memory_space<vmem>>, vector<8x32xf32>
    tpu.vector_store %arg16[%c0_211, %c0_212], %1035 {strides = array<i32>} : memref<8x32xf32, #tpu.memory_space<vmem>>, vector<8x32xf32>,
    %c0_213 = arith.constant 0 : index
    %c0_214 = arith.constant 0 : index
    %1068 = vector.load %arg17[%c0_213, %c0_214] : memref<8x32xf32, #tpu.memory_space<vmem>>, vector<8x32xf32>
    tpu.vector_store %arg17[%c0_213, %c0_214], %1038 {strides = array<i32>} : memref<8x32xf32, #tpu.memory_space<vmem>>, vector<8x32xf32>,
    %c0_215 = arith.constant 0 : index
    %c0_216 = arith.constant 0 : index
    %1069 = vector.load %arg18[%c0_215, %c0_216] : memref<8x32xf32, #tpu.memory_space<vmem>>, vector<8x32xf32>
    tpu.vector_store %arg18[%c0_215, %c0_216], %1059 {strides = array<i32>} : memref<8x32xf32, #tpu.memory_space<vmem>>, vector<8x32xf32>,
    %c0_217 = arith.constant 0 : index
    %c0_218 = arith.constant 0 : index
    %1070 = vector.load %arg19[%c0_217, %c0_218] : memref<8x32xf32, #tpu.memory_space<vmem>>, vector<8x32xf32>
    tpu.vector_store %arg19[%c0_217, %c0_218], %1062 {strides = array<i32>} : memref<8x32xf32, #tpu.memory_space<vmem>>, vector<8x32xf32>,
    %c1_i32_219 = arith.constant 1 : i32
    %1071 = arith.cmpi eq, %arg0, %c1_i32_219 : i32
    %1072 = arith.extui %1071 : i1 to i32
    %c0_i32_220 = arith.constant 0 : i32
    %1073 = arith.cmpi ne, %1072, %c0_i32_220 : i32
    scf.if %1073 {
      %c0_221 = arith.constant 0 : index
      %c0_222 = arith.constant 0 : index
      %1074 = vector.load %arg12[%c0_221, %c0_222] : memref<8x32xf32, #tpu.memory_space<vmem>>, vector<8x32xf32>
      tpu.vector_store %arg12[%c0_221, %c0_222], %1035 {strides = array<i32>} : memref<8x32xf32, #tpu.memory_space<vmem>>, vector<8x32xf32>,
      %c0_223 = arith.constant 0 : index
      %c0_224 = arith.constant 0 : index
      %1075 = vector.load %arg13[%c0_223, %c0_224] : memref<8x32xf32, #tpu.memory_space<vmem>>, vector<8x32xf32>
      tpu.vector_store %arg13[%c0_223, %c0_224], %1059 {strides = array<i32>} : memref<8x32xf32, #tpu.memory_space<vmem>>, vector<8x32xf32>,
    } else {
    }
    return
  }
  func.func @transform_0(%arg0: i32) -> (i32, i32) {
    %c0_i32 = arith.constant 0 : i32
    %c0_i32_0 = arith.constant 0 : i32
    %c0_i32_1 = arith.constant 0 : i32
    return %c0_i32, %c0_i32_0 : i32, i32
  }
  func.func @transform_1(%arg0: i32) -> (i32, i32) {
    %c0_i32 = arith.constant 0 : i32
    %c0_i32_0 = arith.constant 0 : i32
    return %arg0, %c0_i32 : i32, i32
  }
  func.func @transform_2(%arg0: i32) -> (i32, i32) {
    %c1_i32 = arith.constant 1 : i32
    %0 = arith.subi %c1_i32, %arg0 : i32
    %c0_i32 = arith.constant 0 : i32
    %c0_i32_0 = arith.constant 0 : i32
    return %0, %c0_i32 : i32, i32
  }
  func.func @transform_3(%arg0: i32) -> (i32, i32) {
    %c0_i32 = arith.constant 0 : i32
    %c0_i32_0 = arith.constant 0 : i32
    %c0_i32_1 = arith.constant 0 : i32
    return %c0_i32, %c0_i32_0 : i32, i32
  }
  func.func @transform_4(%arg0: i32) -> (i32, i32) {
    %c0_i32 = arith.constant 0 : i32
    %c0_i32_0 = arith.constant 0 : i32
    %c0_i32_1 = arith.constant 0 : i32
    return %c0_i32, %c0_i32_0 : i32, i32
  }
  func.func @transform_5(%arg0: i32) -> (i32, i32) {
    %c0_i32 = arith.constant 0 : i32
    %c0_i32_0 = arith.constant 0 : i32
    %c0_i32_1 = arith.constant 0 : i32
    return %c0_i32, %c0_i32_0 : i32, i32
  }
  func.func @transform_6(%arg0: i32) -> (i32, i32) {
    %c0_i32 = arith.constant 0 : i32
    %c0_i32_0 = arith.constant 0 : i32
    %c0_i32_1 = arith.constant 0 : i32
    return %c0_i32, %c0_i32_0 : i32, i32
  }
  func.func @transform_7(%arg0: i32) -> (i32, i32) {
    %c0_i32 = arith.constant 0 : i32
    %c0_i32_0 = arith.constant 0 : i32
    %c0_i32_1 = arith.constant 0 : i32
    return %c0_i32, %c0_i32_0 : i32, i32
  }
  func.func @transform_8(%arg0: i32) -> (i32, i32) {
    %c0_i32 = arith.constant 0 : i32
    %c0_i32_0 = arith.constant 0 : i32
    %c0_i32_1 = arith.constant 0 : i32
    return %c0_i32, %c0_i32_0 : i32, i32
  }
  func.func @transform_9(%arg0: i32) -> (i32, i32) {
    %c0_i32 = arith.constant 0 : i32
    %c0_i32_0 = arith.constant 0 : i32
    return %arg0, %c0_i32 : i32, i32
  }
  func.func @transform_10(%arg0: i32) -> (i32, i32) {
    %c1_i32 = arith.constant 1 : i32
    %0 = arith.subi %c1_i32, %arg0 : i32
    %c0_i32 = arith.constant 0 : i32
    %c0_i32_0 = arith.constant 0 : i32
    return %0, %c0_i32 : i32, i32
  }
  func.func @transform_11(%arg0: i32) -> (i32, i32) {
    %c0_i32 = arith.constant 0 : i32
    %c0_i32_0 = arith.constant 0 : i32
    %c0_i32_1 = arith.constant 0 : i32
    return %c0_i32, %c0_i32_0 : i32, i32
  }
  func.func @transform_12(%arg0: i32) -> (i32, i32) {
    %c0_i32 = arith.constant 0 : i32
    %c0_i32_0 = arith.constant 0 : i32
    %c0_i32_1 = arith.constant 0 : i32
    return %c0_i32, %c0_i32_0 : i32, i32
  }
}

</mosaic_0001>

<llo_original>
// kernel: tpu_custom_call.1
$region0: #{tpu_custom_call.1}
  #allocation0 [shape = 'u32[]', space=smem, size = 0x4, offset = 0x4, fixed_abs, tag = 'smem constant byte address 0x4 - core index']
  #allocation1 [shape = 'u32[72,128]{1,0:T(1,128)}', space=vmem, size = 0x9000, scoped, tag = 'internal scratch']
  #allocation2 [shape = 'f32[128,128]{1,0:T(8,128)}', space=vmem, size = 0x10000, scoped, tag = 'scratch operand']
  #allocation3 [shape = 'f32[128,128]{1,0:T(8,128)}', space=vmem, size = 0x10000, scoped, tag = 'scratch operand']
  #allocation4 [shape = 'f32[8,32]{1,0:T(8,128)}', space=vmem, size = 0x1000, scoped, tag = 'scratch operand']
  #allocation5 [shape = 'f32[8,32]{1,0:T(8,128)}', space=vmem, size = 0x1000, scoped, tag = 'scratch operand']
  #allocation6 [shape = 'f32[8,32]{1,0:T(8,128)}', space=vmem, size = 0x1000, scoped, tag = 'scratch operand']
  #allocation7 [shape = 'f32[8,32]{1,0:T(8,128)}', space=vmem, size = 0x1000, scoped, tag = 'scratch operand']
  %s0 = inlined_call_operand.vmem [shape: s32[8,1], index: 0, kind: input, shape index: {}]
  %s1 = inlined_call_operand.vmem [shape: f32[256,16], index: 1, kind: input, shape index: {}]
  %s2 = inlined_call_operand.vmem [shape: f32[256,16], index: 2, kind: input, shape index: {}]
  %s3 = inlined_call_operand.vmem [shape: f32[16,128], index: 3, kind: input, shape index: {}]
  %s4 = inlined_call_operand.vmem [shape: f32[16,128], index: 4, kind: input, shape index: {}]
  %s5 = inlined_call_operand.vmem [shape: f32[1,128], index: 5, kind: input, shape index: {}]
  %s6 = inlined_call_operand.vmem [shape: f32[1,128], index: 6, kind: input, shape index: {}]
  %s7 = inlined_call_operand.vmem [shape: f32[32,128], index: 7, kind: input, shape index: {}]
  %s8 = inlined_call_operand.vmem [shape: f32[32,128], index: 8, kind: input, shape index: {}]
  %s9 = inlined_call_operand.vmem [shape: f32[256,32], index: 9, kind: output, shape index: {0}]
  %s10 = inlined_call_operand.vmem [shape: f32[256,32], index: 10, kind: output, shape index: {1}]
  %s11 = inlined_call_operand.hbm [shape: f32[8,32], index: 11, kind: output, shape index: {2}]
  %s12 = inlined_call_operand.hbm [shape: f32[8,32], index: 12, kind: output, shape index: {3}]
  %13 = xla_tuple %s9, %s10, %s11, %s12
  %s14 = sld [smem:[#allocation0]]
  $region101: #{tpu_custom_call.1} parent=0
    _
  %s16 = ssub.s32 1, %s14
  %s17 = scalar_select 0, %s16, %s14
  $region1: #{tpu_custom_call.1} parent=0
    #allocation8 [shape = 'u8[4096]{0}', space=vmem, size = 0x1000, scoped, tag = 'output window, operand 2, single buffered']
    #allocation9 [shape = 's32[2]{0}', space=sflag, size = 0x8, scoped, tag = 'scoped memory for tpu_custom_call.1']
    #allocation10 [shape = 'u8[4096]{0}', space=vmem, size = 0x1000, scoped, tag = 'output window, operand 3, single buffered']
    #allocation11 [shape = 's32[1]{0}', space=sflag, size = 0x4, scoped, tag = 'scoped memory for tpu_custom_call.1']
    %18 = vsyncpa [#allocation9], 0
    %19 = vsyncpa [#allocation11], 0
    loop: start=0, step=1, limit=4
    $region2: #{tpu_custom_call.1} parent=1 // loop_pre_header
      _
    $region3: #{tpu_custom_call.1} parent=1 // loop_header
      %s21 = sphi 0, %s25
      %p22 = scmp.ge.s32.totalorder %s21, 4
      %s29 = sphi 0, %s29
      %s31 = sphi 0, %s29
      %s32 = sphi 0, %s31
      %s46 = sphi 0, %s32
      %s52 = sphi 0, %s54
      %s55 = sphi 0, %s52
      %s56 = sphi 0, %s55
      %s72 = sphi 0, %s56
      %s80 = sphi 0, %s82
      %s83 = sphi 0, %s80
      %s84 = sphi 0, %s83
      %s100 = sphi 0, %s84
      %s104 = sphi 0, %s104
      %s106 = sphi 0, %s104
      %s107 = sphi 0, %s106
      %s121 = sphi 0, %s107
      %s125 = sphi 0, %s125
      %s127 = sphi 0, %s125
      %s128 = sphi 0, %s127
      %s142 = sphi 0, %s128
      %s146 = sphi 0, %s146
      %s148 = sphi 0, %s146
      %s149 = sphi 0, %s148
      %s163 = sphi 0, %s149
      %s167 = sphi 0, %s167
      %s169 = sphi 0, %s167
      %s170 = sphi 0, %s169
      %s184 = sphi 0, %s170
      %s188 = sphi 0, %s188
      %s190 = sphi 0, %s188
      %s191 = sphi 0, %s190
      %s205 = sphi 0, %s191
      %s209 = sphi 0, %s209
      %s211 = sphi 0, %s209
      %s212 = sphi 0, %s211
      %s226 = sphi 0, %s212
      %s232 = sphi 0, %s234
      %s235 = sphi 0, %s232
      %s236 = sphi 0, %s235
      %s252 = sphi 0, %s236
      %s260 = sphi 0, %s262
      %s263 = sphi 0, %s260
      %s264 = sphi 0, %s263
      %s280 = sphi 0, %s264
      %s284 = sphi 0, %s284
      %s286 = sphi 0, %s284
      %s287 = sphi 0, %s286
      %s301 = sphi 0, %s287
      %s305 = sphi 0, %s305
      %s307 = sphi 0, %s305
      %s308 = sphi 0, %s307
      %s322 = sphi 0, %s308
    $region4: #{tpu_custom_call.1} parent=1 // loop_header_branch
      %24 = sbr.rel (%p22) target = $region8
    $region5: #{tpu_custom_call.1} parent=1 // loop_body
      %s26 = ssub.s32 %s21, 1
      %s27 = ssub.s32 %s21, 2
      %s28 = sadd.s32 %s21, 1
      %s30 = sadd.s32 %s29, 1
      %p33 = scmp.eq.s32.totalorder %s21, 1
      %p34 = scmp.ne.s32.totalorder %s29, %s31
      %p35 = scmp.eq.s32.totalorder %s21, 0
      %p36 = por %p34, %p35
      %p37 = scmp.ne.s32.totalorder %s29, %s31
      %p38 = scmp.eq.s32.totalorder %s26, 1
      %p39 = por %p37, %p38
      %p40 = scmp.ne.s32.totalorder %s31, %s32
      %p41 = scmp.eq.s32.totalorder %s26, 0
      %p42 = por %p40, %p41
      %p43 = scmp.ne.s32.totalorder %s31, %s32
      %p44 = scmp.eq.s32.totalorder %s27, 1
      %p45 = por %p43, %p44
      %p47 = scmp.ne.s32.totalorder %s32, %s46
      %p48 = scmp.eq.s32.totalorder %s27, 0
      %p49 = por %p47, %p48
      %s50 = ssub.s32 %s21, %s28
      %p51 = scmp.eq.s32.totalorder %s50, 0
      %s53 = sadd.s32 %s52, 1
      %s54 = scalar_select %p51, %s52, %s53
      %p57 = pneg %p51
      %p58 = scmp.eq.s32.totalorder %s21, 1
      %p59 = por %p57, %p58
      %p60 = scmp.ne.s32.totalorder %s52, %s55
      %p61 = scmp.eq.s32.totalorder %s21, 0
      %p62 = por %p60, %p61
      %p63 = scmp.ne.s32.totalorder %s52, %s55
      %p64 = scmp.eq.s32.totalorder %s26, 1
      %p65 = por %p63, %p64
      %p66 = scmp.ne.s32.totalorder %s55, %s56
      %p67 = scmp.eq.s32.totalorder %s26, 0
      %p68 = por %p66, %p67
      %p69 = scmp.ne.s32.totalorder %s55, %s56
      %p70 = scmp.eq.s32.totalorder %s27, 1
      %p71 = por %p69, %p70
      %p73 = scmp.ne.s32.totalorder %s56, %s72
      %p74 = scmp.eq.s32.totalorder %s27, 0
      %p75 = por %p73, %p74
      %s76 = ssub.s32 1, %s21
      %s77 = ssub.s32 1, %s28
      %s78 = ssub.s32 %s76, %s77
      %p79 = scmp.eq.s32.totalorder %s78, 0
      %s81 = sadd.s32 %s80, 1
      %s82 = scalar_select %p79, %s80, %s81
      %p85 = pneg %p79
      %p86 = scmp.eq.s32.totalorder %s21, 1
      %p87 = por %p85, %p86
      %p88 = scmp.ne.s32.totalorder %s80, %s83
      %p89 = scmp.eq.s32.totalorder %s21, 0
      %p90 = por %p88, %p89
      %p91 = scmp.ne.s32.totalorder %s80, %s83
      %p92 = scmp.eq.s32.totalorder %s26, 1
      %p93 = por %p91, %p92
      %p94 = scmp.ne.s32.totalorder %s83, %s84
      %p95 = scmp.eq.s32.totalorder %s26, 0
      %p96 = por %p94, %p95
      %p97 = scmp.ne.s32.totalorder %s83, %s84
      %p98 = scmp.eq.s32.totalorder %s27, 1
      %p99 = por %p97, %p98
      %p101 = scmp.ne.s32.totalorder %s84, %s100
      %p102 = scmp.eq.s32.totalorder %s27, 0
      %p103 = por %p101, %p102
      %s105 = sadd.s32 %s104, 1
      %p108 = scmp.eq.s32.totalorder %s21, 1
      %p109 = scmp.ne.s32.totalorder %s104, %s106
      %p110 = scmp.eq.s32.totalorder %s21, 0
      %p111 = por %p109, %p110
      %p112 = scmp.ne.s32.totalorder %s104, %s106
      %p113 = scmp.eq.s32.totalorder %s26, 1
      %p114 = por %p112, %p113
      %p115 = scmp.ne.s32.totalorder %s106, %s107
      %p116 = scmp.eq.s32.totalorder %s26, 0
      %p117 = por %p115, %p116
      %p118 = scmp.ne.s32.totalorder %s106, %s107
      %p119 = scmp.eq.s32.totalorder %s27, 1
      %p120 = por %p118, %p119
      %p122 = scmp.ne.s32.totalorder %s107, %s121
      %p123 = scmp.eq.s32.totalorder %s27, 0
      %p124 = por %p122, %p123
      %s126 = sadd.s32 %s125, 1
      %p129 = scmp.eq.s32.totalorder %s21, 1
      %p130 = scmp.ne.s32.totalorder %s125, %s127
      %p131 = scmp.eq.s32.totalorder %s21, 0
      %p132 = por %p130, %p131
      %p133 = scmp.ne.s32.totalorder %s125, %s127
      %p134 = scmp.eq.s32.totalorder %s26, 1
      %p135 = por %p133, %p134
      %p136 = scmp.ne.s32.totalorder %s127, %s128
      %p137 = scmp.eq.s32.totalorder %s26, 0
      %p138 = por %p136, %p137
      %p139 = scmp.ne.s32.totalorder %s127, %s128
      %p140 = scmp.eq.s32.totalorder %s27, 1
      %p141 = por %p139, %p140
      %p143 = scmp.ne.s32.totalorder %s128, %s142
      %p144 = scmp.eq.s32.totalorder %s27, 0
      %p145 = por %p143, %p144
      %s147 = sadd.s32 %s146, 1
      %p150 = scmp.eq.s32.totalorder %s21, 1
      %p151 = scmp.ne.s32.totalorder %s146, %s148
      %p152 = scmp.eq.s32.totalorder %s21, 0
      %p153 = por %p151, %p152
      %p154 = scmp.ne.s32.totalorder %s146, %s148
      %p155 = scmp.eq.s32.totalorder %s26, 1
      %p156 = por %p154, %p155
      %p157 = scmp.ne.s32.totalorder %s148, %s149
      %p158 = scmp.eq.s32.totalorder %s26, 0
      %p159 = por %p157, %p158
      %p160 = scmp.ne.s32.totalorder %s148, %s149
      %p161 = scmp.eq.s32.totalorder %s27, 1
      %p162 = por %p160, %p161
      %p164 = scmp.ne.s32.totalorder %s149, %s163
      %p165 = scmp.eq.s32.totalorder %s27, 0
      %p166 = por %p164, %p165
      %s168 = sadd.s32 %s167, 1
      %p171 = scmp.eq.s32.totalorder %s21, 1
      %p172 = scmp.ne.s32.totalorder %s167, %s169
      %p173 = scmp.eq.s32.totalorder %s21, 0
      %p174 = por %p172, %p173
      %p175 = scmp.ne.s32.totalorder %s167, %s169
      %p176 = scmp.eq.s32.totalorder %s26, 1
      %p177 = por %p175, %p176
      %p178 = scmp.ne.s32.totalorder %s169, %s170
      %p179 = scmp.eq.s32.totalorder %s26, 0
      %p180 = por %p178, %p179
      %p181 = scmp.ne.s32.totalorder %s169, %s170
      %p182 = scmp.eq.s32.totalorder %s27, 1
      %p183 = por %p181, %p182
      %p185 = scmp.ne.s32.totalorder %s170, %s184
      %p186 = scmp.eq.s32.totalorder %s27, 0
      %p187 = por %p185, %p186
      %s189 = sadd.s32 %s188, 1
      %p192 = scmp.eq.s32.totalorder %s21, 1
      %p193 = scmp.ne.s32.totalorder %s188, %s190
      %p194 = scmp.eq.s32.totalorder %s21, 0
      %p195 = por %p193, %p194
      %p196 = scmp.ne.s32.totalorder %s188, %s190
      %p197 = scmp.eq.s32.totalorder %s26, 1
      %p198 = por %p196, %p197
      %p199 = scmp.ne.s32.totalorder %s190, %s191
      %p200 = scmp.eq.s32.totalorder %s26, 0
      %p201 = por %p199, %p200
      %p202 = scmp.ne.s32.totalorder %s190, %s191
      %p203 = scmp.eq.s32.totalorder %s27, 1
      %p204 = por %p202, %p203
      %p206 = scmp.ne.s32.totalorder %s191, %s205
      %p207 = scmp.eq.s32.totalorder %s27, 0
      %p208 = por %p206, %p207
      %s210 = sadd.s32 %s209, 1
      %p213 = scmp.eq.s32.totalorder %s21, 1
      %p214 = scmp.ne.s32.totalorder %s209, %s211
      %p215 = scmp.eq.s32.totalorder %s21, 0
      %p216 = por %p214, %p215
      %p217 = scmp.ne.s32.totalorder %s209, %s211
      %p218 = scmp.eq.s32.totalorder %s26, 1
      %p219 = por %p217, %p218
      %p220 = scmp.ne.s32.totalorder %s211, %s212
      %p221 = scmp.eq.s32.totalorder %s26, 0
      %p222 = por %p220, %p221
      %p223 = scmp.ne.s32.totalorder %s211, %s212
      %p224 = scmp.eq.s32.totalorder %s27, 1
      %p225 = por %p223, %p224
      %p227 = scmp.ne.s32.totalorder %s212, %s226
      %p228 = scmp.eq.s32.totalorder %s27, 0
      %p229 = por %p227, %p228
      %s230 = ssub.s32 %s21, %s28
      %p231 = scmp.eq.s32.totalorder %s230, 0
      %s233 = sadd.s32 %s232, 1
      %s234 = scalar_select %p231, %s232, %s233
      %p237 = pneg %p231
      %p238 = scmp.eq.s32.totalorder %s21, 1
      %p239 = por %p237, %p238
      %p240 = scmp.ne.s32.totalorder %s232, %s235
      %p241 = scmp.eq.s32.totalorder %s21, 0
      %p242 = por %p240, %p241
      %p243 = scmp.ne.s32.totalorder %s232, %s235
      %p244 = scmp.eq.s32.totalorder %s26, 1
      %p245 = por %p243, %p244
      %p246 = scmp.ne.s32.totalorder %s235, %s236
      %p247 = scmp.eq.s32.totalorder %s26, 0
      %p248 = por %p246, %p247
      %p249 = scmp.ne.s32.totalorder %s235, %s236
      %p250 = scmp.eq.s32.totalorder %s27, 1
      %p251 = por %p249, %p250
      %p253 = scmp.ne.s32.totalorder %s236, %s252
      %p254 = scmp.eq.s32.totalorder %s27, 0
      %p255 = por %p253, %p254
      %s256 = ssub.s32 1, %s21
      %s257 = ssub.s32 1, %s28
      %s258 = ssub.s32 %s256, %s257
      %p259 = scmp.eq.s32.totalorder %s258, 0
      %s261 = sadd.s32 %s260, 1
      %s262 = scalar_select %p259, %s260, %s261
      %p265 = pneg %p259
      %p266 = scmp.eq.s32.totalorder %s21, 1
      %p267 = por %p265, %p266
      %p268 = scmp.ne.s32.totalorder %s260, %s263
      %p269 = scmp.eq.s32.totalorder %s21, 0
      %p270 = por %p268, %p269
      %p271 = scmp.ne.s32.totalorder %s260, %s263
      %p272 = scmp.eq.s32.totalorder %s26, 1
      %p273 = por %p271, %p272
      %p274 = scmp.ne.s32.totalorder %s263, %s264
      %p275 = scmp.eq.s32.totalorder %s26, 0
      %p276 = por %p274, %p275
      %p277 = scmp.ne.s32.totalorder %s263, %s264
      %p278 = scmp.eq.s32.totalorder %s27, 1
      %p279 = por %p277, %p278
      %p281 = scmp.ne.s32.totalorder %s264, %s280
      %p282 = scmp.eq.s32.totalorder %s27, 0
      %p283 = por %p281, %p282
      %s285 = sadd.s32 %s284, 1
      %p288 = scmp.eq.s32.totalorder %s21, 1
      %p289 = scmp.ne.s32.totalorder %s284, %s286
      %p290 = scmp.eq.s32.totalorder %s21, 0
      %p291 = por %p289, %p290
      %p292 = scmp.ne.s32.totalorder %s284, %s286
      %p293 = scmp.eq.s32.totalorder %s26, 1
      %p294 = por %p292, %p293
      %p295 = scmp.ne.s32.totalorder %s286, %s287
      %p296 = scmp.eq.s32.totalorder %s26, 0
      %p297 = por %p295, %p296
      %p298 = scmp.ne.s32.totalorder %s286, %s287
      %p299 = scmp.eq.s32.totalorder %s27, 1
      %p300 = por %p298, %p299
      %p302 = scmp.ne.s32.totalorder %s287, %s301
      %p303 = scmp.eq.s32.totalorder %s27, 0
      %p304 = por %p302, %p303
      %s306 = sadd.s32 %s305, 1
      %p309 = scmp.eq.s32.totalorder %s21, 1
      %p310 = scmp.ne.s32.totalorder %s305, %s307
      %p311 = scmp.eq.s32.totalorder %s21, 0
      %p312 = por %p310, %p311
      %p313 = scmp.ne.s32.totalorder %s305, %s307
      %p314 = scmp.eq.s32.totalorder %s26, 1
      %p315 = por %p313, %p314
      %p316 = scmp.ne.s32.totalorder %s307, %s308
      %p317 = scmp.eq.s32.totalorder %s26, 0
      %p318 = por %p316, %p317
      %p319 = scmp.ne.s32.totalorder %s307, %s308
      %p320 = scmp.eq.s32.totalorder %s27, 1
      %p321 = por %p319, %p320
      %p323 = scmp.ne.s32.totalorder %s308, %s322
      %p324 = scmp.eq.s32.totalorder %s27, 0
      %p325 = por %p323, %p324
      %p326 = scmp.le.s32.totalorder 1, %s21
      %p327 = scmp.lt.s32.totalorder %s21, 3
      %p328 = pnand %p326, %p327
      %p329 = pneg %p328
      // Predicated region
      $region9: #{tpu_custom_call.1} parent=5 // pred_check
        _
      $region10: #{tpu_custom_call.1} parent=5 // pred_check_branch
        %331 = sbr.rel (%p328) target = $region12
      $region11: #{tpu_custom_call.1} parent=5 // pred_region
        %s332 = ssub.s32 %s21, 1
        // Predicated region
        $region13: #{tpu_custom_call.1} parent=11 // pred_check
          %p333 = pneg %p42
        $region14: #{tpu_custom_call.1} parent=11 // pred_check_branch
          %335 = sbr.rel (%p333) target = $region16
        $region15: #{tpu_custom_call.1} parent=11 // pred_region
          _
        $region16: #{tpu_custom_call.1} parent=11 // pred_fallthru
          _
        // Predicated region
        $region17: #{tpu_custom_call.1} parent=11 // pred_check
          %p336 = pneg %p117
        $region18: #{tpu_custom_call.1} parent=11 // pred_check_branch
          %338 = sbr.rel (%p336) target = $region20
        $region19: #{tpu_custom_call.1} parent=11 // pred_region
          _
        $region20: #{tpu_custom_call.1} parent=11 // pred_fallthru
          _
        // Predicated region
        $region21: #{tpu_custom_call.1} parent=11 // pred_check
          %p339 = pneg %p138
        $region22: #{tpu_custom_call.1} parent=11 // pred_check_branch
          %341 = sbr.rel (%p339) target = $region24
        $region23: #{tpu_custom_call.1} parent=11 // pred_region
          _
        $region24: #{tpu_custom_call.1} parent=11 // pred_fallthru
          _
        // Predicated region
        $region25: #{tpu_custom_call.1} parent=11 // pred_check
          %p342 = pneg %p159
        $region26: #{tpu_custom_call.1} parent=11 // pred_check_branch
          %344 = sbr.rel (%p342) target = $region28
        $region27: #{tpu_custom_call.1} parent=11 // pred_region
          _
        $region28: #{tpu_custom_call.1} parent=11 // pred_fallthru
          _
        // Predicated region
        $region29: #{tpu_custom_call.1} parent=11 // pred_check
          %p345 = pneg %p180
        $region30: #{tpu_custom_call.1} parent=11 // pred_check_branch
          %347 = sbr.rel (%p345) target = $region32
        $region31: #{tpu_custom_call.1} parent=11 // pred_region
          _
        $region32: #{tpu_custom_call.1} parent=11 // pred_fallthru
          _
        // Predicated region
        $region33: #{tpu_custom_call.1} parent=11 // pred_check
          %p348 = pneg %p201
        $region34: #{tpu_custom_call.1} parent=11 // pred_check_branch
          %350 = sbr.rel (%p348) target = $region36
        $region35: #{tpu_custom_call.1} parent=11 // pred_region
          _
        $region36: #{tpu_custom_call.1} parent=11 // pred_fallthru
          _
        // Predicated region
        $region37: #{tpu_custom_call.1} parent=11 // pred_check
          %p351 = pneg %p222
        $region38: #{tpu_custom_call.1} parent=11 // pred_check_branch
          %353 = sbr.rel (%p351) target = $region40
        $region39: #{tpu_custom_call.1} parent=11 // pred_region
          _
        $region40: #{tpu_custom_call.1} parent=11 // pred_fallthru
          _
      $region12: #{tpu_custom_call.1} parent=5 // pred_fallthru
        _
      %p354 = scmp.lt.s32.totalorder %s21, 2
      // Predicated region
      $region41: #{tpu_custom_call.1} parent=5 // pred_check
        %p355 = pneg %p354
      $region42: #{tpu_custom_call.1} parent=5 // pred_check_branch
        %357 = sbr.rel (%p355) target = $region44
      $region43: #{tpu_custom_call.1} parent=5 // pred_region
        // Predicated region
        $region45: #{tpu_custom_call.1} parent=43 // pred_check
          %p358 = pneg %p62
        $region46: #{tpu_custom_call.1} parent=43 // pred_check_branch
          %360 = sbr.rel (%p358) target = $region48
        $region47: #{tpu_custom_call.1} parent=43 // pred_region
          %s361 = smul.u32 16, %s21
          %p362 = scmp.lt.s32.totalorder %s361, 31
          %s363 = scalar_select %p362, %s361, 31
          %s364 = smul.addr %s363, 8
          %s365 = scalar_lea.vmem %s1, %s364
          %s366 = smul.u32 16, %s21
        $region48: #{tpu_custom_call.1} parent=43 // pred_fallthru
          _
        // Predicated region
        $region49: #{tpu_custom_call.1} parent=43 // pred_check
          %p367 = pneg %p90
        $region50: #{tpu_custom_call.1} parent=43 // pred_check_branch
          %369 = sbr.rel (%p367) target = $region52
        $region51: #{tpu_custom_call.1} parent=43 // pred_region
          %s370 = ssub.s32 1, %s21
          %s371 = smul.u32 16, %s370
          %p372 = scmp.lt.s32.totalorder %s371, 31
          %s373 = scalar_select %p372, %s371, 31
          %s374 = smul.addr %s373, 8
          %s375 = scalar_lea.vmem %s2, %s374
          %s376 = ssub.s32 1, %s21
          %s377 = smul.u32 16, %s376
        $region52: #{tpu_custom_call.1} parent=43 // pred_fallthru
          _
      $region44: #{tpu_custom_call.1} parent=5 // pred_fallthru
        _
      %p378 = scmp.le.s32.totalorder 1, %s21
      %p379 = scmp.lt.s32.totalorder %s21, 3
      %p380 = pnand %p378, %p379
      %p381 = pneg %p380
      // Predicated region
      $region53: #{tpu_custom_call.1} parent=5 // pred_check
        _
      $region54: #{tpu_custom_call.1} parent=5 // pred_check_branch
        %383 = sbr.rel (%p380) target = $region56
      $region55: #{tpu_custom_call.1} parent=5 // pred_region
        %s384 = ssub.s32 %s21, 1
        %p385 = pneg %p42
        %p386 = pneg %p39
        %s387 = smul.u32 16, %s26
        %p388 = scmp.lt.s32.totalorder %s387, 31
        %s389 = scalar_select %p388, %s387, 31
        %s390 = smul.addr %s389, 8
        %s391 = scalar_lea.vmem %s1, %s390
        %p392 = pneg %p68
        %p393 = pneg %p65
        %s394 = ssub.s32 1, %s26
        %s395 = smul.u32 16, %s394
        %p396 = scmp.lt.s32.totalorder %s395, 31
        %s397 = scalar_select %p396, %s395, 31
        %s398 = smul.addr %s397, 8
        %s399 = scalar_lea.vmem %s2, %s398
        %p400 = pneg %p96
        %p401 = pneg %p93
        %p402 = pneg %p117
        %p403 = pneg %p114
        %p404 = pneg %p138
        %p405 = pneg %p135
        %p406 = pneg %p159
        %p407 = pneg %p156
        %p408 = pneg %p180
        %p409 = pneg %p177
        %p410 = pneg %p201
        %p411 = pneg %p198
        %p412 = pneg %p222
        %p413 = pneg %p219
        %p414 = pneg %p248
        %p415 = pneg %p245
        %s416 = smul.u32 16, %s26
        %p417 = scmp.lt.s32.totalorder %s416, 31
        %s418 = scalar_select %p417, %s416, 31
        %s419 = smul.addr %s418, 8
        %s420 = scalar_lea.vmem %s9, %s419
        %p421 = pneg %p276
        %p422 = pneg %p273
        %s423 = ssub.s32 1, %s26
        %s424 = smul.u32 16, %s423
        %p425 = scmp.lt.s32.totalorder %s424, 31
        %s426 = scalar_select %p425, %s424, 31
        %s427 = smul.addr %s426, 8
        %s428 = scalar_lea.vmem %s10, %s427
        %p429 = pneg %p297
        %p430 = pneg %p294
        %p431 = pneg %p318
        %p432 = pneg %p315
        %s433 = smul.u32 16, %s26
        %p434 = scmp.lt.s32.totalorder %s433, 31
        %s435 = scalar_select %p434, %s433, 31
        %s436 = smul.addr %s435, 8
        %s437 = scalar_lea.vmem %s1, %s436
        %s438 = smul.u32 16, %s26
        %s439 = ssub.s32 1, %s26
        %s440 = smul.u32 16, %s439
        %p441 = scmp.lt.s32.totalorder %s440, 31
        %s442 = scalar_select %p441, %s440, 31
        %s443 = smul.addr %s442, 8
        %s444 = scalar_lea.vmem %s2, %s443
        %s445 = ssub.s32 1, %s26
        %s446 = smul.u32 16, %s445
        %s447 = smul.u32 16, %s26
        %p448 = scmp.lt.s32.totalorder %s447, 31
        %s449 = scalar_select %p448, %s447, 31
        %s450 = smul.addr %s449, 8
        %s451 = scalar_lea.vmem %s9, %s450
        %s452 = smul.u32 16, %s26
        %s453 = ssub.s32 1, %s26
        %s454 = smul.u32 16, %s453
        %p455 = scmp.lt.s32.totalorder %s454, 31
        %s456 = scalar_select %p455, %s454, 31
        %s457 = smul.addr %s456, 8
        %s458 = scalar_lea.vmem %s10, %s457
        %s459 = ssub.s32 1, %s26
        %s460 = smul.u32 16, %s459
        %p461 = scmp.eq.s32.totalorder %s26, 0
        // Predicated region
        $region57: #{tpu_custom_call.1} parent=55 // pred_check
          %p462 = pneg %p461
        $region58: #{tpu_custom_call.1} parent=55 // pred_check_branch
          %464 = sbr.rel (%p462) target = $region60
        $region59: #{tpu_custom_call.1} parent=55 // pred_region
          %vm465 = vcmask 261120
          %466 = vst.msk [vmem:[#allocation4] sm:$0xff] %vm465, 0.0
          %467 = vst.msk [vmem:[#allocation5] sm:$0xff] %vm465, 0.0
          %468 = vst.msk [vmem:[#allocation6] sm:$0xff] %vm465, 0.0
          %469 = vst.msk [vmem:[#allocation7] sm:$0xff] %vm465, 0.0
        $region60: #{tpu_custom_call.1} parent=55 // pred_fallthru
          _
        %v470 = vld [vmem:[%s0] sm:$0xff]
        %v471 = vld [vmem:[%s7] sm:$0xff]
        %v472 = vld [vmem:[%s7 + $0x8] sm:$0xff]
        %v473 = vld [vmem:[%s7 + $0x10] sm:$0xff]
        %v474 = vld [vmem:[%s7 + $0x18] sm:$0xff]
        %v475 = vld [vmem:[%s8] sm:$0xff]
        %v476 = vld [vmem:[%s8 + $0x8] sm:$0xff]
        %v477 = vld [vmem:[%s8 + $0x10] sm:$0xff]
        %v478 = vld [vmem:[%s8 + $0x18] sm:$0xff]
        %v479 = vld [vmem:[%s5] sm:$0x1]
        %v480 = vld [vmem:[%s6] sm:$0x1]
        %v481 = vld [vmem:[%s437] sm:$0xff]
        %v482 = vld [vmem:[%s437 + $0x8] sm:$0xff]
        %v483 = vld [vmem:[%s437 + $0x10] sm:$0xff]
        %v484 = vld [vmem:[%s437 + $0x18] sm:$0xff]
        %v485 = vld [vmem:[%s437 + $0x20] sm:$0xff]
        %v486 = vld [vmem:[%s437 + $0x28] sm:$0xff]
        %v487 = vld [vmem:[%s437 + $0x30] sm:$0xff]
        %v488 = vld [vmem:[%s437 + $0x38] sm:$0xff]
        %v489 = vld [vmem:[%s437 + $0x40] sm:$0xff]
        %v490 = vld [vmem:[%s437 + $0x48] sm:$0xff]
        %v491 = vld [vmem:[%s437 + $0x50] sm:$0xff]
        %v492 = vld [vmem:[%s437 + $0x58] sm:$0xff]
        %v493 = vld [vmem:[%s437 + $0x60] sm:$0xff]
        %v494 = vld [vmem:[%s437 + $0x68] sm:$0xff]
        %v495 = vld [vmem:[%s437 + $0x70] sm:$0xff]
        %v496 = vld [vmem:[%s437 + $0x78] sm:$0xff]
        %v497 = vld [vmem:[%s3] sm:$0xff]
        %v498 = vld [vmem:[%s3 + $0x8] sm:$0xff]
        %vm499 = vcmask 130048
        %v501 = vsel %vm499, %v481, 0
        %v504 = vsel %vm499, %v482, 0
        %v507 = vsel %vm499, %v483, 0
        %v510 = vsel %vm499, %v484, 0
        %v513 = vsel %vm499, %v485, 0
        %v516 = vsel %vm499, %v486, 0
        %v519 = vsel %vm499, %v487, 0
        %v522 = vsel %vm499, %v488, 0
        %v525 = vsel %vm499, %v489, 0
        %v528 = vsel %vm499, %v490, 0
        %v531 = vsel %vm499, %v491, 0
        %v534 = vsel %vm499, %v492, 0
        %v537 = vsel %vm499, %v493, 0
        %v540 = vsel %vm499, %v494, 0
        %v543 = vsel %vm499, %v495, 0
        %v546 = vsel %vm499, %v496, 0
        %548 = vmatpush.msra.mxu0 0.0
        %549 = vmatpush.msra.mxu0 0.0
        %550 = vmatpush.msra.mxu0 0.0
        %551 = vmatpush.msra.mxu0 0.0
        %552 = vmatpush.msra.mxu0 0.0
        %553 = vmatpush.msra.mxu0 0.0
        %554 = vmatpush.msra.mxu0 0.0
        %555 = vmatpush.msra.mxu0 0.0
        %556 = vmatpush.msra.mxu0 0.0
        %557 = vmatpush.msra.mxu0 0.0
        %558 = vmatpush.msra.mxu0 0.0
        %559 = vmatpush.msra.mxu0 0.0
        %560 = vmatpush.msra.mxu0 0.0
        %561 = vmatpush.msra.mxu0 0.0
        %562 = vmatpush.msra.mxu0 %v498
        %563 = vmatpush.msra.mxu0 %v497
        %564 = vmatmul.f32.gmra.mxu0 %v501
        %v565 = vpop.f32.mrf.mxu0
        %v566 = vadd.f32 0.0, %v565
        %567 = vmatmul.f32.gmra.mxu0 %v504
        %v568 = vpop.f32.mrf.mxu0
        %v569 = vadd.f32 0.0, %v568
        %570 = vmatmul.f32.gmra.mxu0 %v507
        %v571 = vpop.f32.mrf.mxu0
        %v572 = vadd.f32 0.0, %v571
        %573 = vmatmul.f32.gmra.mxu0 %v510
        %v574 = vpop.f32.mrf.mxu0
        %v575 = vadd.f32 0.0, %v574
        %576 = vmatmul.f32.gmra.mxu0 %v513
        %v577 = vpop.f32.mrf.mxu0
        %v578 = vadd.f32 0.0, %v577
        %579 = vmatmul.f32.gmra.mxu0 %v516
        %v580 = vpop.f32.mrf.mxu0
        %v581 = vadd.f32 0.0, %v580
        %582 = vmatmul.f32.gmra.mxu0 %v519
        %v583 = vpop.f32.mrf.mxu0
        %v584 = vadd.f32 0.0, %v583
        %585 = vmatmul.f32.gmra.mxu0 %v522
        %v586 = vpop.f32.mrf.mxu0
        %v587 = vadd.f32 0.0, %v586
        %588 = vmatmul.f32.gmra.mxu0 %v525
        %v589 = vpop.f32.mrf.mxu0
        %v590 = vadd.f32 0.0, %v589
        %591 = vmatmul.f32.gmra.mxu0 %v528
        %v592 = vpop.f32.mrf.mxu0
        %v593 = vadd.f32 0.0, %v592
        %594 = vmatmul.f32.gmra.mxu0 %v531
        %v595 = vpop.f32.mrf.mxu0
        %v596 = vadd.f32 0.0, %v595
        %597 = vmatmul.f32.gmra.mxu0 %v534
        %v598 = vpop.f32.mrf.mxu0
        %v599 = vadd.f32 0.0, %v598
        %600 = vmatmul.f32.gmra.mxu0 %v537
        %v601 = vpop.f32.mrf.mxu0
        %v602 = vadd.f32 0.0, %v601
        %603 = vmatmul.f32.gmra.mxu0 %v540
        %v604 = vpop.f32.mrf.mxu0
        %v605 = vadd.f32 0.0, %v604
        %606 = vmatmul.f32.gmra.mxu0 %v543
        %v607 = vpop.f32.mrf.mxu0
        %v608 = vadd.f32 0.0, %v607
        %609 = vmatmul.f32.gmra.mxu0 %v546
        %v610 = vpop.f32.mrf.mxu0
        %v611 = vadd.f32 0.0, %v610
        %612 = vdwg.mxu0
        %v614 = vperm.slane %v479, 0
        %v616 = vadd.f32 %v614, %v566
        %v617 = vadd.f32 %v614, %v569
        %v618 = vadd.f32 %v614, %v572
        %v619 = vadd.f32 %v614, %v575
        %v620 = vadd.f32 %v614, %v578
        %v621 = vadd.f32 %v614, %v581
        %v622 = vadd.f32 %v614, %v584
        %v623 = vadd.f32 %v614, %v587
        %v624 = vadd.f32 %v614, %v590
        %v625 = vadd.f32 %v614, %v593
        %v626 = vadd.f32 %v614, %v596
        %v627 = vadd.f32 %v614, %v599
        %v628 = vadd.f32 %v614, %v602
        %v629 = vadd.f32 %v614, %v605
        %v630 = vadd.f32 %v614, %v608
        %v631 = vadd.f32 %v614, %v611
        %v632 = vld [vmem:[%s444] sm:$0xff]
        %v633 = vld [vmem:[%s444 + $0x8] sm:$0xff]
        %v634 = vld [vmem:[%s444 + $0x10] sm:$0xff]
        %v635 = vld [vmem:[%s444 + $0x18] sm:$0xff]
        %v636 = vld [vmem:[%s444 + $0x20] sm:$0xff]
        %v637 = vld [vmem:[%s444 + $0x28] sm:$0xff]
        %v638 = vld [vmem:[%s444 + $0x30] sm:$0xff]
        %v639 = vld [vmem:[%s444 + $0x38] sm:$0xff]
        %v640 = vld [vmem:[%s444 + $0x40] sm:$0xff]
        %v641 = vld [vmem:[%s444 + $0x48] sm:$0xff]
        %v642 = vld [vmem:[%s444 + $0x50] sm:$0xff]
        %v643 = vld [vmem:[%s444 + $0x58] sm:$0xff]
        %v644 = vld [vmem:[%s444 + $0x60] sm:$0xff]
        %v645 = vld [vmem:[%s444 + $0x68] sm:$0xff]
        %v646 = vld [vmem:[%s444 + $0x70] sm:$0xff]
        %v647 = vld [vmem:[%s444 + $0x78] sm:$0xff]
        %v648 = vld [vmem:[%s4] sm:$0xff]
        %v649 = vld [vmem:[%s4 + $0x8] sm:$0xff]
        %v651 = vsel %vm499, %v632, 0
        %v654 = vsel %vm499, %v633, 0
        %v657 = vsel %vm499, %v634, 0
        %v660 = vsel %vm499, %v635, 0
        %v663 = vsel %vm499, %v636, 0
        %v666 = vsel %vm499, %v637, 0
        %v669 = vsel %vm499, %v638, 0
        %v672 = vsel %vm499, %v639, 0
        %v675 = vsel %vm499, %v640, 0
        %v678 = vsel %vm499, %v641, 0
        %v681 = vsel %vm499, %v642, 0
        %v684 = vsel %vm499, %v643, 0
        %v687 = vsel %vm499, %v644, 0
        %v690 = vsel %vm499, %v645, 0
        %v693 = vsel %vm499, %v646, 0
        %v696 = vsel %vm499, %v647, 0
        %698 = vmatpush.msra.mxu0 0.0
        %699 = vmatpush.msra.mxu0 0.0
        %700 = vmatpush.msra.mxu0 0.0
        %701 = vmatpush.msra.mxu0 0.0
        %702 = vmatpush.msra.mxu0 0.0
        %703 = vmatpush.msra.mxu0 0.0
        %704 = vmatpush.msra.mxu0 0.0
        %705 = vmatpush.msra.mxu0 0.0
        %706 = vmatpush.msra.mxu0 0.0
        %707 = vmatpush.msra.mxu0 0.0
        %708 = vmatpush.msra.mxu0 0.0
        %709 = vmatpush.msra.mxu0 0.0
        %710 = vmatpush.msra.mxu0 0.0
        %711 = vmatpush.msra.mxu0 0.0
        %712 = vmatpush.msra.mxu0 %v649
        %713 = vmatpush.msra.mxu0 %v648
        %714 = vmatmul.f32.gmra.mxu0 %v651
        %v715 = vpop.f32.mrf.mxu0
        %v716 = vadd.f32 0.0, %v715
        %717 = vmatmul.f32.gmra.mxu0 %v654
        %v718 = vpop.f32.mrf.mxu0
        %v719 = vadd.f32 0.0, %v718
        %720 = vmatmul.f32.gmra.mxu0 %v657
        %v721 = vpop.f32.mrf.mxu0
        %v722 = vadd.f32 0.0, %v721
        %723 = vmatmul.f32.gmra.mxu0 %v660
        %v724 = vpop.f32.mrf.mxu0
        %v725 = vadd.f32 0.0, %v724
        %726 = vmatmul.f32.gmra.mxu0 %v663
        %v727 = vpop.f32.mrf.mxu0
        %v728 = vadd.f32 0.0, %v727
        %729 = vmatmul.f32.gmra.mxu0 %v666
        %v730 = vpop.f32.mrf.mxu0
        %v731 = vadd.f32 0.0, %v730
        %732 = vmatmul.f32.gmra.mxu0 %v669
        %v733 = vpop.f32.mrf.mxu0
        %v734 = vadd.f32 0.0, %v733
        %735 = vmatmul.f32.gmra.mxu0 %v672
        %v736 = vpop.f32.mrf.mxu0
        %v737 = vadd.f32 0.0, %v736
        %738 = vmatmul.f32.gmra.mxu0 %v675
        %v739 = vpop.f32.mrf.mxu0
        %v740 = vadd.f32 0.0, %v739
        %741 = vmatmul.f32.gmra.mxu0 %v678
        %v742 = vpop.f32.mrf.mxu0
        %v743 = vadd.f32 0.0, %v742
        %744 = vmatmul.f32.gmra.mxu0 %v681
        %v745 = vpop.f32.mrf.mxu0
        %v746 = vadd.f32 0.0, %v745
        %747 = vmatmul.f32.gmra.mxu0 %v684
        %v748 = vpop.f32.mrf.mxu0
        %v749 = vadd.f32 0.0, %v748
        %750 = vmatmul.f32.gmra.mxu0 %v687
        %v751 = vpop.f32.mrf.mxu0
        %v752 = vadd.f32 0.0, %v751
        %753 = vmatmul.f32.gmra.mxu0 %v690
        %v754 = vpop.f32.mrf.mxu0
        %v755 = vadd.f32 0.0, %v754
        %756 = vmatmul.f32.gmra.mxu0 %v693
        %v757 = vpop.f32.mrf.mxu0
        %v758 = vadd.f32 0.0, %v757
        %759 = vmatmul.f32.gmra.mxu0 %v696
        %v760 = vpop.f32.mrf.mxu0
        %v761 = vadd.f32 0.0, %v760
        %762 = vdwg.mxu0
        %v764 = vperm.slane %v480, 0
        %v766 = vadd.f32 %v764, %v716
        %v767 = vadd.f32 %v764, %v719
        %v768 = vadd.f32 %v764, %v722
        %v769 = vadd.f32 %v764, %v725
        %v770 = vadd.f32 %v764, %v728
        %v771 = vadd.f32 %v764, %v731
        %v772 = vadd.f32 %v764, %v734
        %v773 = vadd.f32 %v764, %v737
        %v774 = vadd.f32 %v764, %v740
        %v775 = vadd.f32 %v764, %v743
        %v776 = vadd.f32 %v764, %v746
        %v777 = vadd.f32 %v764, %v749
        %v778 = vadd.f32 %v764, %v752
        %v779 = vadd.f32 %v764, %v755
        %v780 = vadd.f32 %v764, %v758
        %v781 = vadd.f32 %v764, %v761
        %782 = vst [vmem:[#allocation2] sm:$0xff] %v616
        %783 = vst [vmem:[#allocation2 + $0x8] sm:$0xff] %v617
        %784 = vst [vmem:[#allocation2 + $0x10] sm:$0xff] %v618
        %785 = vst [vmem:[#allocation2 + $0x18] sm:$0xff] %v619
        %786 = vst [vmem:[#allocation2 + $0x20] sm:$0xff] %v620
        %787 = vst [vmem:[#allocation2 + $0x28] sm:$0xff] %v621
        %788 = vst [vmem:[#allocation2 + $0x30] sm:$0xff] %v622
        %789 = vst [vmem:[#allocation2 + $0x38] sm:$0xff] %v623
        %790 = vst [vmem:[#allocation2 + $0x40] sm:$0xff] %v624
        %791 = vst [vmem:[#allocation2 + $0x48] sm:$0xff] %v625
        %792 = vst [vmem:[#allocation2 + $0x50] sm:$0xff] %v626
        %793 = vst [vmem:[#allocation2 + $0x58] sm:$0xff] %v627
        %794 = vst [vmem:[#allocation2 + $0x60] sm:$0xff] %v628
        %795 = vst [vmem:[#allocation2 + $0x68] sm:$0xff] %v629
        %796 = vst [vmem:[#allocation2 + $0x70] sm:$0xff] %v630
        %797 = vst [vmem:[#allocation2 + $0x78] sm:$0xff] %v631
        %798 = vst [vmem:[#allocation3] sm:$0xff] %v766
        %799 = vst [vmem:[#allocation3 + $0x8] sm:$0xff] %v767
        %800 = vst [vmem:[#allocation3 + $0x10] sm:$0xff] %v768
        %801 = vst [vmem:[#allocation3 + $0x18] sm:$0xff] %v769
        %802 = vst [vmem:[#allocation3 + $0x20] sm:$0xff] %v770
        %803 = vst [vmem:[#allocation3 + $0x28] sm:$0xff] %v771
        %804 = vst [vmem:[#allocation3 + $0x30] sm:$0xff] %v772
        %805 = vst [vmem:[#allocation3 + $0x38] sm:$0xff] %v773
        %806 = vst [vmem:[#allocation3 + $0x40] sm:$0xff] %v774
        %807 = vst [vmem:[#allocation3 + $0x48] sm:$0xff] %v775
        %808 = vst [vmem:[#allocation3 + $0x50] sm:$0xff] %v776
        %809 = vst [vmem:[#allocation3 + $0x58] sm:$0xff] %v777
        %810 = vst [vmem:[#allocation3 + $0x60] sm:$0xff] %v778
        %811 = vst [vmem:[#allocation3 + $0x68] sm:$0xff] %v779
        %812 = vst [vmem:[#allocation3 + $0x70] sm:$0xff] %v780
        %813 = vst [vmem:[#allocation3 + $0x78] sm:$0xff] %v781
        %s814 = smul.u32 %s26, 16
        %s815 = ssub.s32 1, %s26
        %s816 = smul.u32 %s815, 16
        %v817 = vld [vmem:[#allocation4] sm:$0xff]
        %v818 = vld [vmem:[#allocation5] sm:$0xff]
        %v819 = vld [vmem:[#allocation6] sm:$0xff]
        %v820 = vld [vmem:[#allocation7] sm:$0xff]
        %v821 = vld [vmem:[#allocation2] sm:$0xff]
        %vm822 = vcmask 261120
        %v824 = vsel %vm822, %v817, 0
        %826 = vmatpush.msra.mxu0 0.0
        %827 = vmatpush.msra.mxu0 0.0
        %828 = vmatpush.msra.mxu0 0.0
        %829 = vmatpush.msra.mxu0 0.0
        %830 = vmatpush.msra.mxu0 0.0
        %831 = vmatpush.msra.mxu0 0.0
        %832 = vmatpush.msra.mxu0 0.0
        %833 = vmatpush.msra.mxu0 0.0
        %834 = vmatpush.msra.mxu0 0.0
        %835 = vmatpush.msra.mxu0 0.0
        %836 = vmatpush.msra.mxu0 0.0
        %837 = vmatpush.msra.mxu0 0.0
        %838 = vmatpush.msra.mxu0 %v474
        %839 = vmatpush.msra.mxu0 %v473
        %840 = vmatpush.msra.mxu0 %v472
        %841 = vmatpush.msra.mxu0 %v471
        %842 = vmatmul.f32.gmra.mxu0 %v824
        %v843 = vpop.f32.mrf.mxu0
        %v844 = vadd.f32 0.0, %v843
        %845 = vdwg.mxu0
        %v846 = vadd.f32 %v821, %v844
        %s847 = scalar_lea.vmem [#allocation3], 120
        %v848 = vld [vmem:[%s847] sm:$0xff]
        %v850 = vsel %vm822, %v819, 0
        %852 = vmatpush.msra.mxu0 0.0
        %853 = vmatpush.msra.mxu0 0.0
        %854 = vmatpush.msra.mxu0 0.0
        %855 = vmatpush.msra.mxu0 0.0
        %856 = vmatpush.msra.mxu0 0.0
        %857 = vmatpush.msra.mxu0 0.0
        %858 = vmatpush.msra.mxu0 0.0
        %859 = vmatpush.msra.mxu0 0.0
        %860 = vmatpush.msra.mxu0 0.0
        %861 = vmatpush.msra.mxu0 0.0
        %862 = vmatpush.msra.mxu0 0.0
        %863 = vmatpush.msra.mxu0 0.0
        %864 = vmatpush.msra.mxu0 %v478
        %865 = vmatpush.msra.mxu0 %v477
        %866 = vmatpush.msra.mxu0 %v476
        %867 = vmatpush.msra.mxu0 %v475
        %868 = vmatmul.f32.gmra.mxu0 %v850
        %v869 = vpop.f32.mrf.mxu0
        %v870 = vadd.f32 0.0, %v869
        %871 = vdwg.mxu0
        %v872 = vadd.f32 %v848, %v870
        %v873 = vxor.u32 %v846, 2147483648
        %v874 = vmul.f32 %v873, 1.442695
        %v875 = vpow.pop %v874
        %v876 = vadd.f32 %v875, 1.0
        %v877 = vrcp.pop %v876
        %v878 = vmul.f32 %v876, %v877
        %v879 = vsub.f32 1.0, %v878
        %v880 = vmul.f32 %v877, %v879
        %v881 = vadd.f32 %v877, %v880
        %vm882 = vweird.f32 %v876
        %vm883 = vweird.f32 %v877
        %vm884 = vmor %vm882, %vm883
        %v885 = vsel %vm884, %v877, %v881
        %v886 = vand.u32 2147483647, %v876
        %vm887 = vcmp.eq.f32.partialorder %v886, 8.507059e+37
        %v888 = vand.u32 %v876, 2147483648
        %v889 = vor.u32 1.1754944e-38, %v888
        %v890 = vsel %vm887, %v889, %v885
        %v891 = vmul.f32 1.0, %v890
        %v892 = vtanh.pop %v846
        %894 = vrot.lane.b32.xlu0 %v818, 32
        %v895 = vpop.permute.xlu0 %894
        %v897 = vmul.f32 %v891, %v895
        %899 = vrot.lane.b32.xlu0 %v892, 64
        %v900 = vpop.permute.xlu0 %899
        %v902 = vmul.f32 %v891, %v900
        %904 = vrot.lane.b32.xlu0 %v902, 32
        %v905 = vpop.permute.xlu0 %904
        %v907 = vadd.f32 %v897, %v905
        %v908 = vtanh.pop %v907
        %910 = vrot.lane.b32.xlu0 %v908, 64
        %v911 = vpop.permute.xlu0 %910
        %v913 = vmul.f32 %v891, %v911
        %v914 = vstv %s814
        %vm915 = vcmp.lt.s32.totalorder %v914, %v470
        %v916 = vsel %vm915, 1, 0
        %917 = vset.pattern.permute.xlu0 0
        %918 = vperm.xlu0 %917, %v916
        %v919 = vpop.permute.xlu0 %918
        %vm920 = vcmp.eq.s32.totalorder %v919, 1
        %921 = vrot.lane.b32.xlu0 %v817, 96
        %v922 = vpop.permute.xlu0 %921
        %v924 = vsel %vm920, %v913, %v922
        %v925 = vsel %vm920, %v907, %v895
        %s926 = sadd.s32 %s816, 15
        %v927 = vxor.u32 %v872, 2147483648
        %v928 = vmul.f32 %v927, 1.442695
        %v929 = vpow.pop %v928
        %v930 = vadd.f32 %v929, 1.0
        %v931 = vrcp.pop %v930
        %v932 = vmul.f32 %v930, %v931
        %v933 = vsub.f32 1.0, %v932
        %v934 = vmul.f32 %v931, %v933
        %v935 = vadd.f32 %v931, %v934
        %vm936 = vweird.f32 %v930
        %vm937 = vweird.f32 %v931
        %vm938 = vmor %vm936, %vm937
        %v939 = vsel %vm938, %v931, %v935
        %v940 = vand.u32 2147483647, %v930
        %vm941 = vcmp.eq.f32.partialorder %v940, 8.507059e+37
        %v942 = vand.u32 %v930, 2147483648
        %v943 = vor.u32 1.1754944e-38, %v942
        %v944 = vsel %vm941, %v943, %v939
        %v945 = vmul.f32 1.0, %v944
        %v946 = vtanh.pop %v872
        %948 = vrot.lane.b32.xlu0 %v820, 32
        %v949 = vpop.permute.xlu0 %948
        %v951 = vmul.f32 %v945, %v949
        %953 = vrot.lane.b32.xlu0 %v946, 64
        %v954 = vpop.permute.xlu0 %953
        %v956 = vmul.f32 %v945, %v954
        %958 = vrot.lane.b32.xlu0 %v956, 32
        %v959 = vpop.permute.xlu0 %958
        %v961 = vadd.f32 %v951, %v959
        %v962 = vtanh.pop %v961
        %964 = vrot.lane.b32.xlu0 %v962, 64
        %v965 = vpop.permute.xlu0 %964
        %v967 = vmul.f32 %v945, %v965
        %v968 = vstv %s926
        %vm969 = vcmp.lt.s32.totalorder %v968, %v470
        %v970 = vsel %vm969, 1, 0
        %971 = vset.pattern.permute.xlu0 0
        %972 = vperm.xlu0 %971, %v970
        %v973 = vpop.permute.xlu0 %972
        %vm974 = vcmp.eq.s32.totalorder %v973, 1
        %975 = vrot.lane.b32.xlu0 %v819, 96
        %v976 = vpop.permute.xlu0 %975
        %v978 = vsel %vm974, %v967, %v976
        %v979 = vsel %vm974, %v961, %v949
        %981 = vrot.lane.b32.xlu0 %v924, 32
        %v982 = vpop.permute.xlu0 %981
        %984 = vst.msk [vmem:[%s451] sm:$0xff] %vm822, %v982
        %986 = vrot.lane.b32.xlu0 %v978, 32
        %v987 = vpop.permute.xlu0 %986
        %s989 = scalar_lea.vmem %s458, 120
        %990 = vst.msk [vmem:[%s989] sm:$0xff] %vm822, %v987
        %s991 = scalar_lea.vmem [#allocation2], 8
        %v992 = vld [vmem:[%s991] sm:$0xff]
        %v993 = vsel %vm822, %v982, 0
        %995 = vmatpush.msra.mxu0 0.0
        %996 = vmatpush.msra.mxu0 0.0
        %997 = vmatpush.msra.mxu0 0.0
        %998 = vmatpush.msra.mxu0 0.0
        %999 = vmatpush.msra.mxu0 0.0
        %1000 = vmatpush.msra.mxu0 0.0
        %1001 = vmatpush.msra.mxu0 0.0
        %1002 = vmatpush.msra.mxu0 0.0
        %1003 = vmatpush.msra.mxu0 0.0
        %1004 = vmatpush.msra.mxu0 0.0
        %1005 = vmatpush.msra.mxu0 0.0
        %1006 = vmatpush.msra.mxu0 0.0
        %1007 = vmatpush.msra.mxu0 %v474
        %1008 = vmatpush.msra.mxu0 %v473
        %1009 = vmatpush.msra.mxu0 %v472
        %1010 = vmatpush.msra.mxu0 %v471
        %1011 = vmatmul.f32.gmra.mxu0 %v993
        %v1012 = vpop.f32.mrf.mxu0
        %v1013 = vadd.f32 0.0, %v1012
        %1014 = vdwg.mxu0
        %v1015 = vadd.f32 %v992, %v1013
        %s1016 = scalar_lea.vmem [#allocation3], 112
        %v1017 = vld [vmem:[%s1016] sm:$0xff]
        %v1018 = vsel %vm822, %v987, 0
        %1020 = vmatpush.msra.mxu0 0.0
        %1021 = vmatpush.msra.mxu0 0.0
        %1022 = vmatpush.msra.mxu0 0.0
        %1023 = vmatpush.msra.mxu0 0.0
        %1024 = vmatpush.msra.mxu0 0.0
        %1025 = vmatpush.msra.mxu0 0.0
        %1026 = vmatpush.msra.mxu0 0.0
        %1027 = vmatpush.msra.mxu0 0.0
        %1028 = vmatpush.msra.mxu0 0.0
        %1029 = vmatpush.msra.mxu0 0.0
        %1030 = vmatpush.msra.mxu0 0.0
        %1031 = vmatpush.msra.mxu0 0.0
        %1032 = vmatpush.msra.mxu0 %v478
        %1033 = vmatpush.msra.mxu0 %v477
        %1034 = vmatpush.msra.mxu0 %v476
        %1035 = vmatpush.msra.mxu0 %v475
        %1036 = vmatmul.f32.gmra.mxu0 %v1018
        %v1037 = vpop.f32.mrf.mxu0
        %v1038 = vadd.f32 0.0, %v1037
        %1039 = vdwg.mxu0
        %v1040 = vadd.f32 %v1017, %v1038
        %s1041 = sadd.s32 %s814, 1
        %v1042 = vxor.u32 %v1015, 2147483648
        %v1043 = vmul.f32 %v1042, 1.442695
        %v1044 = vpow.pop %v1043
        %v1045 = vadd.f32 %v1044, 1.0
        %v1046 = vrcp.pop %v1045
        %v1047 = vmul.f32 %v1045, %v1046
        %v1048 = vsub.f32 1.0, %v1047
        %v1049 = vmul.f32 %v1046, %v1048
        %v1050 = vadd.f32 %v1046, %v1049
        %vm1051 = vweird.f32 %v1045
        %vm1052 = vweird.f32 %v1046
        %vm1053 = vmor %vm1051, %vm1052
        %v1054 = vsel %vm1053, %v1046, %v1050
        %v1055 = vand.u32 2147483647, %v1045
        %vm1056 = vcmp.eq.f32.partialorder %v1055, 8.507059e+37
        %v1057 = vand.u32 %v1045, 2147483648
        %v1058 = vor.u32 1.1754944e-38, %v1057
        %v1059 = vsel %vm1056, %v1058, %v1054
        %v1060 = vmul.f32 1.0, %v1059
        %v1061 = vtanh.pop %v1015
        %v1062 = vmul.f32 %v1060, %v925
        %1064 = vrot.lane.b32.xlu0 %v1061, 64
        %v1065 = vpop.permute.xlu0 %1064
        %v1067 = vmul.f32 %v1060, %v1065
        %1069 = vrot.lane.b32.xlu0 %v1067, 32
        %v1070 = vpop.permute.xlu0 %1069
        %v1072 = vadd.f32 %v1062, %v1070
        %v1073 = vtanh.pop %v1072
        %1075 = vrot.lane.b32.xlu0 %v1073, 64
        %v1076 = vpop.permute.xlu0 %1075
        %v1078 = vmul.f32 %v1060, %v1076
        %v1079 = vstv %s1041
        %vm1080 = vcmp.lt.s32.totalorder %v1079, %v470
        %v1081 = vsel %vm1080, 1, 0
        %1082 = vset.pattern.permute.xlu0 0
        %1083 = vperm.xlu0 %1082, %v1081
        %v1084 = vpop.permute.xlu0 %1083
        %vm1085 = vcmp.eq.s32.totalorder %v1084, 1
        %v1086 = vsel %vm1085, %v1078, %v924
        %v1087 = vsel %vm1085, %v1072, %v925
        %s1088 = sadd.s32 %s816, 14
        %v1089 = vxor.u32 %v1040, 2147483648
        %v1090 = vmul.f32 %v1089, 1.442695
        %v1091 = vpow.pop %v1090
        %v1092 = vadd.f32 %v1091, 1.0
        %v1093 = vrcp.pop %v1092
        %v1094 = vmul.f32 %v1092, %v1093
        %v1095 = vsub.f32 1.0, %v1094
        %v1096 = vmul.f32 %v1093, %v1095
        %v1097 = vadd.f32 %v1093, %v1096
        %vm1098 = vweird.f32 %v1092
        %vm1099 = vweird.f32 %v1093
        %vm1100 = vmor %vm1098, %vm1099
        %v1101 = vsel %vm1100, %v1093, %v1097
        %v1102 = vand.u32 2147483647, %v1092
        %vm1103 = vcmp.eq.f32.partialorder %v1102, 8.507059e+37
        %v1104 = vand.u32 %v1092, 2147483648
        %v1105 = vor.u32 1.1754944e-38, %v1104
        %v1106 = vsel %vm1103, %v1105, %v1101
        %v1107 = vmul.f32 1.0, %v1106
        %v1108 = vtanh.pop %v1040
        %v1109 = vmul.f32 %v1107, %v979
        %1111 = vrot.lane.b32.xlu0 %v1108, 64
        %v1112 = vpop.permute.xlu0 %1111
        %v1114 = vmul.f32 %v1107, %v1112
        %1116 = vrot.lane.b32.xlu0 %v1114, 32
        %v1117 = vpop.permute.xlu0 %1116
        %v1119 = vadd.f32 %v1109, %v1117
        %v1120 = vtanh.pop %v1119
        %1122 = vrot.lane.b32.xlu0 %v1120, 64
        %v1123 = vpop.permute.xlu0 %1122
        %v1125 = vmul.f32 %v1107, %v1123
        %v1126 = vstv %s1088
        %vm1127 = vcmp.lt.s32.totalorder %v1126, %v470
        %v1128 = vsel %vm1127, 1, 0
        %1129 = vset.pattern.permute.xlu0 0
        %1130 = vperm.xlu0 %1129, %v1128
        %v1131 = vpop.permute.xlu0 %1130
        %vm1132 = vcmp.eq.s32.totalorder %v1131, 1
        %v1133 = vsel %vm1132, %v1125, %v978
        %v1134 = vsel %vm1132, %v1119, %v979
        %1136 = vrot.lane.b32.xlu0 %v1086, 32
        %v1137 = vpop.permute.xlu0 %1136
        %s1139 = scalar_lea.vmem %s451, 8
        %1140 = vst.msk [vmem:[%s1139] sm:$0xff] %vm822, %v1137
        %1142 = vrot.lane.b32.xlu0 %v1133, 32
        %v1143 = vpop.permute.xlu0 %1142
        %s1145 = scalar_lea.vmem %s458, 112
        %1146 = vst.msk [vmem:[%s1145] sm:$0xff] %vm822, %v1143
        %s1147 = scalar_lea.vmem [#allocation2], 16
        %v1148 = vld [vmem:[%s1147] sm:$0xff]
        %v1149 = vsel %vm822, %v1137, 0
        %1151 = vmatpush.msra.mxu0 0.0
        %1152 = vmatpush.msra.mxu0 0.0
        %1153 = vmatpush.msra.mxu0 0.0
        %1154 = vmatpush.msra.mxu0 0.0
        %1155 = vmatpush.msra.mxu0 0.0
        %1156 = vmatpush.msra.mxu0 0.0
        %1157 = vmatpush.msra.mxu0 0.0
        %1158 = vmatpush.msra.mxu0 0.0
        %1159 = vmatpush.msra.mxu0 0.0
        %1160 = vmatpush.msra.mxu0 0.0
        %1161 = vmatpush.msra.mxu0 0.0
        %1162 = vmatpush.msra.mxu0 0.0
        %1163 = vmatpush.msra.mxu0 %v474
        %1164 = vmatpush.msra.mxu0 %v473
        %1165 = vmatpush.msra.mxu0 %v472
        %1166 = vmatpush.msra.mxu0 %v471
        %1167 = vmatmul.f32.gmra.mxu0 %v1149
        %v1168 = vpop.f32.mrf.mxu0
        %v1169 = vadd.f32 0.0, %v1168
        %1170 = vdwg.mxu0
        %v1171 = vadd.f32 %v1148, %v1169
        %s1172 = scalar_lea.vmem [#allocation3], 104
        %v1173 = vld [vmem:[%s1172] sm:$0xff]
        %v1174 = vsel %vm822, %v1143, 0
        %1176 = vmatpush.msra.mxu0 0.0
        %1177 = vmatpush.msra.mxu0 0.0
        %1178 = vmatpush.msra.mxu0 0.0
        %1179 = vmatpush.msra.mxu0 0.0
        %1180 = vmatpush.msra.mxu0 0.0
        %1181 = vmatpush.msra.mxu0 0.0
        %1182 = vmatpush.msra.mxu0 0.0
        %1183 = vmatpush.msra.mxu0 0.0
        %1184 = vmatpush.msra.mxu0 0.0
        %1185 = vmatpush.msra.mxu0 0.0
        %1186 = vmatpush.msra.mxu0 0.0
        %1187 = vmatpush.msra.mxu0 0.0
        %1188 = vmatpush.msra.mxu0 %v478
        %1189 = vmatpush.msra.mxu0 %v477
        %1190 = vmatpush.msra.mxu0 %v476
        %1191 = vmatpush.msra.mxu0 %v475
        %1192 = vmatmul.f32.gmra.mxu0 %v1174
        %v1193 = vpop.f32.mrf.mxu0
        %v1194 = vadd.f32 0.0, %v1193
        %1195 = vdwg.mxu0
        %v1196 = vadd.f32 %v1173, %v1194
        %s1197 = sadd.s32 %s814, 2
        %v1198 = vxor.u32 %v1171, 2147483648
        %v1199 = vmul.f32 %v1198, 1.442695
        %v1200 = vpow.pop %v1199
        %v1201 = vadd.f32 %v1200, 1.0
        %v1202 = vrcp.pop %v1201
        %v1203 = vmul.f32 %v1201, %v1202
        %v1204 = vsub.f32 1.0, %v1203
        %v1205 = vmul.f32 %v1202, %v1204
        %v1206 = vadd.f32 %v1202, %v1205
        %vm1207 = vweird.f32 %v1201
        %vm1208 = vweird.f32 %v1202
        %vm1209 = vmor %vm1207, %vm1208
        %v1210 = vsel %vm1209, %v1202, %v1206
        %v1211 = vand.u32 2147483647, %v1201
        %vm1212 = vcmp.eq.f32.partialorder %v1211, 8.507059e+37
        %v1213 = vand.u32 %v1201, 2147483648
        %v1214 = vor.u32 1.1754944e-38, %v1213
        %v1215 = vsel %vm1212, %v1214, %v1210
        %v1216 = vmul.f32 1.0, %v1215
        %v1217 = vtanh.pop %v1171
        %v1218 = vmul.f32 %v1216, %v1087
        %1220 = vrot.lane.b32.xlu0 %v1217, 64
        %v1221 = vpop.permute.xlu0 %1220
        %v1223 = vmul.f32 %v1216, %v1221
        %1225 = vrot.lane.b32.xlu0 %v1223, 32
        %v1226 = vpop.permute.xlu0 %1225
        %v1228 = vadd.f32 %v1218, %v1226
        %v1229 = vtanh.pop %v1228
        %1231 = vrot.lane.b32.xlu0 %v1229, 64
        %v1232 = vpop.permute.xlu0 %1231
        %v1234 = vmul.f32 %v1216, %v1232
        %v1235 = vstv %s1197
        %vm1236 = vcmp.lt.s32.totalorder %v1235, %v470
        %v1237 = vsel %vm1236, 1, 0
        %1238 = vset.pattern.permute.xlu0 0
        %1239 = vperm.xlu0 %1238, %v1237
        %v1240 = vpop.permute.xlu0 %1239
        %vm1241 = vcmp.eq.s32.totalorder %v1240, 1
        %v1242 = vsel %vm1241, %v1234, %v1086
        %v1243 = vsel %vm1241, %v1228, %v1087
        %s1244 = sadd.s32 %s816, 13
        %v1245 = vxor.u32 %v1196, 2147483648
        %v1246 = vmul.f32 %v1245, 1.442695
        %v1247 = vpow.pop %v1246
        %v1248 = vadd.f32 %v1247, 1.0
        %v1249 = vrcp.pop %v1248
        %v1250 = vmul.f32 %v1248, %v1249
        %v1251 = vsub.f32 1.0, %v1250
        %v1252 = vmul.f32 %v1249, %v1251
        %v1253 = vadd.f32 %v1249, %v1252
        %vm1254 = vweird.f32 %v1248
        %vm1255 = vweird.f32 %v1249
        %vm1256 = vmor %vm1254, %vm1255
        %v1257 = vsel %vm1256, %v1249, %v1253
        %v1258 = vand.u32 2147483647, %v1248
        %vm1259 = vcmp.eq.f32.partialorder %v1258, 8.507059e+37
        %v1260 = vand.u32 %v1248, 2147483648
        %v1261 = vor.u32 1.1754944e-38, %v1260
        %v1262 = vsel %vm1259, %v1261, %v1257
        %v1263 = vmul.f32 1.0, %v1262
        %v1264 = vtanh.pop %v1196
        %v1265 = vmul.f32 %v1263, %v1134
        %1267 = vrot.lane.b32.xlu0 %v1264, 64
        %v1268 = vpop.permute.xlu0 %1267
        %v1270 = vmul.f32 %v1263, %v1268
        %1272 = vrot.lane.b32.xlu0 %v1270, 32
        %v1273 = vpop.permute.xlu0 %1272
        %v1275 = vadd.f32 %v1265, %v1273
        %v1276 = vtanh.pop %v1275
        %1278 = vrot.lane.b32.xlu0 %v1276, 64
        %v1279 = vpop.permute.xlu0 %1278
        %v1281 = vmul.f32 %v1263, %v1279
        %v1282 = vstv %s1244
        %vm1283 = vcmp.lt.s32.totalorder %v1282, %v470
        %v1284 = vsel %vm1283, 1, 0
        %1285 = vset.pattern.permute.xlu0 0
        %1286 = vperm.xlu0 %1285, %v1284
        %v1287 = vpop.permute.xlu0 %1286
        %vm1288 = vcmp.eq.s32.totalorder %v1287, 1
        %v1289 = vsel %vm1288, %v1281, %v1133
        %v1290 = vsel %vm1288, %v1275, %v1134
        %1292 = vrot.lane.b32.xlu0 %v1242, 32
        %v1293 = vpop.permute.xlu0 %1292
        %s1295 = scalar_lea.vmem %s451, 16
        %1296 = vst.msk [vmem:[%s1295] sm:$0xff] %vm822, %v1293
        %1298 = vrot.lane.b32.xlu0 %v1289, 32
        %v1299 = vpop.permute.xlu0 %1298
        %s1301 = scalar_lea.vmem %s458, 104
        %1302 = vst.msk [vmem:[%s1301] sm:$0xff] %vm822, %v1299
        %s1303 = scalar_lea.vmem [#allocation2], 24
        %v1304 = vld [vmem:[%s1303] sm:$0xff]
        %v1305 = vsel %vm822, %v1293, 0
        %1307 = vmatpush.msra.mxu0 0.0
        %1308 = vmatpush.msra.mxu0 0.0
        %1309 = vmatpush.msra.mxu0 0.0
        %1310 = vmatpush.msra.mxu0 0.0
        %1311 = vmatpush.msra.mxu0 0.0
        %1312 = vmatpush.msra.mxu0 0.0
        %1313 = vmatpush.msra.mxu0 0.0
        %1314 = vmatpush.msra.mxu0 0.0
        %1315 = vmatpush.msra.mxu0 0.0
        %1316 = vmatpush.msra.mxu0 0.0
        %1317 = vmatpush.msra.mxu0 0.0
        %1318 = vmatpush.msra.mxu0 0.0
        %1319 = vmatpush.msra.mxu0 %v474
        %1320 = vmatpush.msra.mxu0 %v473
        %1321 = vmatpush.msra.mxu0 %v472
        %1322 = vmatpush.msra.mxu0 %v471
        %1323 = vmatmul.f32.gmra.mxu0 %v1305
        %v1324 = vpop.f32.mrf.mxu0
        %v1325 = vadd.f32 0.0, %v1324
        %1326 = vdwg.mxu0
        %v1327 = vadd.f32 %v1304, %v1325
        %s1328 = scalar_lea.vmem [#allocation3], 96
        %v1329 = vld [vmem:[%s1328] sm:$0xff]
        %v1330 = vsel %vm822, %v1299, 0
        %1332 = vmatpush.msra.mxu0 0.0
        %1333 = vmatpush.msra.mxu0 0.0
        %1334 = vmatpush.msra.mxu0 0.0
        %1335 = vmatpush.msra.mxu0 0.0
        %1336 = vmatpush.msra.mxu0 0.0
        %1337 = vmatpush.msra.mxu0 0.0
        %1338 = vmatpush.msra.mxu0 0.0
        %1339 = vmatpush.msra.mxu0 0.0
        %1340 = vmatpush.msra.mxu0 0.0
        %1341 = vmatpush.msra.mxu0 0.0
        %1342 = vmatpush.msra.mxu0 0.0
        %1343 = vmatpush.msra.mxu0 0.0
        %1344 = vmatpush.msra.mxu0 %v478
        %1345 = vmatpush.msra.mxu0 %v477
        %1346 = vmatpush.msra.mxu0 %v476
        %1347 = vmatpush.msra.mxu0 %v475
        %1348 = vmatmul.f32.gmra.mxu0 %v1330
        %v1349 = vpop.f32.mrf.mxu0
        %v1350 = vadd.f32 0.0, %v1349
        %1351 = vdwg.mxu0
        %v1352 = vadd.f32 %v1329, %v1350
        %s1353 = sadd.s32 %s814, 3
        %v1354 = vxor.u32 %v1327, 2147483648
        %v1355 = vmul.f32 %v1354, 1.442695
        %v1356 = vpow.pop %v1355
        %v1357 = vadd.f32 %v1356, 1.0
        %v1358 = vrcp.pop %v1357
        %v1359 = vmul.f32 %v1357, %v1358
        %v1360 = vsub.f32 1.0, %v1359
        %v1361 = vmul.f32 %v1358, %v1360
        %v1362 = vadd.f32 %v1358, %v1361
        %vm1363 = vweird.f32 %v1357
        %vm1364 = vweird.f32 %v1358
        %vm1365 = vmor %vm1363, %vm1364
        %v1366 = vsel %vm1365, %v1358, %v1362
        %v1367 = vand.u32 2147483647, %v1357
        %vm1368 = vcmp.eq.f32.partialorder %v1367, 8.507059e+37
        %v1369 = vand.u32 %v1357, 2147483648
        %v1370 = vor.u32 1.1754944e-38, %v1369
        %v1371 = vsel %vm1368, %v1370, %v1366
        %v1372 = vmul.f32 1.0, %v1371
        %v1373 = vtanh.pop %v1327
        %v1374 = vmul.f32 %v1372, %v1243
        %1376 = vrot.lane.b32.xlu0 %v1373, 64
        %v1377 = vpop.permute.xlu0 %1376
        %v1379 = vmul.f32 %v1372, %v1377
        %1381 = vrot.lane.b32.xlu0 %v1379, 32
        %v1382 = vpop.permute.xlu0 %1381
        %v1384 = vadd.f32 %v1374, %v1382
        %v1385 = vtanh.pop %v1384
        %1387 = vrot.lane.b32.xlu0 %v1385, 64
        %v1388 = vpop.permute.xlu0 %1387
        %v1390 = vmul.f32 %v1372, %v1388
        %v1391 = vstv %s1353
        %vm1392 = vcmp.lt.s32.totalorder %v1391, %v470
        %v1393 = vsel %vm1392, 1, 0
        %1394 = vset.pattern.permute.xlu0 0
        %1395 = vperm.xlu0 %1394, %v1393
        %v1396 = vpop.permute.xlu0 %1395
        %vm1397 = vcmp.eq.s32.totalorder %v1396, 1
        %v1398 = vsel %vm1397, %v1390, %v1242
        %v1399 = vsel %vm1397, %v1384, %v1243
        %s1400 = sadd.s32 %s816, 12
        %v1401 = vxor.u32 %v1352, 2147483648
        %v1402 = vmul.f32 %v1401, 1.442695
        %v1403 = vpow.pop %v1402
        %v1404 = vadd.f32 %v1403, 1.0
        %v1405 = vrcp.pop %v1404
        %v1406 = vmul.f32 %v1404, %v1405
        %v1407 = vsub.f32 1.0, %v1406
        %v1408 = vmul.f32 %v1405, %v1407
        %v1409 = vadd.f32 %v1405, %v1408
        %vm1410 = vweird.f32 %v1404
        %vm1411 = vweird.f32 %v1405
        %vm1412 = vmor %vm1410, %vm1411
        %v1413 = vsel %vm1412, %v1405, %v1409
        %v1414 = vand.u32 2147483647, %v1404
        %vm1415 = vcmp.eq.f32.partialorder %v1414, 8.507059e+37
        %v1416 = vand.u32 %v1404, 2147483648
        %v1417 = vor.u32 1.1754944e-38, %v1416
        %v1418 = vsel %vm1415, %v1417, %v1413
        %v1419 = vmul.f32 1.0, %v1418
        %v1420 = vtanh.pop %v1352
        %v1421 = vmul.f32 %v1419, %v1290
        %1423 = vrot.lane.b32.xlu0 %v1420, 64
        %v1424 = vpop.permute.xlu0 %1423
        %v1426 = vmul.f32 %v1419, %v1424
        %1428 = vrot.lane.b32.xlu0 %v1426, 32
        %v1429 = vpop.permute.xlu0 %1428
        %v1431 = vadd.f32 %v1421, %v1429
        %v1432 = vtanh.pop %v1431
        %1434 = vrot.lane.b32.xlu0 %v1432, 64
        %v1435 = vpop.permute.xlu0 %1434
        %v1437 = vmul.f32 %v1419, %v1435
        %v1438 = vstv %s1400
        %vm1439 = vcmp.lt.s32.totalorder %v1438, %v470
        %v1440 = vsel %vm1439, 1, 0
        %1441 = vset.pattern.permute.xlu0 0
        %1442 = vperm.xlu0 %1441, %v1440
        %v1443 = vpop.permute.xlu0 %1442
        %vm1444 = vcmp.eq.s32.totalorder %v1443, 1
        %v1445 = vsel %vm1444, %v1437, %v1289
        %v1446 = vsel %vm1444, %v1431, %v1290
        %1448 = vrot.lane.b32.xlu0 %v1398, 32
        %v1449 = vpop.permute.xlu0 %1448
        %s1451 = scalar_lea.vmem %s451, 24
        %1452 = vst.msk [vmem:[%s1451] sm:$0xff] %vm822, %v1449
        %1454 = vrot.lane.b32.xlu0 %v1445, 32
        %v1455 = vpop.permute.xlu0 %1454
        %s1457 = scalar_lea.vmem %s458, 96
        %1458 = vst.msk [vmem:[%s1457] sm:$0xff] %vm822, %v1455
        %s1459 = scalar_lea.vmem [#allocation2], 32
        %v1460 = vld [vmem:[%s1459] sm:$0xff]
        %v1461 = vsel %vm822, %v1449, 0
        %1463 = vmatpush.msra.mxu0 0.0
        %1464 = vmatpush.msra.mxu0 0.0
        %1465 = vmatpush.msra.mxu0 0.0
        %1466 = vmatpush.msra.mxu0 0.0
        %1467 = vmatpush.msra.mxu0 0.0
        %1468 = vmatpush.msra.mxu0 0.0
        %1469 = vmatpush.msra.mxu0 0.0
        %1470 = vmatpush.msra.mxu0 0.0
        %1471 = vmatpush.msra.mxu0 0.0
        %1472 = vmatpush.msra.mxu0 0.0
        %1473 = vmatpush.msra.mxu0 0.0
        %1474 = vmatpush.msra.mxu0 0.0
        %1475 = vmatpush.msra.mxu0 %v474
        %1476 = vmatpush.msra.mxu0 %v473
        %1477 = vmatpush.msra.mxu0 %v472
        %1478 = vmatpush.msra.mxu0 %v471
        %1479 = vmatmul.f32.gmra.mxu0 %v1461
        %v1480 = vpop.f32.mrf.mxu0
        %v1481 = vadd.f32 0.0, %v1480
        %1482 = vdwg.mxu0
        %v1483 = vadd.f32 %v1460, %v1481
        %s1484 = scalar_lea.vmem [#allocation3], 88
        %v1485 = vld [vmem:[%s1484] sm:$0xff]
        %v1486 = vsel %vm822, %v1455, 0
        %1488 = vmatpush.msra.mxu0 0.0
        %1489 = vmatpush.msra.mxu0 0.0
        %1490 = vmatpush.msra.mxu0 0.0
        %1491 = vmatpush.msra.mxu0 0.0
        %1492 = vmatpush.msra.mxu0 0.0
        %1493 = vmatpush.msra.mxu0 0.0
        %1494 = vmatpush.msra.mxu0 0.0
        %1495 = vmatpush.msra.mxu0 0.0
        %1496 = vmatpush.msra.mxu0 0.0
        %1497 = vmatpush.msra.mxu0 0.0
        %1498 = vmatpush.msra.mxu0 0.0
        %1499 = vmatpush.msra.mxu0 0.0
        %1500 = vmatpush.msra.mxu0 %v478
        %1501 = vmatpush.msra.mxu0 %v477
        %1502 = vmatpush.msra.mxu0 %v476
        %1503 = vmatpush.msra.mxu0 %v475
        %1504 = vmatmul.f32.gmra.mxu0 %v1486
        %v1505 = vpop.f32.mrf.mxu0
        %v1506 = vadd.f32 0.0, %v1505
        %1507 = vdwg.mxu0
        %v1508 = vadd.f32 %v1485, %v1506
        %s1509 = sadd.s32 %s814, 4
        %v1510 = vxor.u32 %v1483, 2147483648
        %v1511 = vmul.f32 %v1510, 1.442695
        %v1512 = vpow.pop %v1511
        %v1513 = vadd.f32 %v1512, 1.0
        %v1514 = vrcp.pop %v1513
        %v1515 = vmul.f32 %v1513, %v1514
        %v1516 = vsub.f32 1.0, %v1515
        %v1517 = vmul.f32 %v1514, %v1516
        %v1518 = vadd.f32 %v1514, %v1517
        %vm1519 = vweird.f32 %v1513
        %vm1520 = vweird.f32 %v1514
        %vm1521 = vmor %vm1519, %vm1520
        %v1522 = vsel %vm1521, %v1514, %v1518
        %v1523 = vand.u32 2147483647, %v1513
        %vm1524 = vcmp.eq.f32.partialorder %v1523, 8.507059e+37
        %v1525 = vand.u32 %v1513, 2147483648
        %v1526 = vor.u32 1.1754944e-38, %v1525
        %v1527 = vsel %vm1524, %v1526, %v1522
        %v1528 = vmul.f32 1.0, %v1527
        %v1529 = vtanh.pop %v1483
        %v1530 = vmul.f32 %v1528, %v1399
        %1532 = vrot.lane.b32.xlu0 %v1529, 64
        %v1533 = vpop.permute.xlu0 %1532
        %v1535 = vmul.f32 %v1528, %v1533
        %1537 = vrot.lane.b32.xlu0 %v1535, 32
        %v1538 = vpop.permute.xlu0 %1537
        %v1540 = vadd.f32 %v1530, %v1538
        %v1541 = vtanh.pop %v1540
        %1543 = vrot.lane.b32.xlu0 %v1541, 64
        %v1544 = vpop.permute.xlu0 %1543
        %v1546 = vmul.f32 %v1528, %v1544
        %v1547 = vstv %s1509
        %vm1548 = vcmp.lt.s32.totalorder %v1547, %v470
        %v1549 = vsel %vm1548, 1, 0
        %1550 = vset.pattern.permute.xlu0 0
        %1551 = vperm.xlu0 %1550, %v1549
        %v1552 = vpop.permute.xlu0 %1551
        %vm1553 = vcmp.eq.s32.totalorder %v1552, 1
        %v1554 = vsel %vm1553, %v1546, %v1398
        %v1555 = vsel %vm1553, %v1540, %v1399
        %s1556 = sadd.s32 %s816, 11
        %v1557 = vxor.u32 %v1508, 2147483648
        %v1558 = vmul.f32 %v1557, 1.442695
        %v1559 = vpow.pop %v1558
        %v1560 = vadd.f32 %v1559, 1.0
        %v1561 = vrcp.pop %v1560
        %v1562 = vmul.f32 %v1560, %v1561
        %v1563 = vsub.f32 1.0, %v1562
        %v1564 = vmul.f32 %v1561, %v1563
        %v1565 = vadd.f32 %v1561, %v1564
        %vm1566 = vweird.f32 %v1560
        %vm1567 = vweird.f32 %v1561
        %vm1568 = vmor %vm1566, %vm1567
        %v1569 = vsel %vm1568, %v1561, %v1565
        %v1570 = vand.u32 2147483647, %v1560
        %vm1571 = vcmp.eq.f32.partialorder %v1570, 8.507059e+37
        %v1572 = vand.u32 %v1560, 2147483648
        %v1573 = vor.u32 1.1754944e-38, %v1572
        %v1574 = vsel %vm1571, %v1573, %v1569
        %v1575 = vmul.f32 1.0, %v1574
        %v1576 = vtanh.pop %v1508
        %v1577 = vmul.f32 %v1575, %v1446
        %1579 = vrot.lane.b32.xlu0 %v1576, 64
        %v1580 = vpop.permute.xlu0 %1579
        %v1582 = vmul.f32 %v1575, %v1580
        %1584 = vrot.lane.b32.xlu0 %v1582, 32
        %v1585 = vpop.permute.xlu0 %1584
        %v1587 = vadd.f32 %v1577, %v1585
        %v1588 = vtanh.pop %v1587
        %1590 = vrot.lane.b32.xlu0 %v1588, 64
        %v1591 = vpop.permute.xlu0 %1590
        %v1593 = vmul.f32 %v1575, %v1591
        %v1594 = vstv %s1556
        %vm1595 = vcmp.lt.s32.totalorder %v1594, %v470
        %v1596 = vsel %vm1595, 1, 0
        %1597 = vset.pattern.permute.xlu0 0
        %1598 = vperm.xlu0 %1597, %v1596
        %v1599 = vpop.permute.xlu0 %1598
        %vm1600 = vcmp.eq.s32.totalorder %v1599, 1
        %v1601 = vsel %vm1600, %v1593, %v1445
        %v1602 = vsel %vm1600, %v1587, %v1446
        %1604 = vrot.lane.b32.xlu0 %v1554, 32
        %v1605 = vpop.permute.xlu0 %1604
        %s1607 = scalar_lea.vmem %s451, 32
        %1608 = vst.msk [vmem:[%s1607] sm:$0xff] %vm822, %v1605
        %1610 = vrot.lane.b32.xlu0 %v1601, 32
        %v1611 = vpop.permute.xlu0 %1610
        %s1613 = scalar_lea.vmem %s458, 88
        %1614 = vst.msk [vmem:[%s1613] sm:$0xff] %vm822, %v1611
        %s1615 = scalar_lea.vmem [#allocation2], 40
        %v1616 = vld [vmem:[%s1615] sm:$0xff]
        %v1617 = vsel %vm822, %v1605, 0
        %1619 = vmatpush.msra.mxu0 0.0
        %1620 = vmatpush.msra.mxu0 0.0
        %1621 = vmatpush.msra.mxu0 0.0
        %1622 = vmatpush.msra.mxu0 0.0
        %1623 = vmatpush.msra.mxu0 0.0
        %1624 = vmatpush.msra.mxu0 0.0
        %1625 = vmatpush.msra.mxu0 0.0
        %1626 = vmatpush.msra.mxu0 0.0
        %1627 = vmatpush.msra.mxu0 0.0
        %1628 = vmatpush.msra.mxu0 0.0
        %1629 = vmatpush.msra.mxu0 0.0
        %1630 = vmatpush.msra.mxu0 0.0
        %1631 = vmatpush.msra.mxu0 %v474
        %1632 = vmatpush.msra.mxu0 %v473
        %1633 = vmatpush.msra.mxu0 %v472
        %1634 = vmatpush.msra.mxu0 %v471
        %1635 = vmatmul.f32.gmra.mxu0 %v1617
        %v1636 = vpop.f32.mrf.mxu0
        %v1637 = vadd.f32 0.0, %v1636
        %1638 = vdwg.mxu0
        %v1639 = vadd.f32 %v1616, %v1637
        %s1640 = scalar_lea.vmem [#allocation3], 80
        %v1641 = vld [vmem:[%s1640] sm:$0xff]
        %v1642 = vsel %vm822, %v1611, 0
        %1644 = vmatpush.msra.mxu0 0.0
        %1645 = vmatpush.msra.mxu0 0.0
        %1646 = vmatpush.msra.mxu0 0.0
        %1647 = vmatpush.msra.mxu0 0.0
        %1648 = vmatpush.msra.mxu0 0.0
        %1649 = vmatpush.msra.mxu0 0.0
        %1650 = vmatpush.msra.mxu0 0.0
        %1651 = vmatpush.msra.mxu0 0.0
        %1652 = vmatpush.msra.mxu0 0.0
        %1653 = vmatpush.msra.mxu0 0.0
        %1654 = vmatpush.msra.mxu0 0.0
        %1655 = vmatpush.msra.mxu0 0.0
        %1656 = vmatpush.msra.mxu0 %v478
        %1657 = vmatpush.msra.mxu0 %v477
        %1658 = vmatpush.msra.mxu0 %v476
        %1659 = vmatpush.msra.mxu0 %v475
        %1660 = vmatmul.f32.gmra.mxu0 %v1642
        %v1661 = vpop.f32.mrf.mxu0
        %v1662 = vadd.f32 0.0, %v1661
        %1663 = vdwg.mxu0
        %v1664 = vadd.f32 %v1641, %v1662
        %s1665 = sadd.s32 %s814, 5
        %v1666 = vxor.u32 %v1639, 2147483648
        %v1667 = vmul.f32 %v1666, 1.442695
        %v1668 = vpow.pop %v1667
        %v1669 = vadd.f32 %v1668, 1.0
        %v1670 = vrcp.pop %v1669
        %v1671 = vmul.f32 %v1669, %v1670
        %v1672 = vsub.f32 1.0, %v1671
        %v1673 = vmul.f32 %v1670, %v1672
        %v1674 = vadd.f32 %v1670, %v1673
        %vm1675 = vweird.f32 %v1669
        %vm1676 = vweird.f32 %v1670
        %vm1677 = vmor %vm1675, %vm1676
        %v1678 = vsel %vm1677, %v1670, %v1674
        %v1679 = vand.u32 2147483647, %v1669
        %vm1680 = vcmp.eq.f32.partialorder %v1679, 8.507059e+37
        %v1681 = vand.u32 %v1669, 2147483648
        %v1682 = vor.u32 1.1754944e-38, %v1681
        %v1683 = vsel %vm1680, %v1682, %v1678
        %v1684 = vmul.f32 1.0, %v1683
        %v1685 = vtanh.pop %v1639
        %v1686 = vmul.f32 %v1684, %v1555
        %1688 = vrot.lane.b32.xlu0 %v1685, 64
        %v1689 = vpop.permute.xlu0 %1688
        %v1691 = vmul.f32 %v1684, %v1689
        %1693 = vrot.lane.b32.xlu0 %v1691, 32
        %v1694 = vpop.permute.xlu0 %1693
        %v1696 = vadd.f32 %v1686, %v1694
        %v1697 = vtanh.pop %v1696
        %1699 = vrot.lane.b32.xlu0 %v1697, 64
        %v1700 = vpop.permute.xlu0 %1699
        %v1702 = vmul.f32 %v1684, %v1700
        %v1703 = vstv %s1665
        %vm1704 = vcmp.lt.s32.totalorder %v1703, %v470
        %v1705 = vsel %vm1704, 1, 0
        %1706 = vset.pattern.permute.xlu0 0
        %1707 = vperm.xlu0 %1706, %v1705
        %v1708 = vpop.permute.xlu0 %1707
        %vm1709 = vcmp.eq.s32.totalorder %v1708, 1
        %v1710 = vsel %vm1709, %v1702, %v1554
        %v1711 = vsel %vm1709, %v1696, %v1555
        %s1712 = sadd.s32 %s816, 10
        %v1713 = vxor.u32 %v1664, 2147483648
        %v1714 = vmul.f32 %v1713, 1.442695
        %v1715 = vpow.pop %v1714
        %v1716 = vadd.f32 %v1715, 1.0
        %v1717 = vrcp.pop %v1716
        %v1718 = vmul.f32 %v1716, %v1717
        %v1719 = vsub.f32 1.0, %v1718
        %v1720 = vmul.f32 %v1717, %v1719
        %v1721 = vadd.f32 %v1717, %v1720
        %vm1722 = vweird.f32 %v1716
        %vm1723 = vweird.f32 %v1717
        %vm1724 = vmor %vm1722, %vm1723
        %v1725 = vsel %vm1724, %v1717, %v1721
        %v1726 = vand.u32 2147483647, %v1716
        %vm1727 = vcmp.eq.f32.partialorder %v1726, 8.507059e+37
        %v1728 = vand.u32 %v1716, 2147483648
        %v1729 = vor.u32 1.1754944e-38, %v1728
        %v1730 = vsel %vm1727, %v1729, %v1725
        %v1731 = vmul.f32 1.0, %v1730
        %v1732 = vtanh.pop %v1664
        %v1733 = vmul.f32 %v1731, %v1602
        %1735 = vrot.lane.b32.xlu0 %v1732, 64
        %v1736 = vpop.permute.xlu0 %1735
        %v1738 = vmul.f32 %v1731, %v1736
        %1740 = vrot.lane.b32.xlu0 %v1738, 32
        %v1741 = vpop.permute.xlu0 %1740
        %v1743 = vadd.f32 %v1733, %v1741
        %v1744 = vtanh.pop %v1743
        %1746 = vrot.lane.b32.xlu0 %v1744, 64
        %v1747 = vpop.permute.xlu0 %1746
        %v1749 = vmul.f32 %v1731, %v1747
        %v1750 = vstv %s1712
        %vm1751 = vcmp.lt.s32.totalorder %v1750, %v470
        %v1752 = vsel %vm1751, 1, 0
        %1753 = vset.pattern.permute.xlu0 0
        %1754 = vperm.xlu0 %1753, %v1752
        %v1755 = vpop.permute.xlu0 %1754
        %vm1756 = vcmp.eq.s32.totalorder %v1755, 1
        %v1757 = vsel %vm1756, %v1749, %v1601
        %v1758 = vsel %vm1756, %v1743, %v1602
        %1760 = vrot.lane.b32.xlu0 %v1710, 32
        %v1761 = vpop.permute.xlu0 %1760
        %s1763 = scalar_lea.vmem %s451, 40
        %1764 = vst.msk [vmem:[%s1763] sm:$0xff] %vm822, %v1761
        %1766 = vrot.lane.b32.xlu0 %v1757, 32
        %v1767 = vpop.permute.xlu0 %1766
        %s1769 = scalar_lea.vmem %s458, 80
        %1770 = vst.msk [vmem:[%s1769] sm:$0xff] %vm822, %v1767
        %s1771 = scalar_lea.vmem [#allocation2], 48
        %v1772 = vld [vmem:[%s1771] sm:$0xff]
        %v1773 = vsel %vm822, %v1761, 0
        %1775 = vmatpush.msra.mxu0 0.0
        %1776 = vmatpush.msra.mxu0 0.0
        %1777 = vmatpush.msra.mxu0 0.0
        %1778 = vmatpush.msra.mxu0 0.0
        %1779 = vmatpush.msra.mxu0 0.0
        %1780 = vmatpush.msra.mxu0 0.0
        %1781 = vmatpush.msra.mxu0 0.0
        %1782 = vmatpush.msra.mxu0 0.0
        %1783 = vmatpush.msra.mxu0 0.0
        %1784 = vmatpush.msra.mxu0 0.0
        %1785 = vmatpush.msra.mxu0 0.0
        %1786 = vmatpush.msra.mxu0 0.0
        %1787 = vmatpush.msra.mxu0 %v474
        %1788 = vmatpush.msra.mxu0 %v473
        %1789 = vmatpush.msra.mxu0 %v472
        %1790 = vmatpush.msra.mxu0 %v471
        %1791 = vmatmul.f32.gmra.mxu0 %v1773
        %v1792 = vpop.f32.mrf.mxu0
        %v1793 = vadd.f32 0.0, %v1792
        %1794 = vdwg.mxu0
        %v1795 = vadd.f32 %v1772, %v1793
        %s1796 = scalar_lea.vmem [#allocation3], 72
        %v1797 = vld [vmem:[%s1796] sm:$0xff]
        %v1798 = vsel %vm822, %v1767, 0
        %1800 = vmatpush.msra.mxu0 0.0
        %1801 = vmatpush.msra.mxu0 0.0
        %1802 = vmatpush.msra.mxu0 0.0
        %1803 = vmatpush.msra.mxu0 0.0
        %1804 = vmatpush.msra.mxu0 0.0
        %1805 = vmatpush.msra.mxu0 0.0
        %1806 = vmatpush.msra.mxu0 0.0
        %1807 = vmatpush.msra.mxu0 0.0
        %1808 = vmatpush.msra.mxu0 0.0
        %1809 = vmatpush.msra.mxu0 0.0
        %1810 = vmatpush.msra.mxu0 0.0
        %1811 = vmatpush.msra.mxu0 0.0
        %1812 = vmatpush.msra.mxu0 %v478
        %1813 = vmatpush.msra.mxu0 %v477
        %1814 = vmatpush.msra.mxu0 %v476
        %1815 = vmatpush.msra.mxu0 %v475
        %1816 = vmatmul.f32.gmra.mxu0 %v1798
        %v1817 = vpop.f32.mrf.mxu0
        %v1818 = vadd.f32 0.0, %v1817
        %1819 = vdwg.mxu0
        %v1820 = vadd.f32 %v1797, %v1818
        %s1821 = sadd.s32 %s814, 6
        %v1822 = vxor.u32 %v1795, 2147483648
        %v1823 = vmul.f32 %v1822, 1.442695
        %v1824 = vpow.pop %v1823
        %v1825 = vadd.f32 %v1824, 1.0
        %v1826 = vrcp.pop %v1825
        %v1827 = vmul.f32 %v1825, %v1826
        %v1828 = vsub.f32 1.0, %v1827
        %v1829 = vmul.f32 %v1826, %v1828
        %v1830 = vadd.f32 %v1826, %v1829
        %vm1831 = vweird.f32 %v1825
        %vm1832 = vweird.f32 %v1826
        %vm1833 = vmor %vm1831, %vm1832
        %v1834 = vsel %vm1833, %v1826, %v1830
        %v1835 = vand.u32 2147483647, %v1825
        %vm1836 = vcmp.eq.f32.partialorder %v1835, 8.507059e+37
        %v1837 = vand.u32 %v1825, 2147483648
        %v1838 = vor.u32 1.1754944e-38, %v1837
        %v1839 = vsel %vm1836, %v1838, %v1834
        %v1840 = vmul.f32 1.0, %v1839
        %v1841 = vtanh.pop %v1795
        %v1842 = vmul.f32 %v1840, %v1711
        %1844 = vrot.lane.b32.xlu0 %v1841, 64
        %v1845 = vpop.permute.xlu0 %1844
        %v1847 = vmul.f32 %v1840, %v1845
        %1849 = vrot.lane.b32.xlu0 %v1847, 32
        %v1850 = vpop.permute.xlu0 %1849
        %v1852 = vadd.f32 %v1842, %v1850
        %v1853 = vtanh.pop %v1852
        %1855 = vrot.lane.b32.xlu0 %v1853, 64
        %v1856 = vpop.permute.xlu0 %1855
        %v1858 = vmul.f32 %v1840, %v1856
        %v1859 = vstv %s1821
        %vm1860 = vcmp.lt.s32.totalorder %v1859, %v470
        %v1861 = vsel %vm1860, 1, 0
        %1862 = vset.pattern.permute.xlu0 0
        %1863 = vperm.xlu0 %1862, %v1861
        %v1864 = vpop.permute.xlu0 %1863
        %vm1865 = vcmp.eq.s32.totalorder %v1864, 1
        %v1866 = vsel %vm1865, %v1858, %v1710
        %v1867 = vsel %vm1865, %v1852, %v1711
        %s1868 = sadd.s32 %s816, 9
        %v1869 = vxor.u32 %v1820, 2147483648
        %v1870 = vmul.f32 %v1869, 1.442695
        %v1871 = vpow.pop %v1870
        %v1872 = vadd.f32 %v1871, 1.0
        %v1873 = vrcp.pop %v1872
        %v1874 = vmul.f32 %v1872, %v1873
        %v1875 = vsub.f32 1.0, %v1874
        %v1876 = vmul.f32 %v1873, %v1875
        %v1877 = vadd.f32 %v1873, %v1876
        %vm1878 = vweird.f32 %v1872
        %vm1879 = vweird.f32 %v1873
        %vm1880 = vmor %vm1878, %vm1879
        %v1881 = vsel %vm1880, %v1873, %v1877
        %v1882 = vand.u32 2147483647, %v1872
        %vm1883 = vcmp.eq.f32.partialorder %v1882, 8.507059e+37
        %v1884 = vand.u32 %v1872, 2147483648
        %v1885 = vor.u32 1.1754944e-38, %v1884
        %v1886 = vsel %vm1883, %v1885, %v1881
        %v1887 = vmul.f32 1.0, %v1886
        %v1888 = vtanh.pop %v1820
        %v1889 = vmul.f32 %v1887, %v1758
        %1891 = vrot.lane.b32.xlu0 %v1888, 64
        %v1892 = vpop.permute.xlu0 %1891
        %v1894 = vmul.f32 %v1887, %v1892
        %1896 = vrot.lane.b32.xlu0 %v1894, 32
        %v1897 = vpop.permute.xlu0 %1896
        %v1899 = vadd.f32 %v1889, %v1897
        %v1900 = vtanh.pop %v1899
        %1902 = vrot.lane.b32.xlu0 %v1900, 64
        %v1903 = vpop.permute.xlu0 %1902
        %v1905 = vmul.f32 %v1887, %v1903
        %v1906 = vstv %s1868
        %vm1907 = vcmp.lt.s32.totalorder %v1906, %v470
        %v1908 = vsel %vm1907, 1, 0
        %1909 = vset.pattern.permute.xlu0 0
        %1910 = vperm.xlu0 %1909, %v1908
        %v1911 = vpop.permute.xlu0 %1910
        %vm1912 = vcmp.eq.s32.totalorder %v1911, 1
        %v1913 = vsel %vm1912, %v1905, %v1757
        %v1914 = vsel %vm1912, %v1899, %v1758
        %1916 = vrot.lane.b32.xlu0 %v1866, 32
        %v1917 = vpop.permute.xlu0 %1916
        %s1919 = scalar_lea.vmem %s451, 48
        %1920 = vst.msk [vmem:[%s1919] sm:$0xff] %vm822, %v1917
        %1922 = vrot.lane.b32.xlu0 %v1913, 32
        %v1923 = vpop.permute.xlu0 %1922
        %s1925 = scalar_lea.vmem %s458, 72
        %1926 = vst.msk [vmem:[%s1925] sm:$0xff] %vm822, %v1923
        %s1927 = scalar_lea.vmem [#allocation2], 56
        %v1928 = vld [vmem:[%s1927] sm:$0xff]
        %v1929 = vsel %vm822, %v1917, 0
        %1931 = vmatpush.msra.mxu0 0.0
        %1932 = vmatpush.msra.mxu0 0.0
        %1933 = vmatpush.msra.mxu0 0.0
        %1934 = vmatpush.msra.mxu0 0.0
        %1935 = vmatpush.msra.mxu0 0.0
        %1936 = vmatpush.msra.mxu0 0.0
        %1937 = vmatpush.msra.mxu0 0.0
        %1938 = vmatpush.msra.mxu0 0.0
        %1939 = vmatpush.msra.mxu0 0.0
        %1940 = vmatpush.msra.mxu0 0.0
        %1941 = vmatpush.msra.mxu0 0.0
        %1942 = vmatpush.msra.mxu0 0.0
        %1943 = vmatpush.msra.mxu0 %v474
        %1944 = vmatpush.msra.mxu0 %v473
        %1945 = vmatpush.msra.mxu0 %v472
        %1946 = vmatpush.msra.mxu0 %v471
        %1947 = vmatmul.f32.gmra.mxu0 %v1929
        %v1948 = vpop.f32.mrf.mxu0
        %v1949 = vadd.f32 0.0, %v1948
        %1950 = vdwg.mxu0
        %v1951 = vadd.f32 %v1928, %v1949
        %s1952 = scalar_lea.vmem [#allocation3], 64
        %v1953 = vld [vmem:[%s1952] sm:$0xff]
        %v1954 = vsel %vm822, %v1923, 0
        %1956 = vmatpush.msra.mxu0 0.0
        %1957 = vmatpush.msra.mxu0 0.0
        %1958 = vmatpush.msra.mxu0 0.0
        %1959 = vmatpush.msra.mxu0 0.0
        %1960 = vmatpush.msra.mxu0 0.0
        %1961 = vmatpush.msra.mxu0 0.0
        %1962 = vmatpush.msra.mxu0 0.0
        %1963 = vmatpush.msra.mxu0 0.0
        %1964 = vmatpush.msra.mxu0 0.0
        %1965 = vmatpush.msra.mxu0 0.0
        %1966 = vmatpush.msra.mxu0 0.0
        %1967 = vmatpush.msra.mxu0 0.0
        %1968 = vmatpush.msra.mxu0 %v478
        %1969 = vmatpush.msra.mxu0 %v477
        %1970 = vmatpush.msra.mxu0 %v476
        %1971 = vmatpush.msra.mxu0 %v475
        %1972 = vmatmul.f32.gmra.mxu0 %v1954
        %v1973 = vpop.f32.mrf.mxu0
        %v1974 = vadd.f32 0.0, %v1973
        %1975 = vdwg.mxu0
        %v1976 = vadd.f32 %v1953, %v1974
        %s1977 = sadd.s32 %s814, 7
        %v1978 = vxor.u32 %v1951, 2147483648
        %v1979 = vmul.f32 %v1978, 1.442695
        %v1980 = vpow.pop %v1979
        %v1981 = vadd.f32 %v1980, 1.0
        %v1982 = vrcp.pop %v1981
        %v1983 = vmul.f32 %v1981, %v1982
        %v1984 = vsub.f32 1.0, %v1983
        %v1985 = vmul.f32 %v1982, %v1984
        %v1986 = vadd.f32 %v1982, %v1985
        %vm1987 = vweird.f32 %v1981
        %vm1988 = vweird.f32 %v1982
        %vm1989 = vmor %vm1987, %vm1988
        %v1990 = vsel %vm1989, %v1982, %v1986
        %v1991 = vand.u32 2147483647, %v1981
        %vm1992 = vcmp.eq.f32.partialorder %v1991, 8.507059e+37
        %v1993 = vand.u32 %v1981, 2147483648
        %v1994 = vor.u32 1.1754944e-38, %v1993
        %v1995 = vsel %vm1992, %v1994, %v1990
        %v1996 = vmul.f32 1.0, %v1995
        %v1997 = vtanh.pop %v1951
        %v1998 = vmul.f32 %v1996, %v1867
        %2000 = vrot.lane.b32.xlu0 %v1997, 64
        %v2001 = vpop.permute.xlu0 %2000
        %v2003 = vmul.f32 %v1996, %v2001
        %2005 = vrot.lane.b32.xlu0 %v2003, 32
        %v2006 = vpop.permute.xlu0 %2005
        %v2008 = vadd.f32 %v1998, %v2006
        %v2009 = vtanh.pop %v2008
        %2011 = vrot.lane.b32.xlu0 %v2009, 64
        %v2012 = vpop.permute.xlu0 %2011
        %v2014 = vmul.f32 %v1996, %v2012
        %v2015 = vstv %s1977
        %vm2016 = vcmp.lt.s32.totalorder %v2015, %v470
        %v2017 = vsel %vm2016, 1, 0
        %2018 = vset.pattern.permute.xlu0 0
        %2019 = vperm.xlu0 %2018, %v2017
        %v2020 = vpop.permute.xlu0 %2019
        %vm2021 = vcmp.eq.s32.totalorder %v2020, 1
        %v2022 = vsel %vm2021, %v2014, %v1866
        %v2023 = vsel %vm2021, %v2008, %v1867
        %s2024 = sadd.s32 %s816, 8
        %v2025 = vxor.u32 %v1976, 2147483648
        %v2026 = vmul.f32 %v2025, 1.442695
        %v2027 = vpow.pop %v2026
        %v2028 = vadd.f32 %v2027, 1.0
        %v2029 = vrcp.pop %v2028
        %v2030 = vmul.f32 %v2028, %v2029
        %v2031 = vsub.f32 1.0, %v2030
        %v2032 = vmul.f32 %v2029, %v2031
        %v2033 = vadd.f32 %v2029, %v2032
        %vm2034 = vweird.f32 %v2028
        %vm2035 = vweird.f32 %v2029
        %vm2036 = vmor %vm2034, %vm2035
        %v2037 = vsel %vm2036, %v2029, %v2033
        %v2038 = vand.u32 2147483647, %v2028
        %vm2039 = vcmp.eq.f32.partialorder %v2038, 8.507059e+37
        %v2040 = vand.u32 %v2028, 2147483648
        %v2041 = vor.u32 1.1754944e-38, %v2040
        %v2042 = vsel %vm2039, %v2041, %v2037
        %v2043 = vmul.f32 1.0, %v2042
        %v2044 = vtanh.pop %v1976
        %v2045 = vmul.f32 %v2043, %v1914
        %2047 = vrot.lane.b32.xlu0 %v2044, 64
        %v2048 = vpop.permute.xlu0 %2047
        %v2050 = vmul.f32 %v2043, %v2048
        %2052 = vrot.lane.b32.xlu0 %v2050, 32
        %v2053 = vpop.permute.xlu0 %2052
        %v2055 = vadd.f32 %v2045, %v2053
        %v2056 = vtanh.pop %v2055
        %2058 = vrot.lane.b32.xlu0 %v2056, 64
        %v2059 = vpop.permute.xlu0 %2058
        %v2061 = vmul.f32 %v2043, %v2059
        %v2062 = vstv %s2024
        %vm2063 = vcmp.lt.s32.totalorder %v2062, %v470
        %v2064 = vsel %vm2063, 1, 0
        %2065 = vset.pattern.permute.xlu0 0
        %2066 = vperm.xlu0 %2065, %v2064
        %v2067 = vpop.permute.xlu0 %2066
        %vm2068 = vcmp.eq.s32.totalorder %v2067, 1
        %v2069 = vsel %vm2068, %v2061, %v1913
        %v2070 = vsel %vm2068, %v2055, %v1914
        %2072 = vrot.lane.b32.xlu0 %v2022, 32
        %v2073 = vpop.permute.xlu0 %2072
        %s2075 = scalar_lea.vmem %s451, 56
        %2076 = vst.msk [vmem:[%s2075] sm:$0xff] %vm822, %v2073
        %2078 = vrot.lane.b32.xlu0 %v2069, 32
        %v2079 = vpop.permute.xlu0 %2078
        %s2081 = scalar_lea.vmem %s458, 64
        %2082 = vst.msk [vmem:[%s2081] sm:$0xff] %vm822, %v2079
        %s2083 = scalar_lea.vmem [#allocation2], 64
        %v2084 = vld [vmem:[%s2083] sm:$0xff]
        %v2085 = vsel %vm822, %v2073, 0
        %2087 = vmatpush.msra.mxu0 0.0
        %2088 = vmatpush.msra.mxu0 0.0
        %2089 = vmatpush.msra.mxu0 0.0
        %2090 = vmatpush.msra.mxu0 0.0
        %2091 = vmatpush.msra.mxu0 0.0
        %2092 = vmatpush.msra.mxu0 0.0
        %2093 = vmatpush.msra.mxu0 0.0
        %2094 = vmatpush.msra.mxu0 0.0
        %2095 = vmatpush.msra.mxu0 0.0
        %2096 = vmatpush.msra.mxu0 0.0
        %2097 = vmatpush.msra.mxu0 0.0
        %2098 = vmatpush.msra.mxu0 0.0
        %2099 = vmatpush.msra.mxu0 %v474
        %2100 = vmatpush.msra.mxu0 %v473
        %2101 = vmatpush.msra.mxu0 %v472
        %2102 = vmatpush.msra.mxu0 %v471
        %2103 = vmatmul.f32.gmra.mxu0 %v2085
        %v2104 = vpop.f32.mrf.mxu0
        %v2105 = vadd.f32 0.0, %v2104
        %2106 = vdwg.mxu0
        %v2107 = vadd.f32 %v2084, %v2105
        %s2108 = scalar_lea.vmem [#allocation3], 56
        %v2109 = vld [vmem:[%s2108] sm:$0xff]
        %v2110 = vsel %vm822, %v2079, 0
        %2112 = vmatpush.msra.mxu0 0.0
        %2113 = vmatpush.msra.mxu0 0.0
        %2114 = vmatpush.msra.mxu0 0.0
        %2115 = vmatpush.msra.mxu0 0.0
        %2116 = vmatpush.msra.mxu0 0.0
        %2117 = vmatpush.msra.mxu0 0.0
        %2118 = vmatpush.msra.mxu0 0.0
        %2119 = vmatpush.msra.mxu0 0.0
        %2120 = vmatpush.msra.mxu0 0.0
        %2121 = vmatpush.msra.mxu0 0.0
        %2122 = vmatpush.msra.mxu0 0.0
        %2123 = vmatpush.msra.mxu0 0.0
        %2124 = vmatpush.msra.mxu0 %v478
        %2125 = vmatpush.msra.mxu0 %v477
        %2126 = vmatpush.msra.mxu0 %v476
        %2127 = vmatpush.msra.mxu0 %v475
        %2128 = vmatmul.f32.gmra.mxu0 %v2110
        %v2129 = vpop.f32.mrf.mxu0
        %v2130 = vadd.f32 0.0, %v2129
        %2131 = vdwg.mxu0
        %v2132 = vadd.f32 %v2109, %v2130
        %s2133 = sadd.s32 %s814, 8
        %v2134 = vxor.u32 %v2107, 2147483648
        %v2135 = vmul.f32 %v2134, 1.442695
        %v2136 = vpow.pop %v2135
        %v2137 = vadd.f32 %v2136, 1.0
        %v2138 = vrcp.pop %v2137
        %v2139 = vmul.f32 %v2137, %v2138
        %v2140 = vsub.f32 1.0, %v2139
        %v2141 = vmul.f32 %v2138, %v2140
        %v2142 = vadd.f32 %v2138, %v2141
        %vm2143 = vweird.f32 %v2137
        %vm2144 = vweird.f32 %v2138
        %vm2145 = vmor %vm2143, %vm2144
        %v2146 = vsel %vm2145, %v2138, %v2142
        %v2147 = vand.u32 2147483647, %v2137
        %vm2148 = vcmp.eq.f32.partialorder %v2147, 8.507059e+37
        %v2149 = vand.u32 %v2137, 2147483648
        %v2150 = vor.u32 1.1754944e-38, %v2149
        %v2151 = vsel %vm2148, %v2150, %v2146
        %v2152 = vmul.f32 1.0, %v2151
        %v2153 = vtanh.pop %v2107
        %v2154 = vmul.f32 %v2152, %v2023
        %2156 = vrot.lane.b32.xlu0 %v2153, 64
        %v2157 = vpop.permute.xlu0 %2156
        %v2159 = vmul.f32 %v2152, %v2157
        %2161 = vrot.lane.b32.xlu0 %v2159, 32
        %v2162 = vpop.permute.xlu0 %2161
        %v2164 = vadd.f32 %v2154, %v2162
        %v2165 = vtanh.pop %v2164
        %2167 = vrot.lane.b32.xlu0 %v2165, 64
        %v2168 = vpop.permute.xlu0 %2167
        %v2170 = vmul.f32 %v2152, %v2168
        %v2171 = vstv %s2133
        %vm2172 = vcmp.lt.s32.totalorder %v2171, %v470
        %v2173 = vsel %vm2172, 1, 0
        %2174 = vset.pattern.permute.xlu0 0
        %2175 = vperm.xlu0 %2174, %v2173
        %v2176 = vpop.permute.xlu0 %2175
        %vm2177 = vcmp.eq.s32.totalorder %v2176, 1
        %v2178 = vsel %vm2177, %v2170, %v2022
        %v2179 = vsel %vm2177, %v2164, %v2023
        %s2180 = sadd.s32 %s816, 7
        %v2181 = vxor.u32 %v2132, 2147483648
        %v2182 = vmul.f32 %v2181, 1.442695
        %v2183 = vpow.pop %v2182
        %v2184 = vadd.f32 %v2183, 1.0
        %v2185 = vrcp.pop %v2184
        %v2186 = vmul.f32 %v2184, %v2185
        %v2187 = vsub.f32 1.0, %v2186
        %v2188 = vmul.f32 %v2185, %v2187
        %v2189 = vadd.f32 %v2185, %v2188
        %vm2190 = vweird.f32 %v2184
        %vm2191 = vweird.f32 %v2185
        %vm2192 = vmor %vm2190, %vm2191
        %v2193 = vsel %vm2192, %v2185, %v2189
        %v2194 = vand.u32 2147483647, %v2184
        %vm2195 = vcmp.eq.f32.partialorder %v2194, 8.507059e+37
        %v2196 = vand.u32 %v2184, 2147483648
        %v2197 = vor.u32 1.1754944e-38, %v2196
        %v2198 = vsel %vm2195, %v2197, %v2193
        %v2199 = vmul.f32 1.0, %v2198
        %v2200 = vtanh.pop %v2132
        %v2201 = vmul.f32 %v2199, %v2070
        %2203 = vrot.lane.b32.xlu0 %v2200, 64
        %v2204 = vpop.permute.xlu0 %2203
        %v2206 = vmul.f32 %v2199, %v2204
        %2208 = vrot.lane.b32.xlu0 %v2206, 32
        %v2209 = vpop.permute.xlu0 %2208
        %v2211 = vadd.f32 %v2201, %v2209
        %v2212 = vtanh.pop %v2211
        %2214 = vrot.lane.b32.xlu0 %v2212, 64
        %v2215 = vpop.permute.xlu0 %2214
        %v2217 = vmul.f32 %v2199, %v2215
        %v2218 = vstv %s2180
        %vm2219 = vcmp.lt.s32.totalorder %v2218, %v470
        %v2220 = vsel %vm2219, 1, 0
        %2221 = vset.pattern.permute.xlu0 0
        %2222 = vperm.xlu0 %2221, %v2220
        %v2223 = vpop.permute.xlu0 %2222
        %vm2224 = vcmp.eq.s32.totalorder %v2223, 1
        %v2225 = vsel %vm2224, %v2217, %v2069
        %v2226 = vsel %vm2224, %v2211, %v2070
        %2228 = vrot.lane.b32.xlu0 %v2178, 32
        %v2229 = vpop.permute.xlu0 %2228
        %s2231 = scalar_lea.vmem %s451, 64
        %2232 = vst.msk [vmem:[%s2231] sm:$0xff] %vm822, %v2229
        %2234 = vrot.lane.b32.xlu0 %v2225, 32
        %v2235 = vpop.permute.xlu0 %2234
        %s2237 = scalar_lea.vmem %s458, 56
        %2238 = vst.msk [vmem:[%s2237] sm:$0xff] %vm822, %v2235
        %s2239 = scalar_lea.vmem [#allocation2], 72
        %v2240 = vld [vmem:[%s2239] sm:$0xff]
        %v2241 = vsel %vm822, %v2229, 0
        %2243 = vmatpush.msra.mxu0 0.0
        %2244 = vmatpush.msra.mxu0 0.0
        %2245 = vmatpush.msra.mxu0 0.0
        %2246 = vmatpush.msra.mxu0 0.0
        %2247 = vmatpush.msra.mxu0 0.0
        %2248 = vmatpush.msra.mxu0 0.0
        %2249 = vmatpush.msra.mxu0 0.0
        %2250 = vmatpush.msra.mxu0 0.0
        %2251 = vmatpush.msra.mxu0 0.0
        %2252 = vmatpush.msra.mxu0 0.0
        %2253 = vmatpush.msra.mxu0 0.0
        %2254 = vmatpush.msra.mxu0 0.0
        %2255 = vmatpush.msra.mxu0 %v474
        %2256 = vmatpush.msra.mxu0 %v473
        %2257 = vmatpush.msra.mxu0 %v472
        %2258 = vmatpush.msra.mxu0 %v471
        %2259 = vmatmul.f32.gmra.mxu0 %v2241
        %v2260 = vpop.f32.mrf.mxu0
        %v2261 = vadd.f32 0.0, %v2260
        %2262 = vdwg.mxu0
        %v2263 = vadd.f32 %v2240, %v2261
        %s2264 = scalar_lea.vmem [#allocation3], 48
        %v2265 = vld [vmem:[%s2264] sm:$0xff]
        %v2266 = vsel %vm822, %v2235, 0
        %2268 = vmatpush.msra.mxu0 0.0
        %2269 = vmatpush.msra.mxu0 0.0
        %2270 = vmatpush.msra.mxu0 0.0
        %2271 = vmatpush.msra.mxu0 0.0
        %2272 = vmatpush.msra.mxu0 0.0
        %2273 = vmatpush.msra.mxu0 0.0
        %2274 = vmatpush.msra.mxu0 0.0
        %2275 = vmatpush.msra.mxu0 0.0
        %2276 = vmatpush.msra.mxu0 0.0
        %2277 = vmatpush.msra.mxu0 0.0
        %2278 = vmatpush.msra.mxu0 0.0
        %2279 = vmatpush.msra.mxu0 0.0
        %2280 = vmatpush.msra.mxu0 %v478
        %2281 = vmatpush.msra.mxu0 %v477
        %2282 = vmatpush.msra.mxu0 %v476
        %2283 = vmatpush.msra.mxu0 %v475
        %2284 = vmatmul.f32.gmra.mxu0 %v2266
        %v2285 = vpop.f32.mrf.mxu0
        %v2286 = vadd.f32 0.0, %v2285
        %2287 = vdwg.mxu0
        %v2288 = vadd.f32 %v2265, %v2286
        %s2289 = sadd.s32 %s814, 9
        %v2290 = vxor.u32 %v2263, 2147483648
        %v2291 = vmul.f32 %v2290, 1.442695
        %v2292 = vpow.pop %v2291
        %v2293 = vadd.f32 %v2292, 1.0
        %v2294 = vrcp.pop %v2293
        %v2295 = vmul.f32 %v2293, %v2294
        %v2296 = vsub.f32 1.0, %v2295
        %v2297 = vmul.f32 %v2294, %v2296
        %v2298 = vadd.f32 %v2294, %v2297
        %vm2299 = vweird.f32 %v2293
        %vm2300 = vweird.f32 %v2294
        %vm2301 = vmor %vm2299, %vm2300
        %v2302 = vsel %vm2301, %v2294, %v2298
        %v2303 = vand.u32 2147483647, %v2293
        %vm2304 = vcmp.eq.f32.partialorder %v2303, 8.507059e+37
        %v2305 = vand.u32 %v2293, 2147483648
        %v2306 = vor.u32 1.1754944e-38, %v2305
        %v2307 = vsel %vm2304, %v2306, %v2302
        %v2308 = vmul.f32 1.0, %v2307
        %v2309 = vtanh.pop %v2263
        %v2310 = vmul.f32 %v2308, %v2179
        %2312 = vrot.lane.b32.xlu0 %v2309, 64
        %v2313 = vpop.permute.xlu0 %2312
        %v2315 = vmul.f32 %v2308, %v2313
        %2317 = vrot.lane.b32.xlu0 %v2315, 32
        %v2318 = vpop.permute.xlu0 %2317
        %v2320 = vadd.f32 %v2310, %v2318
        %v2321 = vtanh.pop %v2320
        %2323 = vrot.lane.b32.xlu0 %v2321, 64
        %v2324 = vpop.permute.xlu0 %2323
        %v2326 = vmul.f32 %v2308, %v2324
        %v2327 = vstv %s2289
        %vm2328 = vcmp.lt.s32.totalorder %v2327, %v470
        %v2329 = vsel %vm2328, 1, 0
        %2330 = vset.pattern.permute.xlu0 0
        %2331 = vperm.xlu0 %2330, %v2329
        %v2332 = vpop.permute.xlu0 %2331
        %vm2333 = vcmp.eq.s32.totalorder %v2332, 1
        %v2334 = vsel %vm2333, %v2326, %v2178
        %v2335 = vsel %vm2333, %v2320, %v2179
        %s2336 = sadd.s32 %s816, 6
        %v2337 = vxor.u32 %v2288, 2147483648
        %v2338 = vmul.f32 %v2337, 1.442695
        %v2339 = vpow.pop %v2338
        %v2340 = vadd.f32 %v2339, 1.0
        %v2341 = vrcp.pop %v2340
        %v2342 = vmul.f32 %v2340, %v2341
        %v2343 = vsub.f32 1.0, %v2342
        %v2344 = vmul.f32 %v2341, %v2343
        %v2345 = vadd.f32 %v2341, %v2344
        %vm2346 = vweird.f32 %v2340
        %vm2347 = vweird.f32 %v2341
        %vm2348 = vmor %vm2346, %vm2347
        %v2349 = vsel %vm2348, %v2341, %v2345
        %v2350 = vand.u32 2147483647, %v2340
        %vm2351 = vcmp.eq.f32.partialorder %v2350, 8.507059e+37
        %v2352 = vand.u32 %v2340, 2147483648
        %v2353 = vor.u32 1.1754944e-38, %v2352
        %v2354 = vsel %vm2351, %v2353, %v2349
        %v2355 = vmul.f32 1.0, %v2354
        %v2356 = vtanh.pop %v2288
        %v2357 = vmul.f32 %v2355, %v2226
        %2359 = vrot.lane.b32.xlu0 %v2356, 64
        %v2360 = vpop.permute.xlu0 %2359
        %v2362 = vmul.f32 %v2355, %v2360
        %2364 = vrot.lane.b32.xlu0 %v2362, 32
        %v2365 = vpop.permute.xlu0 %2364
        %v2367 = vadd.f32 %v2357, %v2365
        %v2368 = vtanh.pop %v2367
        %2370 = vrot.lane.b32.xlu0 %v2368, 64
        %v2371 = vpop.permute.xlu0 %2370
        %v2373 = vmul.f32 %v2355, %v2371
        %v2374 = vstv %s2336
        %vm2375 = vcmp.lt.s32.totalorder %v2374, %v470
        %v2376 = vsel %vm2375, 1, 0
        %2377 = vset.pattern.permute.xlu0 0
        %2378 = vperm.xlu0 %2377, %v2376
        %v2379 = vpop.permute.xlu0 %2378
        %vm2380 = vcmp.eq.s32.totalorder %v2379, 1
        %v2381 = vsel %vm2380, %v2373, %v2225
        %v2382 = vsel %vm2380, %v2367, %v2226
        %2384 = vrot.lane.b32.xlu0 %v2334, 32
        %v2385 = vpop.permute.xlu0 %2384
        %s2387 = scalar_lea.vmem %s451, 72
        %2388 = vst.msk [vmem:[%s2387] sm:$0xff] %vm822, %v2385
        %2390 = vrot.lane.b32.xlu0 %v2381, 32
        %v2391 = vpop.permute.xlu0 %2390
        %s2393 = scalar_lea.vmem %s458, 48
        %2394 = vst.msk [vmem:[%s2393] sm:$0xff] %vm822, %v2391
        %s2395 = scalar_lea.vmem [#allocation2], 80
        %v2396 = vld [vmem:[%s2395] sm:$0xff]
        %v2397 = vsel %vm822, %v2385, 0
        %2399 = vmatpush.msra.mxu0 0.0
        %2400 = vmatpush.msra.mxu0 0.0
        %2401 = vmatpush.msra.mxu0 0.0
        %2402 = vmatpush.msra.mxu0 0.0
        %2403 = vmatpush.msra.mxu0 0.0
        %2404 = vmatpush.msra.mxu0 0.0
        %2405 = vmatpush.msra.mxu0 0.0
        %2406 = vmatpush.msra.mxu0 0.0
        %2407 = vmatpush.msra.mxu0 0.0
        %2408 = vmatpush.msra.mxu0 0.0
        %2409 = vmatpush.msra.mxu0 0.0
        %2410 = vmatpush.msra.mxu0 0.0
        %2411 = vmatpush.msra.mxu0 %v474
        %2412 = vmatpush.msra.mxu0 %v473
        %2413 = vmatpush.msra.mxu0 %v472
        %2414 = vmatpush.msra.mxu0 %v471
        %2415 = vmatmul.f32.gmra.mxu0 %v2397
        %v2416 = vpop.f32.mrf.mxu0
        %v2417 = vadd.f32 0.0, %v2416
        %2418 = vdwg.mxu0
        %v2419 = vadd.f32 %v2396, %v2417
        %s2420 = scalar_lea.vmem [#allocation3], 40
        %v2421 = vld [vmem:[%s2420] sm:$0xff]
        %v2422 = vsel %vm822, %v2391, 0
        %2424 = vmatpush.msra.mxu0 0.0
        %2425 = vmatpush.msra.mxu0 0.0
        %2426 = vmatpush.msra.mxu0 0.0
        %2427 = vmatpush.msra.mxu0 0.0
        %2428 = vmatpush.msra.mxu0 0.0
        %2429 = vmatpush.msra.mxu0 0.0
        %2430 = vmatpush.msra.mxu0 0.0
        %2431 = vmatpush.msra.mxu0 0.0
        %2432 = vmatpush.msra.mxu0 0.0
        %2433 = vmatpush.msra.mxu0 0.0
        %2434 = vmatpush.msra.mxu0 0.0
        %2435 = vmatpush.msra.mxu0 0.0
        %2436 = vmatpush.msra.mxu0 %v478
        %2437 = vmatpush.msra.mxu0 %v477
        %2438 = vmatpush.msra.mxu0 %v476
        %2439 = vmatpush.msra.mxu0 %v475
        %2440 = vmatmul.f32.gmra.mxu0 %v2422
        %v2441 = vpop.f32.mrf.mxu0
        %v2442 = vadd.f32 0.0, %v2441
        %2443 = vdwg.mxu0
        %v2444 = vadd.f32 %v2421, %v2442
        %s2445 = sadd.s32 %s814, 10
        %v2446 = vxor.u32 %v2419, 2147483648
        %v2447 = vmul.f32 %v2446, 1.442695
        %v2448 = vpow.pop %v2447
        %v2449 = vadd.f32 %v2448, 1.0
        %v2450 = vrcp.pop %v2449
        %v2451 = vmul.f32 %v2449, %v2450
        %v2452 = vsub.f32 1.0, %v2451
        %v2453 = vmul.f32 %v2450, %v2452
        %v2454 = vadd.f32 %v2450, %v2453
        %vm2455 = vweird.f32 %v2449
        %vm2456 = vweird.f32 %v2450
        %vm2457 = vmor %vm2455, %vm2456
        %v2458 = vsel %vm2457, %v2450, %v2454
        %v2459 = vand.u32 2147483647, %v2449
        %vm2460 = vcmp.eq.f32.partialorder %v2459, 8.507059e+37
        %v2461 = vand.u32 %v2449, 2147483648
        %v2462 = vor.u32 1.1754944e-38, %v2461
        %v2463 = vsel %vm2460, %v2462, %v2458
        %v2464 = vmul.f32 1.0, %v2463
        %v2465 = vtanh.pop %v2419
        %v2466 = vmul.f32 %v2464, %v2335
        %2468 = vrot.lane.b32.xlu0 %v2465, 64
        %v2469 = vpop.permute.xlu0 %2468
        %v2471 = vmul.f32 %v2464, %v2469
        %2473 = vrot.lane.b32.xlu0 %v2471, 32
        %v2474 = vpop.permute.xlu0 %2473
        %v2476 = vadd.f32 %v2466, %v2474
        %v2477 = vtanh.pop %v2476
        %2479 = vrot.lane.b32.xlu0 %v2477, 64
        %v2480 = vpop.permute.xlu0 %2479
        %v2482 = vmul.f32 %v2464, %v2480
        %v2483 = vstv %s2445
        %vm2484 = vcmp.lt.s32.totalorder %v2483, %v470
        %v2485 = vsel %vm2484, 1, 0
        %2486 = vset.pattern.permute.xlu0 0
        %2487 = vperm.xlu0 %2486, %v2485
        %v2488 = vpop.permute.xlu0 %2487
        %vm2489 = vcmp.eq.s32.totalorder %v2488, 1
        %v2490 = vsel %vm2489, %v2482, %v2334
        %v2491 = vsel %vm2489, %v2476, %v2335
        %s2492 = sadd.s32 %s816, 5
        %v2493 = vxor.u32 %v2444, 2147483648
        %v2494 = vmul.f32 %v2493, 1.442695
        %v2495 = vpow.pop %v2494
        %v2496 = vadd.f32 %v2495, 1.0
        %v2497 = vrcp.pop %v2496
        %v2498 = vmul.f32 %v2496, %v2497
        %v2499 = vsub.f32 1.0, %v2498
        %v2500 = vmul.f32 %v2497, %v2499
        %v2501 = vadd.f32 %v2497, %v2500
        %vm2502 = vweird.f32 %v2496
        %vm2503 = vweird.f32 %v2497
        %vm2504 = vmor %vm2502, %vm2503
        %v2505 = vsel %vm2504, %v2497, %v2501
        %v2506 = vand.u32 2147483647, %v2496
        %vm2507 = vcmp.eq.f32.partialorder %v2506, 8.507059e+37
        %v2508 = vand.u32 %v2496, 2147483648
        %v2509 = vor.u32 1.1754944e-38, %v2508
        %v2510 = vsel %vm2507, %v2509, %v2505
        %v2511 = vmul.f32 1.0, %v2510
        %v2512 = vtanh.pop %v2444
        %v2513 = vmul.f32 %v2511, %v2382
        %2515 = vrot.lane.b32.xlu0 %v2512, 64
        %v2516 = vpop.permute.xlu0 %2515
        %v2518 = vmul.f32 %v2511, %v2516
        %2520 = vrot.lane.b32.xlu0 %v2518, 32
        %v2521 = vpop.permute.xlu0 %2520
        %v2523 = vadd.f32 %v2513, %v2521
        %v2524 = vtanh.pop %v2523
        %2526 = vrot.lane.b32.xlu0 %v2524, 64
        %v2527 = vpop.permute.xlu0 %2526
        %v2529 = vmul.f32 %v2511, %v2527
        %v2530 = vstv %s2492
        %vm2531 = vcmp.lt.s32.totalorder %v2530, %v470
        %v2532 = vsel %vm2531, 1, 0
        %2533 = vset.pattern.permute.xlu0 0
        %2534 = vperm.xlu0 %2533, %v2532
        %v2535 = vpop.permute.xlu0 %2534
        %vm2536 = vcmp.eq.s32.totalorder %v2535, 1
        %v2537 = vsel %vm2536, %v2529, %v2381
        %v2538 = vsel %vm2536, %v2523, %v2382
        %2540 = vrot.lane.b32.xlu0 %v2490, 32
        %v2541 = vpop.permute.xlu0 %2540
        %s2543 = scalar_lea.vmem %s451, 80
        %2544 = vst.msk [vmem:[%s2543] sm:$0xff] %vm822, %v2541
        %2546 = vrot.lane.b32.xlu0 %v2537, 32
        %v2547 = vpop.permute.xlu0 %2546
        %s2549 = scalar_lea.vmem %s458, 40
        %2550 = vst.msk [vmem:[%s2549] sm:$0xff] %vm822, %v2547
        %s2551 = scalar_lea.vmem [#allocation2], 88
        %v2552 = vld [vmem:[%s2551] sm:$0xff]
        %v2553 = vsel %vm822, %v2541, 0
        %2555 = vmatpush.msra.mxu0 0.0
        %2556 = vmatpush.msra.mxu0 0.0
        %2557 = vmatpush.msra.mxu0 0.0
        %2558 = vmatpush.msra.mxu0 0.0
        %2559 = vmatpush.msra.mxu0 0.0
        %2560 = vmatpush.msra.mxu0 0.0
        %2561 = vmatpush.msra.mxu0 0.0
        %2562 = vmatpush.msra.mxu0 0.0
        %2563 = vmatpush.msra.mxu0 0.0
        %2564 = vmatpush.msra.mxu0 0.0
        %2565 = vmatpush.msra.mxu0 0.0
        %2566 = vmatpush.msra.mxu0 0.0
        %2567 = vmatpush.msra.mxu0 %v474
        %2568 = vmatpush.msra.mxu0 %v473
        %2569 = vmatpush.msra.mxu0 %v472
        %2570 = vmatpush.msra.mxu0 %v471
        %2571 = vmatmul.f32.gmra.mxu0 %v2553
        %v2572 = vpop.f32.mrf.mxu0
        %v2573 = vadd.f32 0.0, %v2572
        %2574 = vdwg.mxu0
        %v2575 = vadd.f32 %v2552, %v2573
        %s2576 = scalar_lea.vmem [#allocation3], 32
        %v2577 = vld [vmem:[%s2576] sm:$0xff]
        %v2578 = vsel %vm822, %v2547, 0
        %2580 = vmatpush.msra.mxu0 0.0
        %2581 = vmatpush.msra.mxu0 0.0
        %2582 = vmatpush.msra.mxu0 0.0
        %2583 = vmatpush.msra.mxu0 0.0
        %2584 = vmatpush.msra.mxu0 0.0
        %2585 = vmatpush.msra.mxu0 0.0
        %2586 = vmatpush.msra.mxu0 0.0
        %2587 = vmatpush.msra.mxu0 0.0
        %2588 = vmatpush.msra.mxu0 0.0
        %2589 = vmatpush.msra.mxu0 0.0
        %2590 = vmatpush.msra.mxu0 0.0
        %2591 = vmatpush.msra.mxu0 0.0
        %2592 = vmatpush.msra.mxu0 %v478
        %2593 = vmatpush.msra.mxu0 %v477
        %2594 = vmatpush.msra.mxu0 %v476
        %2595 = vmatpush.msra.mxu0 %v475
        %2596 = vmatmul.f32.gmra.mxu0 %v2578
        %v2597 = vpop.f32.mrf.mxu0
        %v2598 = vadd.f32 0.0, %v2597
        %2599 = vdwg.mxu0
        %v2600 = vadd.f32 %v2577, %v2598
        %s2601 = sadd.s32 %s814, 11
        %v2602 = vxor.u32 %v2575, 2147483648
        %v2603 = vmul.f32 %v2602, 1.442695
        %v2604 = vpow.pop %v2603
        %v2605 = vadd.f32 %v2604, 1.0
        %v2606 = vrcp.pop %v2605
        %v2607 = vmul.f32 %v2605, %v2606
        %v2608 = vsub.f32 1.0, %v2607
        %v2609 = vmul.f32 %v2606, %v2608
        %v2610 = vadd.f32 %v2606, %v2609
        %vm2611 = vweird.f32 %v2605
        %vm2612 = vweird.f32 %v2606
        %vm2613 = vmor %vm2611, %vm2612
        %v2614 = vsel %vm2613, %v2606, %v2610
        %v2615 = vand.u32 2147483647, %v2605
        %vm2616 = vcmp.eq.f32.partialorder %v2615, 8.507059e+37
        %v2617 = vand.u32 %v2605, 2147483648
        %v2618 = vor.u32 1.1754944e-38, %v2617
        %v2619 = vsel %vm2616, %v2618, %v2614
        %v2620 = vmul.f32 1.0, %v2619
        %v2621 = vtanh.pop %v2575
        %v2622 = vmul.f32 %v2620, %v2491
        %2624 = vrot.lane.b32.xlu0 %v2621, 64
        %v2625 = vpop.permute.xlu0 %2624
        %v2627 = vmul.f32 %v2620, %v2625
        %2629 = vrot.lane.b32.xlu0 %v2627, 32
        %v2630 = vpop.permute.xlu0 %2629
        %v2632 = vadd.f32 %v2622, %v2630
        %v2633 = vtanh.pop %v2632
        %2635 = vrot.lane.b32.xlu0 %v2633, 64
        %v2636 = vpop.permute.xlu0 %2635
        %v2638 = vmul.f32 %v2620, %v2636
        %v2639 = vstv %s2601
        %vm2640 = vcmp.lt.s32.totalorder %v2639, %v470
        %v2641 = vsel %vm2640, 1, 0
        %2642 = vset.pattern.permute.xlu0 0
        %2643 = vperm.xlu0 %2642, %v2641
        %v2644 = vpop.permute.xlu0 %2643
        %vm2645 = vcmp.eq.s32.totalorder %v2644, 1
        %v2646 = vsel %vm2645, %v2638, %v2490
        %v2647 = vsel %vm2645, %v2632, %v2491
        %s2648 = sadd.s32 %s816, 4
        %v2649 = vxor.u32 %v2600, 2147483648
        %v2650 = vmul.f32 %v2649, 1.442695
        %v2651 = vpow.pop %v2650
        %v2652 = vadd.f32 %v2651, 1.0
        %v2653 = vrcp.pop %v2652
        %v2654 = vmul.f32 %v2652, %v2653
        %v2655 = vsub.f32 1.0, %v2654
        %v2656 = vmul.f32 %v2653, %v2655
        %v2657 = vadd.f32 %v2653, %v2656
        %vm2658 = vweird.f32 %v2652
        %vm2659 = vweird.f32 %v2653
        %vm2660 = vmor %vm2658, %vm2659
        %v2661 = vsel %vm2660, %v2653, %v2657
        %v2662 = vand.u32 2147483647, %v2652
        %vm2663 = vcmp.eq.f32.partialorder %v2662, 8.507059e+37
        %v2664 = vand.u32 %v2652, 2147483648
        %v2665 = vor.u32 1.1754944e-38, %v2664
        %v2666 = vsel %vm2663, %v2665, %v2661
        %v2667 = vmul.f32 1.0, %v2666
        %v2668 = vtanh.pop %v2600
        %v2669 = vmul.f32 %v2667, %v2538
        %2671 = vrot.lane.b32.xlu0 %v2668, 64
        %v2672 = vpop.permute.xlu0 %2671
        %v2674 = vmul.f32 %v2667, %v2672
        %2676 = vrot.lane.b32.xlu0 %v2674, 32
        %v2677 = vpop.permute.xlu0 %2676
        %v2679 = vadd.f32 %v2669, %v2677
        %v2680 = vtanh.pop %v2679
        %2682 = vrot.lane.b32.xlu0 %v2680, 64
        %v2683 = vpop.permute.xlu0 %2682
        %v2685 = vmul.f32 %v2667, %v2683
        %v2686 = vstv %s2648
        %vm2687 = vcmp.lt.s32.totalorder %v2686, %v470
        %v2688 = vsel %vm2687, 1, 0
        %2689 = vset.pattern.permute.xlu0 0
        %2690 = vperm.xlu0 %2689, %v2688
        %v2691 = vpop.permute.xlu0 %2690
        %vm2692 = vcmp.eq.s32.totalorder %v2691, 1
        %v2693 = vsel %vm2692, %v2685, %v2537
        %v2694 = vsel %vm2692, %v2679, %v2538
        %2696 = vrot.lane.b32.xlu0 %v2646, 32
        %v2697 = vpop.permute.xlu0 %2696
        %s2699 = scalar_lea.vmem %s451, 88
        %2700 = vst.msk [vmem:[%s2699] sm:$0xff] %vm822, %v2697
        %2702 = vrot.lane.b32.xlu0 %v2693, 32
        %v2703 = vpop.permute.xlu0 %2702
        %s2705 = scalar_lea.vmem %s458, 32
        %2706 = vst.msk [vmem:[%s2705] sm:$0xff] %vm822, %v2703
        %s2707 = scalar_lea.vmem [#allocation2], 96
        %v2708 = vld [vmem:[%s2707] sm:$0xff]
        %v2709 = vsel %vm822, %v2697, 0
        %2711 = vmatpush.msra.mxu0 0.0
        %2712 = vmatpush.msra.mxu0 0.0
        %2713 = vmatpush.msra.mxu0 0.0
        %2714 = vmatpush.msra.mxu0 0.0
        %2715 = vmatpush.msra.mxu0 0.0
        %2716 = vmatpush.msra.mxu0 0.0
        %2717 = vmatpush.msra.mxu0 0.0
        %2718 = vmatpush.msra.mxu0 0.0
        %2719 = vmatpush.msra.mxu0 0.0
        %2720 = vmatpush.msra.mxu0 0.0
        %2721 = vmatpush.msra.mxu0 0.0
        %2722 = vmatpush.msra.mxu0 0.0
        %2723 = vmatpush.msra.mxu0 %v474
        %2724 = vmatpush.msra.mxu0 %v473
        %2725 = vmatpush.msra.mxu0 %v472
        %2726 = vmatpush.msra.mxu0 %v471
        %2727 = vmatmul.f32.gmra.mxu0 %v2709
        %v2728 = vpop.f32.mrf.mxu0
        %v2729 = vadd.f32 0.0, %v2728
        %2730 = vdwg.mxu0
        %v2731 = vadd.f32 %v2708, %v2729
        %s2732 = scalar_lea.vmem [#allocation3], 24
        %v2733 = vld [vmem:[%s2732] sm:$0xff]
        %v2734 = vsel %vm822, %v2703, 0
        %2736 = vmatpush.msra.mxu0 0.0
        %2737 = vmatpush.msra.mxu0 0.0
        %2738 = vmatpush.msra.mxu0 0.0
        %2739 = vmatpush.msra.mxu0 0.0
        %2740 = vmatpush.msra.mxu0 0.0
        %2741 = vmatpush.msra.mxu0 0.0
        %2742 = vmatpush.msra.mxu0 0.0
        %2743 = vmatpush.msra.mxu0 0.0
        %2744 = vmatpush.msra.mxu0 0.0
        %2745 = vmatpush.msra.mxu0 0.0
        %2746 = vmatpush.msra.mxu0 0.0
        %2747 = vmatpush.msra.mxu0 0.0
        %2748 = vmatpush.msra.mxu0 %v478
        %2749 = vmatpush.msra.mxu0 %v477
        %2750 = vmatpush.msra.mxu0 %v476
        %2751 = vmatpush.msra.mxu0 %v475
        %2752 = vmatmul.f32.gmra.mxu0 %v2734
        %v2753 = vpop.f32.mrf.mxu0
        %v2754 = vadd.f32 0.0, %v2753
        %2755 = vdwg.mxu0
        %v2756 = vadd.f32 %v2733, %v2754
        %s2757 = sadd.s32 %s814, 12
        %v2758 = vxor.u32 %v2731, 2147483648
        %v2759 = vmul.f32 %v2758, 1.442695
        %v2760 = vpow.pop %v2759
        %v2761 = vadd.f32 %v2760, 1.0
        %v2762 = vrcp.pop %v2761
        %v2763 = vmul.f32 %v2761, %v2762
        %v2764 = vsub.f32 1.0, %v2763
        %v2765 = vmul.f32 %v2762, %v2764
        %v2766 = vadd.f32 %v2762, %v2765
        %vm2767 = vweird.f32 %v2761
        %vm2768 = vweird.f32 %v2762
        %vm2769 = vmor %vm2767, %vm2768
        %v2770 = vsel %vm2769, %v2762, %v2766
        %v2771 = vand.u32 2147483647, %v2761
        %vm2772 = vcmp.eq.f32.partialorder %v2771, 8.507059e+37
        %v2773 = vand.u32 %v2761, 2147483648
        %v2774 = vor.u32 1.1754944e-38, %v2773
        %v2775 = vsel %vm2772, %v2774, %v2770
        %v2776 = vmul.f32 1.0, %v2775
        %v2777 = vtanh.pop %v2731
        %v2778 = vmul.f32 %v2776, %v2647
        %2780 = vrot.lane.b32.xlu0 %v2777, 64
        %v2781 = vpop.permute.xlu0 %2780
        %v2783 = vmul.f32 %v2776, %v2781
        %2785 = vrot.lane.b32.xlu0 %v2783, 32
        %v2786 = vpop.permute.xlu0 %2785
        %v2788 = vadd.f32 %v2778, %v2786
        %v2789 = vtanh.pop %v2788
        %2791 = vrot.lane.b32.xlu0 %v2789, 64
        %v2792 = vpop.permute.xlu0 %2791
        %v2794 = vmul.f32 %v2776, %v2792
        %v2795 = vstv %s2757
        %vm2796 = vcmp.lt.s32.totalorder %v2795, %v470
        %v2797 = vsel %vm2796, 1, 0
        %2798 = vset.pattern.permute.xlu0 0
        %2799 = vperm.xlu0 %2798, %v2797
        %v2800 = vpop.permute.xlu0 %2799
        %vm2801 = vcmp.eq.s32.totalorder %v2800, 1
        %v2802 = vsel %vm2801, %v2794, %v2646
        %v2803 = vsel %vm2801, %v2788, %v2647
        %s2804 = sadd.s32 %s816, 3
        %v2805 = vxor.u32 %v2756, 2147483648
        %v2806 = vmul.f32 %v2805, 1.442695
        %v2807 = vpow.pop %v2806
        %v2808 = vadd.f32 %v2807, 1.0
        %v2809 = vrcp.pop %v2808
        %v2810 = vmul.f32 %v2808, %v2809
        %v2811 = vsub.f32 1.0, %v2810
        %v2812 = vmul.f32 %v2809, %v2811
        %v2813 = vadd.f32 %v2809, %v2812
        %vm2814 = vweird.f32 %v2808
        %vm2815 = vweird.f32 %v2809
        %vm2816 = vmor %vm2814, %vm2815
        %v2817 = vsel %vm2816, %v2809, %v2813
        %v2818 = vand.u32 2147483647, %v2808
        %vm2819 = vcmp.eq.f32.partialorder %v2818, 8.507059e+37
        %v2820 = vand.u32 %v2808, 2147483648
        %v2821 = vor.u32 1.1754944e-38, %v2820
        %v2822 = vsel %vm2819, %v2821, %v2817
        %v2823 = vmul.f32 1.0, %v2822
        %v2824 = vtanh.pop %v2756
        %v2825 = vmul.f32 %v2823, %v2694
        %2827 = vrot.lane.b32.xlu0 %v2824, 64
        %v2828 = vpop.permute.xlu0 %2827
        %v2830 = vmul.f32 %v2823, %v2828
        %2832 = vrot.lane.b32.xlu0 %v2830, 32
        %v2833 = vpop.permute.xlu0 %2832
        %v2835 = vadd.f32 %v2825, %v2833
        %v2836 = vtanh.pop %v2835
        %2838 = vrot.lane.b32.xlu0 %v2836, 64
        %v2839 = vpop.permute.xlu0 %2838
        %v2841 = vmul.f32 %v2823, %v2839
        %v2842 = vstv %s2804
        %vm2843 = vcmp.lt.s32.totalorder %v2842, %v470
        %v2844 = vsel %vm2843, 1, 0
        %2845 = vset.pattern.permute.xlu0 0
        %2846 = vperm.xlu0 %2845, %v2844
        %v2847 = vpop.permute.xlu0 %2846
        %vm2848 = vcmp.eq.s32.totalorder %v2847, 1
        %v2849 = vsel %vm2848, %v2841, %v2693
        %v2850 = vsel %vm2848, %v2835, %v2694
        %2852 = vrot.lane.b32.xlu0 %v2802, 32
        %v2853 = vpop.permute.xlu0 %2852
        %s2855 = scalar_lea.vmem %s451, 96
        %2856 = vst.msk [vmem:[%s2855] sm:$0xff] %vm822, %v2853
        %2858 = vrot.lane.b32.xlu0 %v2849, 32
        %v2859 = vpop.permute.xlu0 %2858
        %s2861 = scalar_lea.vmem %s458, 24
        %2862 = vst.msk [vmem:[%s2861] sm:$0xff] %vm822, %v2859
        %s2863 = scalar_lea.vmem [#allocation2], 104
        %v2864 = vld [vmem:[%s2863] sm:$0xff]
        %v2865 = vsel %vm822, %v2853, 0
        %2867 = vmatpush.msra.mxu0 0.0
        %2868 = vmatpush.msra.mxu0 0.0
        %2869 = vmatpush.msra.mxu0 0.0
        %2870 = vmatpush.msra.mxu0 0.0
        %2871 = vmatpush.msra.mxu0 0.0
        %2872 = vmatpush.msra.mxu0 0.0
        %2873 = vmatpush.msra.mxu0 0.0
        %2874 = vmatpush.msra.mxu0 0.0
        %2875 = vmatpush.msra.mxu0 0.0
        %2876 = vmatpush.msra.mxu0 0.0
        %2877 = vmatpush.msra.mxu0 0.0
        %2878 = vmatpush.msra.mxu0 0.0
        %2879 = vmatpush.msra.mxu0 %v474
        %2880 = vmatpush.msra.mxu0 %v473
        %2881 = vmatpush.msra.mxu0 %v472
        %2882 = vmatpush.msra.mxu0 %v471
        %2883 = vmatmul.f32.gmra.mxu0 %v2865
        %v2884 = vpop.f32.mrf.mxu0
        %v2885 = vadd.f32 0.0, %v2884
        %2886 = vdwg.mxu0
        %v2887 = vadd.f32 %v2864, %v2885
        %s2888 = scalar_lea.vmem [#allocation3], 16
        %v2889 = vld [vmem:[%s2888] sm:$0xff]
        %v2890 = vsel %vm822, %v2859, 0
        %2892 = vmatpush.msra.mxu0 0.0
        %2893 = vmatpush.msra.mxu0 0.0
        %2894 = vmatpush.msra.mxu0 0.0
        %2895 = vmatpush.msra.mxu0 0.0
        %2896 = vmatpush.msra.mxu0 0.0
        %2897 = vmatpush.msra.mxu0 0.0
        %2898 = vmatpush.msra.mxu0 0.0
        %2899 = vmatpush.msra.mxu0 0.0
        %2900 = vmatpush.msra.mxu0 0.0
        %2901 = vmatpush.msra.mxu0 0.0
        %2902 = vmatpush.msra.mxu0 0.0
        %2903 = vmatpush.msra.mxu0 0.0
        %2904 = vmatpush.msra.mxu0 %v478
        %2905 = vmatpush.msra.mxu0 %v477
        %2906 = vmatpush.msra.mxu0 %v476
        %2907 = vmatpush.msra.mxu0 %v475
        %2908 = vmatmul.f32.gmra.mxu0 %v2890
        %v2909 = vpop.f32.mrf.mxu0
        %v2910 = vadd.f32 0.0, %v2909
        %2911 = vdwg.mxu0
        %v2912 = vadd.f32 %v2889, %v2910
        %s2913 = sadd.s32 %s814, 13
        %v2914 = vxor.u32 %v2887, 2147483648
        %v2915 = vmul.f32 %v2914, 1.442695
        %v2916 = vpow.pop %v2915
        %v2917 = vadd.f32 %v2916, 1.0
        %v2918 = vrcp.pop %v2917
        %v2919 = vmul.f32 %v2917, %v2918
        %v2920 = vsub.f32 1.0, %v2919
        %v2921 = vmul.f32 %v2918, %v2920
        %v2922 = vadd.f32 %v2918, %v2921
        %vm2923 = vweird.f32 %v2917
        %vm2924 = vweird.f32 %v2918
        %vm2925 = vmor %vm2923, %vm2924
        %v2926 = vsel %vm2925, %v2918, %v2922
        %v2927 = vand.u32 2147483647, %v2917
        %vm2928 = vcmp.eq.f32.partialorder %v2927, 8.507059e+37
        %v2929 = vand.u32 %v2917, 2147483648
        %v2930 = vor.u32 1.1754944e-38, %v2929
        %v2931 = vsel %vm2928, %v2930, %v2926
        %v2932 = vmul.f32 1.0, %v2931
        %v2933 = vtanh.pop %v2887
        %v2934 = vmul.f32 %v2932, %v2803
        %2936 = vrot.lane.b32.xlu0 %v2933, 64
        %v2937 = vpop.permute.xlu0 %2936
        %v2939 = vmul.f32 %v2932, %v2937
        %2941 = vrot.lane.b32.xlu0 %v2939, 32
        %v2942 = vpop.permute.xlu0 %2941
        %v2944 = vadd.f32 %v2934, %v2942
        %v2945 = vtanh.pop %v2944
        %2947 = vrot.lane.b32.xlu0 %v2945, 64
        %v2948 = vpop.permute.xlu0 %2947
        %v2950 = vmul.f32 %v2932, %v2948
        %v2951 = vstv %s2913
        %vm2952 = vcmp.lt.s32.totalorder %v2951, %v470
        %v2953 = vsel %vm2952, 1, 0
        %2954 = vset.pattern.permute.xlu0 0
        %2955 = vperm.xlu0 %2954, %v2953
        %v2956 = vpop.permute.xlu0 %2955
        %vm2957 = vcmp.eq.s32.totalorder %v2956, 1
        %v2958 = vsel %vm2957, %v2950, %v2802
        %v2959 = vsel %vm2957, %v2944, %v2803
        %s2960 = sadd.s32 %s816, 2
        %v2961 = vxor.u32 %v2912, 2147483648
        %v2962 = vmul.f32 %v2961, 1.442695
        %v2963 = vpow.pop %v2962
        %v2964 = vadd.f32 %v2963, 1.0
        %v2965 = vrcp.pop %v2964
        %v2966 = vmul.f32 %v2964, %v2965
        %v2967 = vsub.f32 1.0, %v2966
        %v2968 = vmul.f32 %v2965, %v2967
        %v2969 = vadd.f32 %v2965, %v2968
        %vm2970 = vweird.f32 %v2964
        %vm2971 = vweird.f32 %v2965
        %vm2972 = vmor %vm2970, %vm2971
        %v2973 = vsel %vm2972, %v2965, %v2969
        %v2974 = vand.u32 2147483647, %v2964
        %vm2975 = vcmp.eq.f32.partialorder %v2974, 8.507059e+37
        %v2976 = vand.u32 %v2964, 2147483648
        %v2977 = vor.u32 1.1754944e-38, %v2976
        %v2978 = vsel %vm2975, %v2977, %v2973
        %v2979 = vmul.f32 1.0, %v2978
        %v2980 = vtanh.pop %v2912
        %v2981 = vmul.f32 %v2979, %v2850
        %2983 = vrot.lane.b32.xlu0 %v2980, 64
        %v2984 = vpop.permute.xlu0 %2983
        %v2986 = vmul.f32 %v2979, %v2984
        %2988 = vrot.lane.b32.xlu0 %v2986, 32
        %v2989 = vpop.permute.xlu0 %2988
        %v2991 = vadd.f32 %v2981, %v2989
        %v2992 = vtanh.pop %v2991
        %2994 = vrot.lane.b32.xlu0 %v2992, 64
        %v2995 = vpop.permute.xlu0 %2994
        %v2997 = vmul.f32 %v2979, %v2995
        %v2998 = vstv %s2960
        %vm2999 = vcmp.lt.s32.totalorder %v2998, %v470
        %v3000 = vsel %vm2999, 1, 0
        %3001 = vset.pattern.permute.xlu0 0
        %3002 = vperm.xlu0 %3001, %v3000
        %v3003 = vpop.permute.xlu0 %3002
        %vm3004 = vcmp.eq.s32.totalorder %v3003, 1
        %v3005 = vsel %vm3004, %v2997, %v2849
        %v3006 = vsel %vm3004, %v2991, %v2850
        %3008 = vrot.lane.b32.xlu0 %v2958, 32
        %v3009 = vpop.permute.xlu0 %3008
        %s3011 = scalar_lea.vmem %s451, 104
        %3012 = vst.msk [vmem:[%s3011] sm:$0xff] %vm822, %v3009
        %3014 = vrot.lane.b32.xlu0 %v3005, 32
        %v3015 = vpop.permute.xlu0 %3014
        %s3017 = scalar_lea.vmem %s458, 16
        %3018 = vst.msk [vmem:[%s3017] sm:$0xff] %vm822, %v3015
        %s3019 = scalar_lea.vmem [#allocation2], 112
        %v3020 = vld [vmem:[%s3019] sm:$0xff]
        %v3021 = vsel %vm822, %v3009, 0
        %3023 = vmatpush.msra.mxu0 0.0
        %3024 = vmatpush.msra.mxu0 0.0
        %3025 = vmatpush.msra.mxu0 0.0
        %3026 = vmatpush.msra.mxu0 0.0
        %3027 = vmatpush.msra.mxu0 0.0
        %3028 = vmatpush.msra.mxu0 0.0
        %3029 = vmatpush.msra.mxu0 0.0
        %3030 = vmatpush.msra.mxu0 0.0
        %3031 = vmatpush.msra.mxu0 0.0
        %3032 = vmatpush.msra.mxu0 0.0
        %3033 = vmatpush.msra.mxu0 0.0
        %3034 = vmatpush.msra.mxu0 0.0
        %3035 = vmatpush.msra.mxu0 %v474
        %3036 = vmatpush.msra.mxu0 %v473
        %3037 = vmatpush.msra.mxu0 %v472
        %3038 = vmatpush.msra.mxu0 %v471
        %3039 = vmatmul.f32.gmra.mxu0 %v3021
        %v3040 = vpop.f32.mrf.mxu0
        %v3041 = vadd.f32 0.0, %v3040
        %3042 = vdwg.mxu0
        %v3043 = vadd.f32 %v3020, %v3041
        %s3044 = scalar_lea.vmem [#allocation3], 8
        %v3045 = vld [vmem:[%s3044] sm:$0xff]
        %v3046 = vsel %vm822, %v3015, 0
        %3048 = vmatpush.msra.mxu0 0.0
        %3049 = vmatpush.msra.mxu0 0.0
        %3050 = vmatpush.msra.mxu0 0.0
        %3051 = vmatpush.msra.mxu0 0.0
        %3052 = vmatpush.msra.mxu0 0.0
        %3053 = vmatpush.msra.mxu0 0.0
        %3054 = vmatpush.msra.mxu0 0.0
        %3055 = vmatpush.msra.mxu0 0.0
        %3056 = vmatpush.msra.mxu0 0.0
        %3057 = vmatpush.msra.mxu0 0.0
        %3058 = vmatpush.msra.mxu0 0.0
        %3059 = vmatpush.msra.mxu0 0.0
        %3060 = vmatpush.msra.mxu0 %v478
        %3061 = vmatpush.msra.mxu0 %v477
        %3062 = vmatpush.msra.mxu0 %v476
        %3063 = vmatpush.msra.mxu0 %v475
        %3064 = vmatmul.f32.gmra.mxu0 %v3046
        %v3065 = vpop.f32.mrf.mxu0
        %v3066 = vadd.f32 0.0, %v3065
        %3067 = vdwg.mxu0
        %v3068 = vadd.f32 %v3045, %v3066
        %s3069 = sadd.s32 %s814, 14
        %v3070 = vxor.u32 %v3043, 2147483648
        %v3071 = vmul.f32 %v3070, 1.442695
        %v3072 = vpow.pop %v3071
        %v3073 = vadd.f32 %v3072, 1.0
        %v3074 = vrcp.pop %v3073
        %v3075 = vmul.f32 %v3073, %v3074
        %v3076 = vsub.f32 1.0, %v3075
        %v3077 = vmul.f32 %v3074, %v3076
        %v3078 = vadd.f32 %v3074, %v3077
        %vm3079 = vweird.f32 %v3073
        %vm3080 = vweird.f32 %v3074
        %vm3081 = vmor %vm3079, %vm3080
        %v3082 = vsel %vm3081, %v3074, %v3078
        %v3083 = vand.u32 2147483647, %v3073
        %vm3084 = vcmp.eq.f32.partialorder %v3083, 8.507059e+37
        %v3085 = vand.u32 %v3073, 2147483648
        %v3086 = vor.u32 1.1754944e-38, %v3085
        %v3087 = vsel %vm3084, %v3086, %v3082
        %v3088 = vmul.f32 1.0, %v3087
        %v3089 = vtanh.pop %v3043
        %v3090 = vmul.f32 %v3088, %v2959
        %3092 = vrot.lane.b32.xlu0 %v3089, 64
        %v3093 = vpop.permute.xlu0 %3092
        %v3095 = vmul.f32 %v3088, %v3093
        %3097 = vrot.lane.b32.xlu0 %v3095, 32
        %v3098 = vpop.permute.xlu0 %3097
        %v3100 = vadd.f32 %v3090, %v3098
        %v3101 = vtanh.pop %v3100
        %3103 = vrot.lane.b32.xlu0 %v3101, 64
        %v3104 = vpop.permute.xlu0 %3103
        %v3106 = vmul.f32 %v3088, %v3104
        %v3107 = vstv %s3069
        %vm3108 = vcmp.lt.s32.totalorder %v3107, %v470
        %v3109 = vsel %vm3108, 1, 0
        %3110 = vset.pattern.permute.xlu0 0
        %3111 = vperm.xlu0 %3110, %v3109
        %v3112 = vpop.permute.xlu0 %3111
        %vm3113 = vcmp.eq.s32.totalorder %v3112, 1
        %v3114 = vsel %vm3113, %v3106, %v2958
        %v3115 = vsel %vm3113, %v3100, %v2959
        %s3116 = sadd.s32 %s816, 1
        %v3117 = vxor.u32 %v3068, 2147483648
        %v3118 = vmul.f32 %v3117, 1.442695
        %v3119 = vpow.pop %v3118
        %v3120 = vadd.f32 %v3119, 1.0
        %v3121 = vrcp.pop %v3120
        %v3122 = vmul.f32 %v3120, %v3121
        %v3123 = vsub.f32 1.0, %v3122
        %v3124 = vmul.f32 %v3121, %v3123
        %v3125 = vadd.f32 %v3121, %v3124
        %vm3126 = vweird.f32 %v3120
        %vm3127 = vweird.f32 %v3121
        %vm3128 = vmor %vm3126, %vm3127
        %v3129 = vsel %vm3128, %v3121, %v3125
        %v3130 = vand.u32 2147483647, %v3120
        %vm3131 = vcmp.eq.f32.partialorder %v3130, 8.507059e+37
        %v3132 = vand.u32 %v3120, 2147483648
        %v3133 = vor.u32 1.1754944e-38, %v3132
        %v3134 = vsel %vm3131, %v3133, %v3129
        %v3135 = vmul.f32 1.0, %v3134
        %v3136 = vtanh.pop %v3068
        %v3137 = vmul.f32 %v3135, %v3006
        %3139 = vrot.lane.b32.xlu0 %v3136, 64
        %v3140 = vpop.permute.xlu0 %3139
        %v3142 = vmul.f32 %v3135, %v3140
        %3144 = vrot.lane.b32.xlu0 %v3142, 32
        %v3145 = vpop.permute.xlu0 %3144
        %v3147 = vadd.f32 %v3137, %v3145
        %v3148 = vtanh.pop %v3147
        %3150 = vrot.lane.b32.xlu0 %v3148, 64
        %v3151 = vpop.permute.xlu0 %3150
        %v3153 = vmul.f32 %v3135, %v3151
        %v3154 = vstv %s3116
        %vm3155 = vcmp.lt.s32.totalorder %v3154, %v470
        %v3156 = vsel %vm3155, 1, 0
        %3157 = vset.pattern.permute.xlu0 0
        %3158 = vperm.xlu0 %3157, %v3156
        %v3159 = vpop.permute.xlu0 %3158
        %vm3160 = vcmp.eq.s32.totalorder %v3159, 1
        %v3161 = vsel %vm3160, %v3153, %v3005
        %v3162 = vsel %vm3160, %v3147, %v3006
        %3164 = vrot.lane.b32.xlu0 %v3114, 32
        %v3165 = vpop.permute.xlu0 %3164
        %s3167 = scalar_lea.vmem %s451, 112
        %3168 = vst.msk [vmem:[%s3167] sm:$0xff] %vm822, %v3165
        %3170 = vrot.lane.b32.xlu0 %v3161, 32
        %v3171 = vpop.permute.xlu0 %3170
        %s3173 = scalar_lea.vmem %s458, 8
        %3174 = vst.msk [vmem:[%s3173] sm:$0xff] %vm822, %v3171
        %s3175 = scalar_lea.vmem [#allocation2], 120
        %v3176 = vld [vmem:[%s3175] sm:$0xff]
        %v3177 = vsel %vm822, %v3165, 0
        %3179 = vmatpush.msra.mxu0 0.0
        %3180 = vmatpush.msra.mxu0 0.0
        %3181 = vmatpush.msra.mxu0 0.0
        %3182 = vmatpush.msra.mxu0 0.0
        %3183 = vmatpush.msra.mxu0 0.0
        %3184 = vmatpush.msra.mxu0 0.0
        %3185 = vmatpush.msra.mxu0 0.0
        %3186 = vmatpush.msra.mxu0 0.0
        %3187 = vmatpush.msra.mxu0 0.0
        %3188 = vmatpush.msra.mxu0 0.0
        %3189 = vmatpush.msra.mxu0 0.0
        %3190 = vmatpush.msra.mxu0 0.0
        %3191 = vmatpush.msra.mxu0 %v474
        %3192 = vmatpush.msra.mxu0 %v473
        %3193 = vmatpush.msra.mxu0 %v472
        %3194 = vmatpush.msra.mxu0 %v471
        %3195 = vmatmul.f32.gmra.mxu0 %v3177
        %v3196 = vpop.f32.mrf.mxu0
        %v3197 = vadd.f32 0.0, %v3196
        %3198 = vdwg.mxu0
        %v3199 = vadd.f32 %v3176, %v3197
        %v3200 = vld [vmem:[#allocation3] sm:$0xff]
        %v3201 = vsel %vm822, %v3171, 0
        %3203 = vmatpush.msra.mxu0 0.0
        %3204 = vmatpush.msra.mxu0 0.0
        %3205 = vmatpush.msra.mxu0 0.0
        %3206 = vmatpush.msra.mxu0 0.0
        %3207 = vmatpush.msra.mxu0 0.0
        %3208 = vmatpush.msra.mxu0 0.0
        %3209 = vmatpush.msra.mxu0 0.0
        %3210 = vmatpush.msra.mxu0 0.0
        %3211 = vmatpush.msra.mxu0 0.0
        %3212 = vmatpush.msra.mxu0 0.0
        %3213 = vmatpush.msra.mxu0 0.0
        %3214 = vmatpush.msra.mxu0 0.0
        %3215 = vmatpush.msra.mxu0 %v478
        %3216 = vmatpush.msra.mxu0 %v477
        %3217 = vmatpush.msra.mxu0 %v476
        %3218 = vmatpush.msra.mxu0 %v475
        %3219 = vmatmul.f32.gmra.mxu0 %v3201
        %v3220 = vpop.f32.mrf.mxu0
        %v3221 = vadd.f32 0.0, %v3220
        %3222 = vdwg.mxu0
        %v3223 = vadd.f32 %v3200, %v3221
        %s3224 = sadd.s32 %s814, 15
        %v3225 = vxor.u32 %v3199, 2147483648
        %v3226 = vmul.f32 %v3225, 1.442695
        %v3227 = vpow.pop %v3226
        %v3228 = vadd.f32 %v3227, 1.0
        %v3229 = vrcp.pop %v3228
        %v3230 = vmul.f32 %v3228, %v3229
        %v3231 = vsub.f32 1.0, %v3230
        %v3232 = vmul.f32 %v3229, %v3231
        %v3233 = vadd.f32 %v3229, %v3232
        %vm3234 = vweird.f32 %v3228
        %vm3235 = vweird.f32 %v3229
        %vm3236 = vmor %vm3234, %vm3235
        %v3237 = vsel %vm3236, %v3229, %v3233
        %v3238 = vand.u32 2147483647, %v3228
        %vm3239 = vcmp.eq.f32.partialorder %v3238, 8.507059e+37
        %v3240 = vand.u32 %v3228, 2147483648
        %v3241 = vor.u32 1.1754944e-38, %v3240
        %v3242 = vsel %vm3239, %v3241, %v3237
        %v3243 = vmul.f32 1.0, %v3242
        %v3244 = vtanh.pop %v3199
        %v3245 = vmul.f32 %v3243, %v3115
        %3247 = vrot.lane.b32.xlu0 %v3244, 64
        %v3248 = vpop.permute.xlu0 %3247
        %v3250 = vmul.f32 %v3243, %v3248
        %3252 = vrot.lane.b32.xlu0 %v3250, 32
        %v3253 = vpop.permute.xlu0 %3252
        %v3255 = vadd.f32 %v3245, %v3253
        %v3256 = vtanh.pop %v3255
        %3258 = vrot.lane.b32.xlu0 %v3256, 64
        %v3259 = vpop.permute.xlu0 %3258
        %v3261 = vmul.f32 %v3243, %v3259
        %v3262 = vstv %s3224
        %vm3263 = vcmp.lt.s32.totalorder %v3262, %v470
        %v3264 = vsel %vm3263, 1, 0
        %3265 = vset.pattern.permute.xlu0 0
        %3266 = vperm.xlu0 %3265, %v3264
        %v3267 = vpop.permute.xlu0 %3266
        %vm3268 = vcmp.eq.s32.totalorder %v3267, 1
        %v3269 = vsel %vm3268, %v3261, %v3114
        %v3270 = vsel %vm3268, %v3255, %v3115
        %v3271 = vxor.u32 %v3223, 2147483648
        %v3272 = vmul.f32 %v3271, 1.442695
        %v3273 = vpow.pop %v3272
        %v3274 = vadd.f32 %v3273, 1.0
        %v3275 = vrcp.pop %v3274
        %v3276 = vmul.f32 %v3274, %v3275
        %v3277 = vsub.f32 1.0, %v3276
        %v3278 = vmul.f32 %v3275, %v3277
        %v3279 = vadd.f32 %v3275, %v3278
        %vm3280 = vweird.f32 %v3274
        %vm3281 = vweird.f32 %v3275
        %vm3282 = vmor %vm3280, %vm3281
        %v3283 = vsel %vm3282, %v3275, %v3279
        %v3284 = vand.u32 2147483647, %v3274
        %vm3285 = vcmp.eq.f32.partialorder %v3284, 8.507059e+37
        %v3286 = vand.u32 %v3274, 2147483648
        %v3287 = vor.u32 1.1754944e-38, %v3286
        %v3288 = vsel %vm3285, %v3287, %v3283
        %v3289 = vmul.f32 1.0, %v3288
        %v3290 = vtanh.pop %v3223
        %v3291 = vmul.f32 %v3289, %v3162
        %3293 = vrot.lane.b32.xlu0 %v3290, 64
        %v3294 = vpop.permute.xlu0 %3293
        %v3296 = vmul.f32 %v3289, %v3294
        %3298 = vrot.lane.b32.xlu0 %v3296, 32
        %v3299 = vpop.permute.xlu0 %3298
        %v3301 = vadd.f32 %v3291, %v3299
        %v3302 = vtanh.pop %v3301
        %3304 = vrot.lane.b32.xlu0 %v3302, 64
        %v3305 = vpop.permute.xlu0 %3304
        %v3307 = vmul.f32 %v3289, %v3305
        %v3308 = vstv %s816
        %vm3309 = vcmp.lt.s32.totalorder %v3308, %v470
        %v3310 = vsel %vm3309, 1, 0
        %3311 = vset.pattern.permute.xlu0 0
        %3312 = vperm.xlu0 %3311, %v3310
        %v3313 = vpop.permute.xlu0 %3312
        %vm3314 = vcmp.eq.s32.totalorder %v3313, 1
        %v3315 = vsel %vm3314, %v3307, %v3161
        %v3316 = vsel %vm3314, %v3301, %v3162
        %3318 = vrot.lane.b32.xlu0 %v3269, 32
        %v3319 = vpop.permute.xlu0 %3318
        %s3321 = scalar_lea.vmem %s451, 120
        %3322 = vst.msk [vmem:[%s3321] sm:$0xff] %vm822, %v3319
        %3324 = vrot.lane.b32.xlu0 %v3315, 32
        %v3325 = vpop.permute.xlu0 %3324
        %3327 = vst.msk [vmem:[%s458] sm:$0xff] %vm822, %v3325
        %3328 = vst.msk [vmem:[#allocation4] sm:$0xff] %vm822, %v3319
        %3330 = vrot.lane.b32.xlu0 %v3270, 96
        %v3331 = vpop.permute.xlu0 %3330
        %3333 = vst.msk [vmem:[#allocation5] sm:$0xff] %vm822, %v3331
        %3334 = vst.msk [vmem:[#allocation6] sm:$0xff] %vm822, %v3325
        %3336 = vrot.lane.b32.xlu0 %v3316, 96
        %v3337 = vpop.permute.xlu0 %3336
        %3339 = vst.msk [vmem:[#allocation7] sm:$0xff] %vm822, %v3337
        %p3340 = scmp.eq.s32.totalorder %s26, 1
        // Predicated region
        $region61: #{tpu_custom_call.1} parent=55 // pred_check
          %p3341 = pneg %p3340
        $region62: #{tpu_custom_call.1} parent=55 // pred_check_branch
          %3343 = sbr.rel (%p3341) target = $region64
        $region63: #{tpu_custom_call.1} parent=55 // pred_region
          %3344 = vst.msk [vmem:[#allocation8] sm:$0xff] %vm822, %v3319
          %3345 = vst.msk [vmem:[#allocation10] sm:$0xff] %vm822, %v3325
        $region64: #{tpu_custom_call.1} parent=55 // pred_fallthru
          _
        %s3346 = smul.u32 16, %s26
        %p3347 = scmp.lt.s32.totalorder %s3346, 31
        %s3348 = scalar_select %p3347, %s3346, 31
        %s3349 = smul.addr %s3348, 8
        %s3350 = scalar_lea.vmem %s9, %s3349
        %s3351 = ssub.s32 1, %s26
        %s3352 = smul.u32 16, %s3351
        %p3353 = scmp.lt.s32.totalorder %s3352, 31
        %s3354 = scalar_select %p3353, %s3352, 31
        %s3355 = smul.addr %s3354, 8
        %s3356 = scalar_lea.vmem %s10, %s3355
        // Predicated region
        $region65: #{tpu_custom_call.1} parent=55 // pred_check
          %p3357 = pneg %p245
        $region66: #{tpu_custom_call.1} parent=55 // pred_check_branch
          %3359 = sbr.rel (%p3357) target = $region68
        $region67: #{tpu_custom_call.1} parent=55 // pred_region
          %s3360 = smul.u32 16, %s26
        $region68: #{tpu_custom_call.1} parent=55 // pred_fallthru
          _
        // Predicated region
        $region69: #{tpu_custom_call.1} parent=55 // pred_check
          %p3361 = pneg %p273
        $region70: #{tpu_custom_call.1} parent=55 // pred_check_branch
          %3363 = sbr.rel (%p3361) target = $region72
        $region71: #{tpu_custom_call.1} parent=55 // pred_region
          %s3364 = ssub.s32 1, %s26
          %s3365 = smul.u32 16, %s3364
        $region72: #{tpu_custom_call.1} parent=55 // pred_fallthru
          _
        // Predicated region
        $region73: #{tpu_custom_call.1} parent=55 // pred_check
          %p3366 = pneg %p294
        $region74: #{tpu_custom_call.1} parent=55 // pred_check_branch
          %3368 = sbr.rel (%p3366) target = $region76
        $region75: #{tpu_custom_call.1} parent=55 // pred_region
          %3370 = vsyncadd [#allocation9], 0
          %s3372 = sshll.u32 [#allocation8], 4
          %s3373 = int_to_ptr.vmem [resolvable:$true] %s3372
          %s3374 = sshll.u32 %s11, 4
          %s3375 = int_to_ptr.hbm [resolvable:$true] %s3374
          %3377 = dma.vmem_to_hbm [thread:$0]  %s3373, 128, %s3375, [#allocation9]
        $region76: #{tpu_custom_call.1} parent=55 // pred_fallthru
          _
        // Predicated region
        $region77: #{tpu_custom_call.1} parent=55 // pred_check
          %p3378 = pneg %p315
        $region78: #{tpu_custom_call.1} parent=55 // pred_check_branch
          %3380 = sbr.rel (%p3378) target = $region80
        $region79: #{tpu_custom_call.1} parent=55 // pred_region
          %3382 = vsyncadd [#allocation11], 0
          %s3384 = sshll.u32 [#allocation10], 4
          %s3385 = int_to_ptr.vmem [resolvable:$true] %s3384
          %s3386 = sshll.u32 %s12, 4
          %s3387 = int_to_ptr.hbm [resolvable:$true] %s3386
          %3389 = dma.vmem_to_hbm [thread:$0]  %s3385, 128, %s3387, [#allocation11]
        $region80: #{tpu_custom_call.1} parent=55 // pred_fallthru
          _
        // Predicated region
        $region81: #{tpu_custom_call.1} parent=55 // pred_check
          %p3390 = pneg %p294
        $region82: #{tpu_custom_call.1} parent=55 // pred_check_branch
          %3392 = sbr.rel (%p3390) target = $region84
        $region83: #{tpu_custom_call.1} parent=55 // pred_region
          %3394 = dma.done [#allocation9], 128
        $region84: #{tpu_custom_call.1} parent=55 // pred_fallthru
          _
        // Predicated region
        $region85: #{tpu_custom_call.1} parent=55 // pred_check
          %p3395 = pneg %p315
        $region86: #{tpu_custom_call.1} parent=55 // pred_check_branch
          %3397 = sbr.rel (%p3395) target = $region88
        $region87: #{tpu_custom_call.1} parent=55 // pred_region
          %3399 = dma.done [#allocation11], 128
        $region88: #{tpu_custom_call.1} parent=55 // pred_fallthru
          _
      $region56: #{tpu_custom_call.1} parent=5 // pred_fallthru
        _
      %p3400 = scmp.le.s32.totalorder 2, %s21
      // Predicated region
      $region89: #{tpu_custom_call.1} parent=5 // pred_check
        %p3401 = pneg %p3400
      $region90: #{tpu_custom_call.1} parent=5 // pred_check_branch
        %3403 = sbr.rel (%p3401) target = $region92
      $region91: #{tpu_custom_call.1} parent=5 // pred_region
        %s3404 = ssub.s32 %s21, 2
        // Predicated region
        $region93: #{tpu_custom_call.1} parent=91 // pred_check
          %p3405 = pneg %p251
        $region94: #{tpu_custom_call.1} parent=91 // pred_check_branch
          %3407 = sbr.rel (%p3405) target = $region96
        $region95: #{tpu_custom_call.1} parent=91 // pred_region
          %s3408 = smul.u32 16, %s27
          %p3409 = scmp.lt.s32.totalorder %s3408, 31
          %s3410 = scalar_select %p3409, %s3408, 31
          %s3411 = smul.addr %s3410, 8
          %s3412 = scalar_lea.vmem %s9, %s3411
        $region96: #{tpu_custom_call.1} parent=91 // pred_fallthru
          _
        // Predicated region
        $region97: #{tpu_custom_call.1} parent=91 // pred_check
          %p3413 = pneg %p279
        $region98: #{tpu_custom_call.1} parent=91 // pred_check_branch
          %3415 = sbr.rel (%p3413) target = $region100
        $region99: #{tpu_custom_call.1} parent=91 // pred_region
          %s3416 = ssub.s32 1, %s27
          %s3417 = smul.u32 16, %s3416
          %p3418 = scmp.lt.s32.totalorder %s3417, 31
          %s3419 = scalar_select %p3418, %s3417, 31
          %s3420 = smul.addr %s3419, 8
          %s3421 = scalar_lea.vmem %s10, %s3420
        $region100: #{tpu_custom_call.1} parent=91 // pred_fallthru
          _
      $region92: #{tpu_custom_call.1} parent=5 // pred_fallthru
        _
    $region6: #{tpu_custom_call.1} parent=1 // loop_footer
      %s25 = sadd.s32 1, %s21
    $region7: #{tpu_custom_call.1} parent=1 // loop_footer_branch
      %20 = sbr.rel target = $region3
    $region8: #{tpu_custom_call.1} parent=1 // loop_exit
      _
    %3422 = vsyncpa [#allocation9], 1
    %s3423 = scalar_lea.sflag [#allocation9], 1
    %3424 = vsyncpa %s3423, 1
    %3425 = vsyncpa [#allocation11], 1

</llo_original>
